<compile_context>
chip_gen: v7x
topology: tpu7x:2x2x1
jax: 0.10.0
libtpu: 0.0.40
codegen_flags: <defaults>
</compile_context>

<pallas_src>
import functools

import numpy as np
import jax
import jax.numpy as jnp
from jax.experimental import pallas as pl
from jax.experimental.pallas import tpu as pltpu

LEAK = 0.2
BN_EPS = 1e-5
LANE = 128
VMEM_LIMIT = 32 * 1024 * 1024          # <= half of v7x physical VMEM; fine on v5e/v6e
MAX_TM = 2048                          # streamed-M tile, multiple of 256 (v6e/v7x MXU)
TAIL_SEL_BUDGET = 8 * 1024 * 1024      # bytes of tap-selection constants for fused tail


def _round_up(x, m):
    return (x + m - 1) // m * m


def _conv_out_dims(dims):
    # Conv3d(kernel=3, stride=2, padding=1) output size per dim.
    return tuple((d + 1) // 2 for d in dims)


# ----------------------------- Pallas kernels ------------------------------

def _conv_block_kernel(p_ref, w_ref, shift_ref, o_ref):
    # p: (TM, K) bf16   w: (K, Cout) bf16   shift: (1, Cout) f32   o: (TM, Cout) bf16
    y = jnp.dot(p_ref[...], w_ref[...], preferred_element_type=jnp.float32)
    y = y + shift_ref[...]                                     # bias + folded BN shift
    o_ref[...] = jnp.where(y > 0, y, LEAK * y).astype(o_ref.dtype)   # LeakyReLU(0.2)


def conv_block(patches, w_mat, shift, *, tm):
    """patches: (Mp, K) bf16, w_mat: (K, Cout) bf16, shift: (1, Cout) f32."""
    mp, k = patches.shape
    cout = w_mat.shape[1]
    n_tiles = mp // tm
    if n_tiles > 2:        # deeper pipelining only pays off for long M grids
        patch_spec = pl.BlockSpec((tm, k), lambda i: (i, 0),
                                  pipeline_mode=pl.Buffered(3))
    else:
        patch_spec = pl.BlockSpec((tm, k), lambda i: (i, 0))
    flops = 2 * mp * k * cout
    bytes_accessed = patches.size * 2 + w_mat.size * 2 + shift.size * 4 + mp * cout * 2
    return pl.pallas_call(
        _conv_block_kernel,
        out_shape=jax.ShapeDtypeStruct((mp, cout), jnp.bfloat16),
        grid_spec=pltpu.PrefetchScalarGridSpec(
            num_scalar_prefetch=0,
            grid=(n_tiles,),
            in_specs=[
                patch_spec,                                   # streamed over M
                pl.BlockSpec((k, cout), lambda i: (0, 0)),    # weights resident
                pl.BlockSpec((1, cout), lambda i: (0, 0)),    # shift resident
            ],
            out_specs=pl.BlockSpec((tm, cout), lambda i: (i, 0)),
        ),
        compiler_params=pltpu.CompilerParams(
            dimension_semantics=("parallel",),
            vmem_limit_bytes=VMEM_LIMIT,
            # Let XLA fuse the im2col producer into the Pallas input DMA so the
            # 27x-expanded patch tensor is never materialized in HBM.
            allow_input_fusion=[True, False, False],
        ),
        cost_estimate=pl.CostEstimate(
            flops=flops, transcendentals=0, bytes_accessed=bytes_accessed),
    )(patches, w_mat, shift)


def _tail_kernel(y_ref,
                 sel2_ref, w2_ref, sh2_ref,
                 sel3_ref, w3_ref, sh3_ref,
                 sel4_ref, w4_ref, sh4_ref,
                 fcw_ref, fcb_ref,
                 o_ref, *, tap_ids):
    """Fused layers 2..4 + global average pool + Linear, fully VMEM-resident."""

    def conv(act, sel_ref, w_ref, sh_ref, taps):
        m = sel_ref.shape[1]
        cout = w_ref.shape[2]
        acc = jnp.zeros((m, cout), jnp.float32)
        for i, t in enumerate(taps):                 # static unroll over active taps
            rows = jnp.dot(sel_ref[i], act,          # 0/1 gather of input rows
                           preferred_element_type=jnp.float32).astype(jnp.bfloat16)
            acc = acc + jnp.dot(rows, w_ref[t],
                                preferred_element_type=jnp.float32)
        acc = acc + sh_ref[...]                      # bias + folded BN shift
        return jnp.where(acc > 0, acc, LEAK * acc)   # LeakyReLU(0.2)

    a = y_ref[...]                                                  # (S1, C1) bf16
    a = conv(a, sel2_ref, w2_ref, sh2_ref, tap_ids[0]).astype(jnp.bfloat16)
    a = conv(a, sel3_ref, w3_ref, sh3_ref, tap_ids[1]).astype(jnp.bfloat16)
    a = conv(a, sel4_ref, w4_ref, sh4_ref, tap_ids[2])              # (M4, C4) f32

    pooled = jnp.sum(a, axis=0, keepdims=True) * (1.0 / a.shape[0])  # avg pool (1, C4)
    o_ref[...] = (jnp.dot(pooled, fcw_ref[...],
                          preferred_element_type=jnp.float32) + fcb_ref[...])


def fused_tail(y1, sels, w_taps, shifts, fcw, fcb, tap_ids):
    """y1: (B, S1, C1) bf16 layer-1 activations.  Returns logits (B, 1) f32."""
    b, s1, c1 = y1.shape
    kernel = functools.partial(_tail_kernel, tap_ids=tap_ids)

    in_specs = [pl.BlockSpec((None, s1, c1), lambda bi: (bi, 0, 0))]
    operands = [y1]
    for sel, w, sh in zip(sels, w_taps, shifts):
        in_specs += [
            pl.BlockSpec(sel.shape, lambda bi: (0, 0, 0)),   # tap selectors resident
            pl.BlockSpec(w.shape, lambda bi: (0, 0, 0)),     # per-tap weights resident
            pl.BlockSpec(sh.shape, lambda bi: (0, 0)),       # shift resident
        ]
        operands += [sel, w, sh]
    in_specs += [pl.BlockSpec(fcw.shape, lambda bi: (0, 0)),
                 pl.BlockSpec(fcb.shape, lambda bi: (0, 0))]
    operands += [fcw, fcb]

    flops = 0
    for sel, w in zip(sels, w_taps):
        t, m, s = sel.shape
        _, cin, cout = w.shape
        flops += 2 * b * t * (m * s * cin + m * cin * cout)
    flops += 2 * b * fcw.shape[0] * fcw.shape[1]
    bytes_accessed = sum(int(o.size) * o.dtype.itemsize for o in operands) + b * LANE * 4

    out = pl.pallas_call(
        kernel,
        out_shape=jax.ShapeDtypeStruct((b, 1, LANE), jnp.float32),
        grid_spec=pltpu.PrefetchScalarGridSpec(
            num_scalar_prefetch=0,
            grid=(b,),
            in_specs=in_specs,
            out_specs=pl.BlockSpec((None, 1, LANE), lambda bi: (bi, 0, 0)),
        ),
        compiler_params=pltpu.CompilerParams(
            dimension_semantics=("parallel",),
            vmem_limit_bytes=VMEM_LIMIT,
        ),
        cost_estimate=pl.CostEstimate(
            flops=flops, transcendentals=0, bytes_accessed=bytes_accessed),
    )(*operands)
    return out[:, 0, :1]                                            # (B, 1)


# ------------------------------- glue (JAX) ---------------------------------

def im2col_stride2(x):
    """x: (B, D, H, W, C) NDHWC.  Conv3d k=3, stride=2, pad=1 patches.

    Returns patches (B, Do*Ho*Wo, C*27) with flat K index = c*27 + (kd*9+kh*3+kw),
    matching PyTorch's weight.reshape(Cout, Cin*27)."""
    B, D, H, W, C = x.shape
    Do, Ho, Wo = (D + 1) // 2, (H + 1) // 2, (W + 1) // 2
    xp = jnp.pad(x, ((0, 0), (1, 1), (1, 1), (1, 1), (0, 0)))
    taps = []
    for kd in range(3):
        for kh in range(3):
            for kw in range(3):
                taps.append(xp[:, kd:kd + 2 * Do:2,
                               kh:kh + 2 * Ho:2,
                               kw:kw + 2 * Wo:2, :])
    pat = jnp.stack(taps, axis=-1)                     # (B, Do, Ho, Wo, C, 27)
    pat = pat.reshape(B, Do * Ho * Wo, C * 27)
    return pat, (Do, Ho, Wo)


def _tap_selectors(in_dims, out_dims):
    """Numpy (trace-time) 0/1 gather matrices, one per *active* 3x3x3 tap.

    sels[i]: (Mo, Si) with a single 1 per row where the tap reads an in-bounds
    input position; taps[i] is the flat PyTorch tap index kd*9+kh*3+kw."""
    D, H, W = in_dims
    Do, Ho, Wo = out_dims
    sels, taps = [], []
    for kd in range(3):
        for kh in range(3):
            for kw in range(3):
                S = np.zeros((Do * Ho * Wo, D * H * W), np.float32)
                any_valid = False
                for do in range(Do):
                    for ho in range(Ho):
                        for wo in range(Wo):
                            di, hi, wi = 2 * do + kd - 1, 2 * ho + kh - 1, 2 * wo + kw - 1
                            if 0 <= di < D and 0 <= hi < H and 0 <= wi < W:
                                S[(do * Ho + ho) * Wo + wo, (di * H + hi) * W + wi] = 1.0
                                any_valid = True
                if any_valid:
                    sels.append(S)
                    taps.append(kd * 9 + kh * 3 + kw)
    return np.stack(sels, axis=0), tuple(taps)


def init_params(key, hidden=32, in_channels=1):
    """Raw (PyTorch-layout) parameters."""
    chans = [in_channels + 1, hidden // 2, hidden, hidden * 2, hidden * 4]
    params = {"conv": []}
    for i in range(4):
        cin, cout = chans[i], chans[i + 1]
        key, k1, k2 = jax.random.split(key, 3)
        fan_in = cin * 27
        w = jax.random.normal(k1, (cout, cin, 3, 3, 3), jnp.float32) / jnp.sqrt(fan_in)
        b = 0.01 * jax.random.normal(k2, (cout,), jnp.float32)
        layer = {"w": w, "b": b}
        if i > 0:  # BatchNorm3d defaults (eval mode)
            layer.update(gamma=jnp.ones((cout,), jnp.float32),
                         beta=jnp.zeros((cout,), jnp.float32),
                         mean=jnp.zeros((cout,), jnp.float32),
                         var=jnp.ones((cout,), jnp.float32))
        params["conv"].append(layer)
    key, k1, k2 = jax.random.split(key, 3)
    params["fc_w"] = jax.random.normal(k1, (1, hidden * 4), jnp.float32) / jnp.sqrt(hidden * 4)
    params["fc_b"] = 0.01 * jax.random.normal(k2, (1,), jnp.float32)
    return params


def prepare_params(params, hidden=32):
    """One-time weight transform: fold conv bias + eval-mode BatchNorm scale into
    the weights; build (K, Cout) matmul weights (layer 1 / fallback) and per-tap
    (27, Cin, Cout) weights (fused tail); bf16 MXU operands, f32 shifts."""
    prepped = {"conv": []}
    for i, layer in enumerate(params["conv"]):
        w = layer["w"]                                   # (Cout, Cin, 3, 3, 3)
        cout, cin = w.shape[0], w.shape[1]
        if i == 0:                                       # no BN on first block
            scale = jnp.ones((cout,), jnp.float32)
            shift = layer["b"]
        else:                                            # fold eval-mode BN
            scale = layer["gamma"] / jnp.sqrt(layer["var"] + BN_EPS)
            shift = layer["b"] * scale + layer["beta"] - layer["mean"] * scale
        w_f = w.astype(jnp.float32) * scale[:, None, None, None, None]
        entry = {
            "shift": shift.reshape(1, cout).astype(jnp.float32),
            "w_mat": w_f.reshape(cout, cin * 27).T.astype(jnp.bfloat16),       # (K, Cout)
            "w_taps": jnp.transpose(w_f.reshape(cout, cin, 27),
                                    (2, 1, 0)).astype(jnp.bfloat16),           # (27, Cin, Cout)
        }
        prepped["conv"].append(entry)
    cfin = hidden * 4
    prepped["fc_w"] = jnp.zeros((cfin, LANE), jnp.float32).at[:, 0].set(params["fc_w"][0])
    prepped["fc_b"] = jnp.zeros((1, LANE), jnp.float32).at[0, 0].set(params["fc_b"][0])
    return prepped


def rhythm_discriminator_forward(params, x, program_ids, *, hidden=32, in_channels=1):
    """x: (B, C, T, TS, H, W) float; program_ids: (B,) or (B, K).  params from
    prepare_params()."""
    B, C, T, TS, H, W = x.shape

    # channel-adjust exactly like the PyTorch forward
    if C > in_channels:
        x = x[:, :in_channels]
    elif C < in_channels:
        pad = jnp.zeros((B, in_channels - C, T, TS, H, W), x.dtype)
        x = jnp.concatenate([x, pad], axis=1)

    if program_ids.ndim == 2:
        prog = jnp.mean(program_ids.astype(jnp.float32), axis=1)
    else:
        prog = program_ids.astype(jnp.float32)
    prog = jnp.broadcast_to(prog.reshape(B, 1, 1, 1, 1, 1), (B, 1, T, TS, H, W))

    x = jnp.concatenate([x.astype(jnp.float32), prog], axis=1)   # (B, 2, T, TS, H, W)
    c0 = x.shape[1]
    x = x.reshape(B, c0, T, TS * H, W)        # NCDHW (PyTorch Conv3d input)
    x = jnp.transpose(x, (0, 2, 3, 4, 1))     # -> NDHWC kernel layout
    x = x.astype(jnp.bfloat16)                # bf16 MXU operands, f32 accumulation

    chans = [in_channels + 1, hidden // 2, hidden, hidden * 2, hidden * 4]
    n_layers = len(params["conv"])

    # ---- layer 1: streamed im2col matmul (bias + LeakyReLU fused, no padding) ----
    pat, dims = im2col_stride2(x)                 # (B, Mb, K) bf16
    Mb, k = pat.shape[1], pat.shape[2]
    M = B * Mb
    pat2 = pat.reshape(M, k)
    if M <= MAX_TM:
        tm, mp = M, M                             # single full-dim block, no pad/slice
    else:
        tm = MAX_TM
        mp = _round_up(M, tm)
        pat2 = jnp.pad(pat2, ((0, mp - M), (0, 0)))
    y = conv_block(pat2, params["conv"][0]["w_mat"], params["conv"][0]["shift"], tm=tm)
    if mp > M:
        y = y[:M]

    # ---- layers 2..4 + pool + FC: single fused VMEM-resident kernel ----
    dims_chain = [dims]
    for _ in range(1, n_layers):
        dims_chain.append(_conv_out_dims(dims_chain[-1]))
    sel_bytes = sum(27 * int(np.prod(dims_chain[i])) * int(np.prod(dims_chain[i - 1])) * 2
                    for i in range(1, n_layers))

    if n_layers == 4 and sel_bytes <= TAIL_SEL_BUDGET:
        sels, tap_ids = [], []
        for i in range(1, n_layers):
            s, t = _tap_selectors(dims_chain[i - 1], dims_chain[i])
            sels.append(jnp.asarray(s, jnp.bfloat16))
            tap_ids.append(t)
        y1 = y.reshape(B, Mb, chans[1])
        return fused_tail(
            y1, sels,
            [params["conv"][i]["w_taps"] for i in range(1, n_layers)],
            [params["conv"][i]["shift"] for i in range(1, n_layers)],
            params["fc_w"], params["fc_b"], tuple(tap_ids))

    # TODO(synk): huge-input fallback — per-layer streamed conv kernels + jnp
    # pool/FC (the fused tail's dense tap-selection constants would not fit).
    act = y.reshape((B,) + dims + (chans[1],))
    for i in range(1, n_layers):
        pat_i, dims = im2col_stride2(act)
        Mb_i, k_i = pat_i.shape[1], pat_i.shape[2]
        Mi = B * Mb_i
        p2 = pat_i.reshape(Mi, k_i)
        if Mi <= MAX_TM:
            tm_i, mp_i = Mi, Mi
        else:
            tm_i = MAX_TM
            mp_i = _round_up(Mi, tm_i)
            p2 = jnp.pad(p2, ((0, mp_i - Mi), (0, 0)))
        o = conv_block(p2, params["conv"][i]["w_mat"], params["conv"][i]["shift"], tm=tm_i)
        if mp_i > Mi:
            o = o[:Mi]
        act = o.reshape((B,) + dims + (chans[i + 1],))
    pooled = jnp.mean(act.reshape(B, -1, chans[-1]).astype(jnp.float32), axis=1)
    return pooled @ params["fc_w"][:, :1] + params["fc_b"][:, :1]


# ---------------------------------- main ------------------------------------

if __name__ == "__main__":
    key = jax.random.PRNGKey(0)
    k_params, k_x, k_prog = jax.random.split(key, 3)

    HIDDEN = 32
    IN_CHANNELS = 1
    # NOTE: the reference forward's `.repeat(B, ...)` only concatenates cleanly
    # for B == 1, so batch size 1 matches the exact PyTorch semantics.
    B, C, T, TS, H, W = 1, 1, 8, 16, 4, 1

    raw_params = init_params(k_params, hidden=HIDDEN, in_channels=IN_CHANNELS)
    params = prepare_params(raw_params, hidden=HIDDEN)

    x = jax.random.normal(k_x, (B, C, T, TS, H, W), jnp.float32)
    program_ids = jax.random.randint(k_prog, (B,), 0, 128).astype(jnp.int32)

    fwd = jax.jit(functools.partial(rhythm_discriminator_forward,
                                    hidden=HIDDEN, in_channels=IN_CHANNELS))
    out = fwd(params, x, program_ids)
    out = jax.block_until_ready(out)
    assert out.shape == (B, 1), out.shape
    print("KERNEL_OK")
</pallas_src>

<mosaic_0001>
module attributes {stable_mosaic.version = 11 : i64} {
  func.func @_conv_block_kernel(%arg0: i32, %arg1: memref<128x54xbf16, #tpu.memory_space<vmem>>, %arg2: memref<54x16xbf16, #tpu.memory_space<vmem>>, %arg3: memref<1x16xf32, #tpu.memory_space<vmem>>, %arg4: memref<128x16xbf16, #tpu.memory_space<vmem>>) attributes {dimension_semantics = [#tpu.dimension_semantics<parallel>], iteration_bounds = array<i64: 1>, scalar_prefetch = 0 : i64, scratch_operands = 0 : i64, tpu.core_type = #tpu.core_type<tc>, window_params = [{transform_indices = @transform_0, window_bounds = array<i64: 128, 54>}, {pipeline_mode = #tpu.pipeline_mode<synchronous>, transform_indices = @transform_1, window_bounds = array<i64: 54, 16>}, {pipeline_mode = #tpu.pipeline_mode<synchronous>, transform_indices = @transform_2, window_bounds = array<i64: 1, 16>}, {transform_indices = @transform_3, window_bounds = array<i64: 128, 16>}]} {
    %c0 = arith.constant 0 : index
    %c0_0 = arith.constant 0 : index
    %0 = vector.load %arg1[%c0, %c0_0] : memref<128x54xbf16, #tpu.memory_space<vmem>>, vector<128x54xbf16>
    %c0_1 = arith.constant 0 : index
    %c0_2 = arith.constant 0 : index
    %1 = vector.load %arg2[%c0_1, %c0_2] : memref<54x16xbf16, #tpu.memory_space<vmem>>, vector<54x16xbf16>
    %cst = arith.constant dense<0.000000e+00> : vector<128x16xf32>
    %2 = tpu.matmul %0, %1, %cst {dimension_numbers = #tpu.dot_dimension_numbers<[1], [0], [0], [1], [0, 0, 1, 1], [], []>} : vector<128x54xbf16>, vector<54x16xbf16>, vector<128x16xf32> -> vector<128x16xf32>
    %c0_3 = arith.constant 0 : index
    %c0_4 = arith.constant 0 : index
    %3 = vector.load %arg3[%c0_3, %c0_4] : memref<1x16xf32, #tpu.memory_space<vmem>>, vector<1x16xf32>
    %4 = vector.broadcast %3 : vector<1x16xf32> to vector<128x16xf32>
    %5 = arith.addf %2, %4 : vector<128x16xf32>
    %cst_5 = arith.constant 0.000000e+00 : f32
    %6 = vector.broadcast %cst_5 : f32 to vector<128x16xf32>
    %7 = arith.cmpf ogt, %5, %6 : vector<128x16xf32>
    %cst_6 = arith.constant 2.000000e-01 : f32
    %8 = vector.broadcast %cst_6 : f32 to vector<128x16xf32>
    %9 = arith.mulf %8, %5 : vector<128x16xf32>
    %10 = arith.select %7, %5, %9 : vector<128x16xi1>, vector<128x16xf32>
    %11 = arith.truncf %10 : vector<128x16xf32> to vector<128x16xbf16>
    %c0_7 = arith.constant 0 : index
    %c0_8 = arith.constant 0 : index
    %12 = vector.load %arg4[%c0_7, %c0_8] : memref<128x16xbf16, #tpu.memory_space<vmem>>, vector<128x16xbf16>
    tpu.vector_store %arg4[%c0_7, %c0_8], %11 {strides = array<i32>} : memref<128x16xbf16, #tpu.memory_space<vmem>>, vector<128x16xbf16>,
    return
  }
  func.func @transform_0(%arg0: i32) -> (i32, i32) {
    %c0_i32 = arith.constant 0 : i32
    %c0_i32_0 = arith.constant 0 : i32
    return %arg0, %c0_i32 : i32, i32
  }
  func.func @transform_1(%arg0: i32) -> (i32, i32) {
    %c0_i32 = arith.constant 0 : i32
    %c0_i32_0 = arith.constant 0 : i32
    %c0_i32_1 = arith.constant 0 : i32
    return %c0_i32, %c0_i32_0 : i32, i32
  }
  func.func @transform_2(%arg0: i32) -> (i32, i32) {
    %c0_i32 = arith.constant 0 : i32
    %c0_i32_0 = arith.constant 0 : i32
    %c0_i32_1 = arith.constant 0 : i32
    return %c0_i32, %c0_i32_0 : i32, i32
  }
  func.func @transform_3(%arg0: i32) -> (i32, i32) {
    %c0_i32 = arith.constant 0 : i32
    %c0_i32_0 = arith.constant 0 : i32
    return %arg0, %c0_i32 : i32, i32
  }
}

module attributes {stable_mosaic.version = 11 : i64} {
  func.func @_tail_kernel(%arg0: i32, %arg1: memref<1x128x16xbf16, #tpu.memory_space<vmem>>, %arg2: memref<9x32x128xbf16, #tpu.memory_space<vmem>>, %arg3: memref<27x16x32xbf16, #tpu.memory_space<vmem>>, %arg4: memref<1x32xf32, #tpu.memory_space<vmem>>, %arg5: memref<6x8x32xbf16, #tpu.memory_space<vmem>>, %arg6: memref<27x32x64xbf16, #tpu.memory_space<vmem>>, %arg7: memref<1x64xf32, #tpu.memory_space<vmem>>, %arg8: memref<3x4x8xbf16, #tpu.memory_space<vmem>>, %arg9: memref<27x64x128xbf16, #tpu.memory_space<vmem>>, %arg10: memref<1x128xf32, #tpu.memory_space<vmem>>, %arg11: memref<128x128xf32, #tpu.memory_space<vmem>>, %arg12: memref<1x128xf32, #tpu.memory_space<vmem>>, %arg13: memref<1x1x128xf32, #tpu.memory_space<vmem>>) attributes {dimension_semantics = [#tpu.dimension_semantics<parallel>], iteration_bounds = array<i64: 1>, scalar_prefetch = 0 : i64, scratch_operands = 0 : i64, tpu.core_type = #tpu.core_type<tc>, window_params = [{transform_indices = @transform_0, window_bounds = array<i64: 1, 128, 16>}, {pipeline_mode = #tpu.pipeline_mode<synchronous>, transform_indices = @transform_1, window_bounds = array<i64: 9, 32, 128>}, {pipeline_mode = #tpu.pipeline_mode<synchronous>, transform_indices = @transform_2, window_bounds = array<i64: 27, 16, 32>}, {pipeline_mode = #tpu.pipeline_mode<synchronous>, transform_indices = @transform_3, window_bounds = array<i64: 1, 32>}, {pipeline_mode = #tpu.pipeline_mode<synchronous>, transform_indices = @transform_4, window_bounds = array<i64: 6, 8, 32>}, {pipeline_mode = #tpu.pipeline_mode<synchronous>, transform_indices = @transform_5, window_bounds = array<i64: 27, 32, 64>}, {pipeline_mode = #tpu.pipeline_mode<synchronous>, transform_indices = @transform_6, window_bounds = array<i64: 1, 64>}, {pipeline_mode = #tpu.pipeline_mode<synchronous>, transform_indices = @transform_7, window_bounds = array<i64: 3, 4, 8>}, {pipeline_mode = #tpu.pipeline_mode<synchronous>, transform_indices = @transform_8, window_bounds = array<i64: 27, 64, 128>}, {pipeline_mode = #tpu.pipeline_mode<synchronous>, transform_indices = @transform_9, window_bounds = array<i64: 1, 128>}, {pipeline_mode = #tpu.pipeline_mode<synchronous>, transform_indices = @transform_10, window_bounds = array<i64: 128, 128>}, {pipeline_mode = #tpu.pipeline_mode<synchronous>, transform_indices = @transform_11, window_bounds = array<i64: 1, 128>}, {transform_indices = @transform_12, window_bounds = array<i64: 1, 1, 128>}]} {
    %c0 = arith.constant 0 : index
    %c0_0 = arith.constant 0 : index
    %c0_1 = arith.constant 0 : index
    %0 = vector.load %arg1[%c0, %c0_0, %c0_1] : memref<1x128x16xbf16, #tpu.memory_space<vmem>>, vector<1x128x16xbf16>
    %1 = vector.shape_cast %0 : vector<1x128x16xbf16> to vector<128x16xbf16>
    %cst = arith.constant 0.000000e+00 : f32
    %2 = vector.broadcast %cst : f32 to vector<32x32xf32>
    %c0_2 = arith.constant 0 : index
    %c0_3 = arith.constant 0 : index
    %c0_4 = arith.constant 0 : index
    %3 = vector.load %arg2[%c0_2, %c0_3, %c0_4] : memref<9x32x128xbf16, #tpu.memory_space<vmem>>, vector<1x32x128xbf16>
    %4 = vector.shape_cast %3 : vector<1x32x128xbf16> to vector<32x128xbf16>
    %cst_5 = arith.constant dense<0.000000e+00> : vector<32x16xf32>
    %5 = tpu.matmul %4, %1, %cst_5 {dimension_numbers = #tpu.dot_dimension_numbers<[1], [0], [0], [1], [0, 0, 1, 1], [], []>} : vector<32x128xbf16>, vector<128x16xbf16>, vector<32x16xf32> -> vector<32x16xf32>
    %6 = arith.truncf %5 : vector<32x16xf32> to vector<32x16xbf16>
    %c1 = arith.constant 1 : index
    %c0_6 = arith.constant 0 : index
    %c0_7 = arith.constant 0 : index
    %7 = vector.load %arg3[%c1, %c0_6, %c0_7] : memref<27x16x32xbf16, #tpu.memory_space<vmem>>, vector<1x16x32xbf16>
    %8 = vector.shape_cast %7 : vector<1x16x32xbf16> to vector<16x32xbf16>
    %cst_8 = arith.constant dense<0.000000e+00> : vector<32x32xf32>
    %9 = tpu.matmul %6, %8, %cst_8 {dimension_numbers = #tpu.dot_dimension_numbers<[1], [0], [0], [1], [0, 0, 1, 1], [], []>} : vector<32x16xbf16>, vector<16x32xbf16>, vector<32x32xf32> -> vector<32x32xf32>
    %10 = arith.addf %2, %9 : vector<32x32xf32>
    %c1_9 = arith.constant 1 : index
    %c0_10 = arith.constant 0 : index
    %c0_11 = arith.constant 0 : index
    %11 = vector.load %arg2[%c1_9, %c0_10, %c0_11] : memref<9x32x128xbf16, #tpu.memory_space<vmem>>, vector<1x32x128xbf16>
    %12 = vector.shape_cast %11 : vector<1x32x128xbf16> to vector<32x128xbf16>
    %cst_12 = arith.constant dense<0.000000e+00> : vector<32x16xf32>
    %13 = tpu.matmul %12, %1, %cst_12 {dimension_numbers = #tpu.dot_dimension_numbers<[1], [0], [0], [1], [0, 0, 1, 1], [], []>} : vector<32x128xbf16>, vector<128x16xbf16>, vector<32x16xf32> -> vector<32x16xf32>
    %14 = arith.truncf %13 : vector<32x16xf32> to vector<32x16xbf16>
    %c4 = arith.constant 4 : index
    %c0_13 = arith.constant 0 : index
    %c0_14 = arith.constant 0 : index
    %15 = vector.load %arg3[%c4, %c0_13, %c0_14] : memref<27x16x32xbf16, #tpu.memory_space<vmem>>, vector<1x16x32xbf16>
    %16 = vector.shape_cast %15 : vector<1x16x32xbf16> to vector<16x32xbf16>
    %cst_15 = arith.constant dense<0.000000e+00> : vector<32x32xf32>
    %17 = tpu.matmul %14, %16, %cst_15 {dimension_numbers = #tpu.dot_dimension_numbers<[1], [0], [0], [1], [0, 0, 1, 1], [], []>} : vector<32x16xbf16>, vector<16x32xbf16>, vector<32x32xf32> -> vector<32x32xf32>
    %18 = arith.addf %10, %17 : vector<32x32xf32>
    %c2 = arith.constant 2 : index
    %c0_16 = arith.constant 0 : index
    %c0_17 = arith.constant 0 : index
    %19 = vector.load %arg2[%c2, %c0_16, %c0_17] : memref<9x32x128xbf16, #tpu.memory_space<vmem>>, vector<1x32x128xbf16>
    %20 = vector.shape_cast %19 : vector<1x32x128xbf16> to vector<32x128xbf16>
    %cst_18 = arith.constant dense<0.000000e+00> : vector<32x16xf32>
    %21 = tpu.matmul %20, %1, %cst_18 {dimension_numbers = #tpu.dot_dimension_numbers<[1], [0], [0], [1], [0, 0, 1, 1], [], []>} : vector<32x128xbf16>, vector<128x16xbf16>, vector<32x16xf32> -> vector<32x16xf32>
    %22 = arith.truncf %21 : vector<32x16xf32> to vector<32x16xbf16>
    %c7 = arith.constant 7 : index
    %c0_19 = arith.constant 0 : index
    %c0_20 = arith.constant 0 : index
    %23 = vector.load %arg3[%c7, %c0_19, %c0_20] : memref<27x16x32xbf16, #tpu.memory_space<vmem>>, vector<1x16x32xbf16>
    %24 = vector.shape_cast %23 : vector<1x16x32xbf16> to vector<16x32xbf16>
    %cst_21 = arith.constant dense<0.000000e+00> : vector<32x32xf32>
    %25 = tpu.matmul %22, %24, %cst_21 {dimension_numbers = #tpu.dot_dimension_numbers<[1], [0], [0], [1], [0, 0, 1, 1], [], []>} : vector<32x16xbf16>, vector<16x32xbf16>, vector<32x32xf32> -> vector<32x32xf32>
    %26 = arith.addf %18, %25 : vector<32x32xf32>
    %c3 = arith.constant 3 : index
    %c0_22 = arith.constant 0 : index
    %c0_23 = arith.constant 0 : index
    %27 = vector.load %arg2[%c3, %c0_22, %c0_23] : memref<9x32x128xbf16, #tpu.memory_space<vmem>>, vector<1x32x128xbf16>
    %28 = vector.shape_cast %27 : vector<1x32x128xbf16> to vector<32x128xbf16>
    %cst_24 = arith.constant dense<0.000000e+00> : vector<32x16xf32>
    %29 = tpu.matmul %28, %1, %cst_24 {dimension_numbers = #tpu.dot_dimension_numbers<[1], [0], [0], [1], [0, 0, 1, 1], [], []>} : vector<32x128xbf16>, vector<128x16xbf16>, vector<32x16xf32> -> vector<32x16xf32>
    %30 = arith.truncf %29 : vector<32x16xf32> to vector<32x16xbf16>
    %c10 = arith.constant 10 : index
    %c0_25 = arith.constant 0 : index
    %c0_26 = arith.constant 0 : index
    %31 = vector.load %arg3[%c10, %c0_25, %c0_26] : memref<27x16x32xbf16, #tpu.memory_space<vmem>>, vector<1x16x32xbf16>
    %32 = vector.shape_cast %31 : vector<1x16x32xbf16> to vector<16x32xbf16>
    %cst_27 = arith.constant dense<0.000000e+00> : vector<32x32xf32>
    %33 = tpu.matmul %30, %32, %cst_27 {dimension_numbers = #tpu.dot_dimension_numbers<[1], [0], [0], [1], [0, 0, 1, 1], [], []>} : vector<32x16xbf16>, vector<16x32xbf16>, vector<32x32xf32> -> vector<32x32xf32>
    %34 = arith.addf %26, %33 : vector<32x32xf32>
    %c4_28 = arith.constant 4 : index
    %c0_29 = arith.constant 0 : index
    %c0_30 = arith.constant 0 : index
    %35 = vector.load %arg2[%c4_28, %c0_29, %c0_30] : memref<9x32x128xbf16, #tpu.memory_space<vmem>>, vector<1x32x128xbf16>
    %36 = vector.shape_cast %35 : vector<1x32x128xbf16> to vector<32x128xbf16>
    %cst_31 = arith.constant dense<0.000000e+00> : vector<32x16xf32>
    %37 = tpu.matmul %36, %1, %cst_31 {dimension_numbers = #tpu.dot_dimension_numbers<[1], [0], [0], [1], [0, 0, 1, 1], [], []>} : vector<32x128xbf16>, vector<128x16xbf16>, vector<32x16xf32> -> vector<32x16xf32>
    %38 = arith.truncf %37 : vector<32x16xf32> to vector<32x16xbf16>
    %c13 = arith.constant 13 : index
    %c0_32 = arith.constant 0 : index
    %c0_33 = arith.constant 0 : index
    %39 = vector.load %arg3[%c13, %c0_32, %c0_33] : memref<27x16x32xbf16, #tpu.memory_space<vmem>>, vector<1x16x32xbf16>
    %40 = vector.shape_cast %39 : vector<1x16x32xbf16> to vector<16x32xbf16>
    %cst_34 = arith.constant dense<0.000000e+00> : vector<32x32xf32>
    %41 = tpu.matmul %38, %40, %cst_34 {dimension_numbers = #tpu.dot_dimension_numbers<[1], [0], [0], [1], [0, 0, 1, 1], [], []>} : vector<32x16xbf16>, vector<16x32xbf16>, vector<32x32xf32> -> vector<32x32xf32>
    %42 = arith.addf %34, %41 : vector<32x32xf32>
    %c5 = arith.constant 5 : index
    %c0_35 = arith.constant 0 : index
    %c0_36 = arith.constant 0 : index
    %43 = vector.load %arg2[%c5, %c0_35, %c0_36] : memref<9x32x128xbf16, #tpu.memory_space<vmem>>, vector<1x32x128xbf16>
    %44 = vector.shape_cast %43 : vector<1x32x128xbf16> to vector<32x128xbf16>
    %cst_37 = arith.constant dense<0.000000e+00> : vector<32x16xf32>
    %45 = tpu.matmul %44, %1, %cst_37 {dimension_numbers = #tpu.dot_dimension_numbers<[1], [0], [0], [1], [0, 0, 1, 1], [], []>} : vector<32x128xbf16>, vector<128x16xbf16>, vector<32x16xf32> -> vector<32x16xf32>
    %46 = arith.truncf %45 : vector<32x16xf32> to vector<32x16xbf16>
    %c16 = arith.constant 16 : index
    %c0_38 = arith.constant 0 : index
    %c0_39 = arith.constant 0 : index
    %47 = vector.load %arg3[%c16, %c0_38, %c0_39] : memref<27x16x32xbf16, #tpu.memory_space<vmem>>, vector<1x16x32xbf16>
    %48 = vector.shape_cast %47 : vector<1x16x32xbf16> to vector<16x32xbf16>
    %cst_40 = arith.constant dense<0.000000e+00> : vector<32x32xf32>
    %49 = tpu.matmul %46, %48, %cst_40 {dimension_numbers = #tpu.dot_dimension_numbers<[1], [0], [0], [1], [0, 0, 1, 1], [], []>} : vector<32x16xbf16>, vector<16x32xbf16>, vector<32x32xf32> -> vector<32x32xf32>
    %50 = arith.addf %42, %49 : vector<32x32xf32>
    %c6 = arith.constant 6 : index
    %c0_41 = arith.constant 0 : index
    %c0_42 = arith.constant 0 : index
    %51 = vector.load %arg2[%c6, %c0_41, %c0_42] : memref<9x32x128xbf16, #tpu.memory_space<vmem>>, vector<1x32x128xbf16>
    %52 = vector.shape_cast %51 : vector<1x32x128xbf16> to vector<32x128xbf16>
    %cst_43 = arith.constant dense<0.000000e+00> : vector<32x16xf32>
    %53 = tpu.matmul %52, %1, %cst_43 {dimension_numbers = #tpu.dot_dimension_numbers<[1], [0], [0], [1], [0, 0, 1, 1], [], []>} : vector<32x128xbf16>, vector<128x16xbf16>, vector<32x16xf32> -> vector<32x16xf32>
    %54 = arith.truncf %53 : vector<32x16xf32> to vector<32x16xbf16>
    %c19 = arith.constant 19 : index
    %c0_44 = arith.constant 0 : index
    %c0_45 = arith.constant 0 : index
    %55 = vector.load %arg3[%c19, %c0_44, %c0_45] : memref<27x16x32xbf16, #tpu.memory_space<vmem>>, vector<1x16x32xbf16>
    %56 = vector.shape_cast %55 : vector<1x16x32xbf16> to vector<16x32xbf16>
    %cst_46 = arith.constant dense<0.000000e+00> : vector<32x32xf32>
    %57 = tpu.matmul %54, %56, %cst_46 {dimension_numbers = #tpu.dot_dimension_numbers<[1], [0], [0], [1], [0, 0, 1, 1], [], []>} : vector<32x16xbf16>, vector<16x32xbf16>, vector<32x32xf32> -> vector<32x32xf32>
    %58 = arith.addf %50, %57 : vector<32x32xf32>
    %c7_47 = arith.constant 7 : index
    %c0_48 = arith.constant 0 : index
    %c0_49 = arith.constant 0 : index
    %59 = vector.load %arg2[%c7_47, %c0_48, %c0_49] : memref<9x32x128xbf16, #tpu.memory_space<vmem>>, vector<1x32x128xbf16>
    %60 = vector.shape_cast %59 : vector<1x32x128xbf16> to vector<32x128xbf16>
    %cst_50 = arith.constant dense<0.000000e+00> : vector<32x16xf32>
    %61 = tpu.matmul %60, %1, %cst_50 {dimension_numbers = #tpu.dot_dimension_numbers<[1], [0], [0], [1], [0, 0, 1, 1], [], []>} : vector<32x128xbf16>, vector<128x16xbf16>, vector<32x16xf32> -> vector<32x16xf32>
    %62 = arith.truncf %61 : vector<32x16xf32> to vector<32x16xbf16>
    %c22 = arith.constant 22 : index
    %c0_51 = arith.constant 0 : index
    %c0_52 = arith.constant 0 : index
    %63 = vector.load %arg3[%c22, %c0_51, %c0_52] : memref<27x16x32xbf16, #tpu.memory_space<vmem>>, vector<1x16x32xbf16>
    %64 = vector.shape_cast %63 : vector<1x16x32xbf16> to vector<16x32xbf16>
    %cst_53 = arith.constant dense<0.000000e+00> : vector<32x32xf32>
    %65 = tpu.matmul %62, %64, %cst_53 {dimension_numbers = #tpu.dot_dimension_numbers<[1], [0], [0], [1], [0, 0, 1, 1], [], []>} : vector<32x16xbf16>, vector<16x32xbf16>, vector<32x32xf32> -> vector<32x32xf32>
    %66 = arith.addf %58, %65 : vector<32x32xf32>
    %c8 = arith.constant 8 : index
    %c0_54 = arith.constant 0 : index
    %c0_55 = arith.constant 0 : index
    %67 = vector.load %arg2[%c8, %c0_54, %c0_55] : memref<9x32x128xbf16, #tpu.memory_space<vmem>>, vector<1x32x128xbf16>
    %68 = vector.shape_cast %67 : vector<1x32x128xbf16> to vector<32x128xbf16>
    %cst_56 = arith.constant dense<0.000000e+00> : vector<32x16xf32>
    %69 = tpu.matmul %68, %1, %cst_56 {dimension_numbers = #tpu.dot_dimension_numbers<[1], [0], [0], [1], [0, 0, 1, 1], [], []>} : vector<32x128xbf16>, vector<128x16xbf16>, vector<32x16xf32> -> vector<32x16xf32>
    %70 = arith.truncf %69 : vector<32x16xf32> to vector<32x16xbf16>
    %c25 = arith.constant 25 : index
    %c0_57 = arith.constant 0 : index
    %c0_58 = arith.constant 0 : index
    %71 = vector.load %arg3[%c25, %c0_57, %c0_58] : memref<27x16x32xbf16, #tpu.memory_space<vmem>>, vector<1x16x32xbf16>
    %72 = vector.shape_cast %71 : vector<1x16x32xbf16> to vector<16x32xbf16>
    %cst_59 = arith.constant dense<0.000000e+00> : vector<32x32xf32>
    %73 = tpu.matmul %70, %72, %cst_59 {dimension_numbers = #tpu.dot_dimension_numbers<[1], [0], [0], [1], [0, 0, 1, 1], [], []>} : vector<32x16xbf16>, vector<16x32xbf16>, vector<32x32xf32> -> vector<32x32xf32>
    %74 = arith.addf %66, %73 : vector<32x32xf32>
    %c0_60 = arith.constant 0 : index
    %c0_61 = arith.constant 0 : index
    %75 = vector.load %arg4[%c0_60, %c0_61] : memref<1x32xf32, #tpu.memory_space<vmem>>, vector<1x32xf32>
    %76 = vector.broadcast %75 : vector<1x32xf32> to vector<32x32xf32>
    %77 = arith.addf %74, %76 : vector<32x32xf32>
    %cst_62 = arith.constant 0.000000e+00 : f32
    %78 = vector.broadcast %cst_62 : f32 to vector<32x32xf32>
    %79 = arith.cmpf ogt, %77, %78 : vector<32x32xf32>
    %cst_63 = arith.constant 2.000000e-01 : f32
    %80 = vector.broadcast %cst_63 : f32 to vector<32x32xf32>
    %81 = arith.mulf %80, %77 : vector<32x32xf32>
    %82 = arith.select %79, %77, %81 : vector<32x32xi1>, vector<32x32xf32>
    %83 = arith.truncf %82 : vector<32x32xf32> to vector<32x32xbf16>
    %cst_64 = arith.constant 0.000000e+00 : f32
    %84 = vector.broadcast %cst_64 : f32 to vector<8x64xf32>
    %c0_65 = arith.constant 0 : index
    %c0_66 = arith.constant 0 : index
    %c0_67 = arith.constant 0 : index
    %85 = vector.load %arg5[%c0_65, %c0_66, %c0_67] : memref<6x8x32xbf16, #tpu.memory_space<vmem>>, vector<1x8x32xbf16>
    %86 = vector.shape_cast %85 : vector<1x8x32xbf16> to vector<8x32xbf16>
    %cst_68 = arith.constant dense<0.000000e+00> : vector<8x32xf32>
    %87 = tpu.matmul %86, %83, %cst_68 {dimension_numbers = #tpu.dot_dimension_numbers<[1], [0], [0], [1], [0, 0, 1, 1], [], []>} : vector<8x32xbf16>, vector<32x32xbf16>, vector<8x32xf32> -> vector<8x32xf32>
    %88 = arith.truncf %87 : vector<8x32xf32> to vector<8x32xbf16>
    %c10_69 = arith.constant 10 : index
    %c0_70 = arith.constant 0 : index
    %c0_71 = arith.constant 0 : index
    %89 = vector.load %arg6[%c10_69, %c0_70, %c0_71] : memref<27x32x64xbf16, #tpu.memory_space<vmem>>, vector<1x32x64xbf16>
    %90 = vector.shape_cast %89 : vector<1x32x64xbf16> to vector<32x64xbf16>
    %cst_72 = arith.constant dense<0.000000e+00> : vector<8x64xf32>
    %91 = tpu.matmul %88, %90, %cst_72 {dimension_numbers = #tpu.dot_dimension_numbers<[1], [0], [0], [1], [0, 0, 1, 1], [], []>} : vector<8x32xbf16>, vector<32x64xbf16>, vector<8x64xf32> -> vector<8x64xf32>
    %92 = arith.addf %84, %91 : vector<8x64xf32>
    %c1_73 = arith.constant 1 : index
    %c0_74 = arith.constant 0 : index
    %c0_75 = arith.constant 0 : index
    %93 = vector.load %arg5[%c1_73, %c0_74, %c0_75] : memref<6x8x32xbf16, #tpu.memory_space<vmem>>, vector<1x8x32xbf16>
    %94 = vector.shape_cast %93 : vector<1x8x32xbf16> to vector<8x32xbf16>
    %cst_76 = arith.constant dense<0.000000e+00> : vector<8x32xf32>
    %95 = tpu.matmul %94, %83, %cst_76 {dimension_numbers = #tpu.dot_dimension_numbers<[1], [0], [0], [1], [0, 0, 1, 1], [], []>} : vector<8x32xbf16>, vector<32x32xbf16>, vector<8x32xf32> -> vector<8x32xf32>
    %96 = arith.truncf %95 : vector<8x32xf32> to vector<8x32xbf16>
    %c13_77 = arith.constant 13 : index
    %c0_78 = arith.constant 0 : index
    %c0_79 = arith.constant 0 : index
    %97 = vector.load %arg6[%c13_77, %c0_78, %c0_79] : memref<27x32x64xbf16, #tpu.memory_space<vmem>>, vector<1x32x64xbf16>
    %98 = vector.shape_cast %97 : vector<1x32x64xbf16> to vector<32x64xbf16>
    %cst_80 = arith.constant dense<0.000000e+00> : vector<8x64xf32>
    %99 = tpu.matmul %96, %98, %cst_80 {dimension_numbers = #tpu.dot_dimension_numbers<[1], [0], [0], [1], [0, 0, 1, 1], [], []>} : vector<8x32xbf16>, vector<32x64xbf16>, vector<8x64xf32> -> vector<8x64xf32>
    %100 = arith.addf %92, %99 : vector<8x64xf32>
    %c2_81 = arith.constant 2 : index
    %c0_82 = arith.constant 0 : index
    %c0_83 = arith.constant 0 : index
    %101 = vector.load %arg5[%c2_81, %c0_82, %c0_83] : memref<6x8x32xbf16, #tpu.memory_space<vmem>>, vector<1x8x32xbf16>
    %102 = vector.shape_cast %101 : vector<1x8x32xbf16> to vector<8x32xbf16>
    %cst_84 = arith.constant dense<0.000000e+00> : vector<8x32xf32>
    %103 = tpu.matmul %102, %83, %cst_84 {dimension_numbers = #tpu.dot_dimension_numbers<[1], [0], [0], [1], [0, 0, 1, 1], [], []>} : vector<8x32xbf16>, vector<32x32xbf16>, vector<8x32xf32> -> vector<8x32xf32>
    %104 = arith.truncf %103 : vector<8x32xf32> to vector<8x32xbf16>
    %c16_85 = arith.constant 16 : index
    %c0_86 = arith.constant 0 : index
    %c0_87 = arith.constant 0 : index
    %105 = vector.load %arg6[%c16_85, %c0_86, %c0_87] : memref<27x32x64xbf16, #tpu.memory_space<vmem>>, vector<1x32x64xbf16>
    %106 = vector.shape_cast %105 : vector<1x32x64xbf16> to vector<32x64xbf16>
    %cst_88 = arith.constant dense<0.000000e+00> : vector<8x64xf32>
    %107 = tpu.matmul %104, %106, %cst_88 {dimension_numbers = #tpu.dot_dimension_numbers<[1], [0], [0], [1], [0, 0, 1, 1], [], []>} : vector<8x32xbf16>, vector<32x64xbf16>, vector<8x64xf32> -> vector<8x64xf32>
    %108 = arith.addf %100, %107 : vector<8x64xf32>
    %c3_89 = arith.constant 3 : index
    %c0_90 = arith.constant 0 : index
    %c0_91 = arith.constant 0 : index
    %109 = vector.load %arg5[%c3_89, %c0_90, %c0_91] : memref<6x8x32xbf16, #tpu.memory_space<vmem>>, vector<1x8x32xbf16>
    %110 = vector.shape_cast %109 : vector<1x8x32xbf16> to vector<8x32xbf16>
    %cst_92 = arith.constant dense<0.000000e+00> : vector<8x32xf32>
    %111 = tpu.matmul %110, %83, %cst_92 {dimension_numbers = #tpu.dot_dimension_numbers<[1], [0], [0], [1], [0, 0, 1, 1], [], []>} : vector<8x32xbf16>, vector<32x32xbf16>, vector<8x32xf32> -> vector<8x32xf32>
    %112 = arith.truncf %111 : vector<8x32xf32> to vector<8x32xbf16>
    %c19_93 = arith.constant 19 : index
    %c0_94 = arith.constant 0 : index
    %c0_95 = arith.constant 0 : index
    %113 = vector.load %arg6[%c19_93, %c0_94, %c0_95] : memref<27x32x64xbf16, #tpu.memory_space<vmem>>, vector<1x32x64xbf16>
    %114 = vector.shape_cast %113 : vector<1x32x64xbf16> to vector<32x64xbf16>
    %cst_96 = arith.constant dense<0.000000e+00> : vector<8x64xf32>
    %115 = tpu.matmul %112, %114, %cst_96 {dimension_numbers = #tpu.dot_dimension_numbers<[1], [0], [0], [1], [0, 0, 1, 1], [], []>} : vector<8x32xbf16>, vector<32x64xbf16>, vector<8x64xf32> -> vector<8x64xf32>
    %116 = arith.addf %108, %115 : vector<8x64xf32>
    %c4_97 = arith.constant 4 : index
    %c0_98 = arith.constant 0 : index
    %c0_99 = arith.constant 0 : index
    %117 = vector.load %arg5[%c4_97, %c0_98, %c0_99] : memref<6x8x32xbf16, #tpu.memory_space<vmem>>, vector<1x8x32xbf16>
    %118 = vector.shape_cast %117 : vector<1x8x32xbf16> to vector<8x32xbf16>
    %cst_100 = arith.constant dense<0.000000e+00> : vector<8x32xf32>
    %119 = tpu.matmul %118, %83, %cst_100 {dimension_numbers = #tpu.dot_dimension_numbers<[1], [0], [0], [1], [0, 0, 1, 1], [], []>} : vector<8x32xbf16>, vector<32x32xbf16>, vector<8x32xf32> -> vector<8x32xf32>
    %120 = arith.truncf %119 : vector<8x32xf32> to vector<8x32xbf16>
    %c22_101 = arith.constant 22 : index
    %c0_102 = arith.constant 0 : index
    %c0_103 = arith.constant 0 : index
    %121 = vector.load %arg6[%c22_101, %c0_102, %c0_103] : memref<27x32x64xbf16, #tpu.memory_space<vmem>>, vector<1x32x64xbf16>
    %122 = vector.shape_cast %121 : vector<1x32x64xbf16> to vector<32x64xbf16>
    %cst_104 = arith.constant dense<0.000000e+00> : vector<8x64xf32>
    %123 = tpu.matmul %120, %122, %cst_104 {dimension_numbers = #tpu.dot_dimension_numbers<[1], [0], [0], [1], [0, 0, 1, 1], [], []>} : vector<8x32xbf16>, vector<32x64xbf16>, vector<8x64xf32> -> vector<8x64xf32>
    %124 = arith.addf %116, %123 : vector<8x64xf32>
    %c5_105 = arith.constant 5 : index
    %c0_106 = arith.constant 0 : index
    %c0_107 = arith.constant 0 : index
    %125 = vector.load %arg5[%c5_105, %c0_106, %c0_107] : memref<6x8x32xbf16, #tpu.memory_space<vmem>>, vector<1x8x32xbf16>
    %126 = vector.shape_cast %125 : vector<1x8x32xbf16> to vector<8x32xbf16>
    %cst_108 = arith.constant dense<0.000000e+00> : vector<8x32xf32>
    %127 = tpu.matmul %126, %83, %cst_108 {dimension_numbers = #tpu.dot_dimension_numbers<[1], [0], [0], [1], [0, 0, 1, 1], [], []>} : vector<8x32xbf16>, vector<32x32xbf16>, vector<8x32xf32> -> vector<8x32xf32>
    %128 = arith.truncf %127 : vector<8x32xf32> to vector<8x32xbf16>
    %c25_109 = arith.constant 25 : index
    %c0_110 = arith.constant 0 : index
    %c0_111 = arith.constant 0 : index
    %129 = vector.load %arg6[%c25_109, %c0_110, %c0_111] : memref<27x32x64xbf16, #tpu.memory_space<vmem>>, vector<1x32x64xbf16>
    %130 = vector.shape_cast %129 : vector<1x32x64xbf16> to vector<32x64xbf16>
    %cst_112 = arith.constant dense<0.000000e+00> : vector<8x64xf32>
    %131 = tpu.matmul %128, %130, %cst_112 {dimension_numbers = #tpu.dot_dimension_numbers<[1], [0], [0], [1], [0, 0, 1, 1], [], []>} : vector<8x32xbf16>, vector<32x64xbf16>, vector<8x64xf32> -> vector<8x64xf32>
    %132 = arith.addf %124, %131 : vector<8x64xf32>
    %c0_113 = arith.constant 0 : index
    %c0_114 = arith.constant 0 : index
    %133 = vector.load %arg7[%c0_113, %c0_114] : memref<1x64xf32, #tpu.memory_space<vmem>>, vector<1x64xf32>
    %134 = vector.broadcast %133 : vector<1x64xf32> to vector<8x64xf32>
    %135 = arith.addf %132, %134 : vector<8x64xf32>
    %cst_115 = arith.constant 0.000000e+00 : f32
    %136 = vector.broadcast %cst_115 : f32 to vector<8x64xf32>
    %137 = arith.cmpf ogt, %135, %136 : vector<8x64xf32>
    %cst_116 = arith.constant 2.000000e-01 : f32
    %138 = vector.broadcast %cst_116 : f32 to vector<8x64xf32>
    %139 = arith.mulf %138, %135 : vector<8x64xf32>
    %140 = arith.select %137, %135, %139 : vector<8x64xi1>, vector<8x64xf32>
    %141 = arith.truncf %140 : vector<8x64xf32> to vector<8x64xbf16>
    %cst_117 = arith.constant 0.000000e+00 : f32
    %142 = vector.broadcast %cst_117 : f32 to vector<4x128xf32>
    %c0_118 = arith.constant 0 : index
    %c0_119 = arith.constant 0 : index
    %c0_120 = arith.constant 0 : index
    %143 = vector.load %arg8[%c0_118, %c0_119, %c0_120] : memref<3x4x8xbf16, #tpu.memory_space<vmem>>, vector<1x4x8xbf16>
    %144 = vector.shape_cast %143 : vector<1x4x8xbf16> to vector<4x8xbf16>
    %cst_121 = arith.constant dense<0.000000e+00> : vector<4x64xf32>
    %145 = tpu.matmul %144, %141, %cst_121 {dimension_numbers = #tpu.dot_dimension_numbers<[1], [0], [0], [1], [0, 0, 1, 1], [], []>} : vector<4x8xbf16>, vector<8x64xbf16>, vector<4x64xf32> -> vector<4x64xf32>
    %146 = arith.truncf %145 : vector<4x64xf32> to vector<4x64xbf16>
    %c10_122 = arith.constant 10 : index
    %c0_123 = arith.constant 0 : index
    %c0_124 = arith.constant 0 : index
    %147 = vector.load %arg9[%c10_122, %c0_123, %c0_124] : memref<27x64x128xbf16, #tpu.memory_space<vmem>>, vector<1x64x128xbf16>
    %148 = vector.shape_cast %147 : vector<1x64x128xbf16> to vector<64x128xbf16>
    %cst_125 = arith.constant dense<0.000000e+00> : vector<4x128xf32>
    %149 = tpu.matmul %146, %148, %cst_125 {dimension_numbers = #tpu.dot_dimension_numbers<[1], [0], [0], [1], [0, 0, 1, 1], [], []>} : vector<4x64xbf16>, vector<64x128xbf16>, vector<4x128xf32> -> vector<4x128xf32>
    %150 = arith.addf %142, %149 : vector<4x128xf32>
    %c1_126 = arith.constant 1 : index
    %c0_127 = arith.constant 0 : index
    %c0_128 = arith.constant 0 : index
    %151 = vector.load %arg8[%c1_126, %c0_127, %c0_128] : memref<3x4x8xbf16, #tpu.memory_space<vmem>>, vector<1x4x8xbf16>
    %152 = vector.shape_cast %151 : vector<1x4x8xbf16> to vector<4x8xbf16>
    %cst_129 = arith.constant dense<0.000000e+00> : vector<4x64xf32>
    %153 = tpu.matmul %152, %141, %cst_129 {dimension_numbers = #tpu.dot_dimension_numbers<[1], [0], [0], [1], [0, 0, 1, 1], [], []>} : vector<4x8xbf16>, vector<8x64xbf16>, vector<4x64xf32> -> vector<4x64xf32>
    %154 = arith.truncf %153 : vector<4x64xf32> to vector<4x64xbf16>
    %c13_130 = arith.constant 13 : index
    %c0_131 = arith.constant 0 : index
    %c0_132 = arith.constant 0 : index
    %155 = vector.load %arg9[%c13_130, %c0_131, %c0_132] : memref<27x64x128xbf16, #tpu.memory_space<vmem>>, vector<1x64x128xbf16>
    %156 = vector.shape_cast %155 : vector<1x64x128xbf16> to vector<64x128xbf16>
    %cst_133 = arith.constant dense<0.000000e+00> : vector<4x128xf32>
    %157 = tpu.matmul %154, %156, %cst_133 {dimension_numbers = #tpu.dot_dimension_numbers<[1], [0], [0], [1], [0, 0, 1, 1], [], []>} : vector<4x64xbf16>, vector<64x128xbf16>, vector<4x128xf32> -> vector<4x128xf32>
    %158 = arith.addf %150, %157 : vector<4x128xf32>
    %c2_134 = arith.constant 2 : index
    %c0_135 = arith.constant 0 : index
    %c0_136 = arith.constant 0 : index
    %159 = vector.load %arg8[%c2_134, %c0_135, %c0_136] : memref<3x4x8xbf16, #tpu.memory_space<vmem>>, vector<1x4x8xbf16>
    %160 = vector.shape_cast %159 : vector<1x4x8xbf16> to vector<4x8xbf16>
    %cst_137 = arith.constant dense<0.000000e+00> : vector<4x64xf32>
    %161 = tpu.matmul %160, %141, %cst_137 {dimension_numbers = #tpu.dot_dimension_numbers<[1], [0], [0], [1], [0, 0, 1, 1], [], []>} : vector<4x8xbf16>, vector<8x64xbf16>, vector<4x64xf32> -> vector<4x64xf32>
    %162 = arith.truncf %161 : vector<4x64xf32> to vector<4x64xbf16>
    %c16_138 = arith.constant 16 : index
    %c0_139 = arith.constant 0 : index
    %c0_140 = arith.constant 0 : index
    %163 = vector.load %arg9[%c16_138, %c0_139, %c0_140] : memref<27x64x128xbf16, #tpu.memory_space<vmem>>, vector<1x64x128xbf16>
    %164 = vector.shape_cast %163 : vector<1x64x128xbf16> to vector<64x128xbf16>
    %cst_141 = arith.constant dense<0.000000e+00> : vector<4x128xf32>
    %165 = tpu.matmul %162, %164, %cst_141 {dimension_numbers = #tpu.dot_dimension_numbers<[1], [0], [0], [1], [0, 0, 1, 1], [], []>} : vector<4x64xbf16>, vector<64x128xbf16>, vector<4x128xf32> -> vector<4x128xf32>
    %166 = arith.addf %158, %165 : vector<4x128xf32>
    %c0_142 = arith.constant 0 : index
    %c0_143 = arith.constant 0 : index
    %167 = vector.load %arg10[%c0_142, %c0_143] : memref<1x128xf32, #tpu.memory_space<vmem>>, vector<1x128xf32>
    %168 = vector.broadcast %167 : vector<1x128xf32> to vector<4x128xf32>
    %169 = arith.addf %166, %168 : vector<4x128xf32>
    %cst_144 = arith.constant 0.000000e+00 : f32
    %170 = vector.broadcast %cst_144 : f32 to vector<4x128xf32>
    %171 = arith.cmpf ogt, %169, %170 : vector<4x128xf32>
    %cst_145 = arith.constant 2.000000e-01 : f32
    %172 = vector.broadcast %cst_145 : f32 to vector<4x128xf32>
    %173 = arith.mulf %172, %169 : vector<4x128xf32>
    %174 = arith.select %171, %169, %173 : vector<4x128xi1>, vector<4x128xf32>
    %cst_146 = arith.constant dense<0.000000e+00> : vector<128xf32>
    %175 = vector.multi_reduction <add>, %174, %cst_146 [0] : vector<4x128xf32> to vector<128xf32>
    %176 = vector.shape_cast %175 : vector<128xf32> to vector<1x128xf32>
    %cst_147 = arith.constant 2.500000e-01 : f32
    %177 = vector.broadcast %cst_147 : f32 to vector<1x128xf32>
    %178 = arith.mulf %176, %177 : vector<1x128xf32>
    %c0_148 = arith.constant 0 : index
    %c0_149 = arith.constant 0 : index
    %179 = vector.load %arg11[%c0_148, %c0_149] : memref<128x128xf32, #tpu.memory_space<vmem>>, vector<128x128xf32>
    %cst_150 = arith.constant dense<0.000000e+00> : vector<1x128xf32>
    %180 = tpu.matmul %178, %179, %cst_150 {dimension_numbers = #tpu.dot_dimension_numbers<[1], [0], [0], [1], [0, 0, 1, 1], [], []>} : vector<1x128xf32>, vector<128x128xf32>, vector<1x128xf32> -> vector<1x128xf32>
    %c0_151 = arith.constant 0 : index
    %c0_152 = arith.constant 0 : index
    %181 = vector.load %arg12[%c0_151, %c0_152] : memref<1x128xf32, #tpu.memory_space<vmem>>, vector<1x128xf32>
    %182 = arith.addf %180, %181 : vector<1x128xf32>
    %c0_153 = arith.constant 0 : index
    %c0_154 = arith.constant 0 : index
    %c0_155 = arith.constant 0 : index
    %183 = vector.load %arg13[%c0_153, %c0_154, %c0_155] : memref<1x1x128xf32, #tpu.memory_space<vmem>>, vector<1x1x128xf32>
    %184 = vector.shape_cast %183 : vector<1x1x128xf32> to vector<1x128xf32>
    %185 = vector.shape_cast %182 : vector<1x128xf32> to vector<1x1x128xf32>
    tpu.vector_store %arg13[%c0_153, %c0_154, %c0_155], %185 {strides = array<i32>} : memref<1x1x128xf32, #tpu.memory_space<vmem>>, vector<1x1x128xf32>,
    return
  }
  func.func @transform_0(%arg0: i32) -> (i32, i32, i32) {
    %c0_i32 = arith.constant 0 : i32
    %c0_i32_0 = arith.constant 0 : i32
    %c0_i32_1 = arith.constant 0 : i32
    return %arg0, %c0_i32, %c0_i32_0 : i32, i32, i32
  }
  func.func @transform_1(%arg0: i32) -> (i32, i32, i32) {
    %c0_i32 = arith.constant 0 : i32
    %c0_i32_0 = arith.constant 0 : i32
    %c0_i32_1 = arith.constant 0 : i32
    %c0_i32_2 = arith.constant 0 : i32
    return %c0_i32, %c0_i32_0, %c0_i32_1 : i32, i32, i32
  }
  func.func @transform_2(%arg0: i32) -> (i32, i32, i32) {
    %c0_i32 = arith.constant 0 : i32
    %c0_i32_0 = arith.constant 0 : i32
    %c0_i32_1 = arith.constant 0 : i32
    %c0_i32_2 = arith.constant 0 : i32
    return %c0_i32, %c0_i32_0, %c0_i32_1 : i32, i32, i32
  }
  func.func @transform_3(%arg0: i32) -> (i32, i32) {
    %c0_i32 = arith.constant 0 : i32
    %c0_i32_0 = arith.constant 0 : i32
    %c0_i32_1 = arith.constant 0 : i32
    return %c0_i32, %c0_i32_0 : i32, i32
  }
  func.func @transform_4(%arg0: i32) -> (i32, i32, i32) {
    %c0_i32 = arith.constant 0 : i32
    %c0_i32_0 = arith.constant 0 : i32
    %c0_i32_1 = arith.constant 0 : i32
    %c0_i32_2 = arith.constant 0 : i32
    return %c0_i32, %c0_i32_0, %c0_i32_1 : i32, i32, i32
  }
  func.func @transform_5(%arg0: i32) -> (i32, i32, i32) {
    %c0_i32 = arith.constant 0 : i32
    %c0_i32_0 = arith.constant 0 : i32
    %c0_i32_1 = arith.constant 0 : i32
    %c0_i32_2 = arith.constant 0 : i32
    return %c0_i32, %c0_i32_0, %c0_i32_1 : i32, i32, i32
  }
  func.func @transform_6(%arg0: i32) -> (i32, i32) {
    %c0_i32 = arith.constant 0 : i32
    %c0_i32_0 = arith.constant 0 : i32
    %c0_i32_1 = arith.constant 0 : i32
    return %c0_i32, %c0_i32_0 : i32, i32
  }
  func.func @transform_7(%arg0: i32) -> (i32, i32, i32) {
    %c0_i32 = arith.constant 0 : i32
    %c0_i32_0 = arith.constant 0 : i32
    %c0_i32_1 = arith.constant 0 : i32
    %c0_i32_2 = arith.constant 0 : i32
    return %c0_i32, %c0_i32_0, %c0_i32_1 : i32, i32, i32
  }
  func.func @transform_8(%arg0: i32) -> (i32, i32, i32) {
    %c0_i32 = arith.constant 0 : i32
    %c0_i32_0 = arith.constant 0 : i32
    %c0_i32_1 = arith.constant 0 : i32
    %c0_i32_2 = arith.constant 0 : i32
    return %c0_i32, %c0_i32_0, %c0_i32_1 : i32, i32, i32
  }
  func.func @transform_9(%arg0: i32) -> (i32, i32) {
    %c0_i32 = arith.constant 0 : i32
    %c0_i32_0 = arith.constant 0 : i32
    %c0_i32_1 = arith.constant 0 : i32
    return %c0_i32, %c0_i32_0 : i32, i32
  }
  func.func @transform_10(%arg0: i32) -> (i32, i32) {
    %c0_i32 = arith.constant 0 : i32
    %c0_i32_0 = arith.constant 0 : i32
    %c0_i32_1 = arith.constant 0 : i32
    return %c0_i32, %c0_i32_0 : i32, i32
  }
  func.func @transform_11(%arg0: i32) -> (i32, i32) {
    %c0_i32 = arith.constant 0 : i32
    %c0_i32_0 = arith.constant 0 : i32
    %c0_i32_1 = arith.constant 0 : i32
    return %c0_i32, %c0_i32_0 : i32, i32
  }
  func.func @transform_12(%arg0: i32) -> (i32, i32, i32) {
    %c0_i32 = arith.constant 0 : i32
    %c0_i32_0 = arith.constant 0 : i32
    %c0_i32_1 = arith.constant 0 : i32
    return %arg0, %c0_i32, %c0_i32_0 : i32, i32, i32
  }
}

</mosaic_0001>

<llo_original>
// kernel: rhythm_discriminator_forward.2
$region0: #{rhythm_discriminator_forward.2}
  #allocation0 [shape = 'u32[]', space=smem, size = 0x4, offset = 0x4, fixed_abs, tag = 'smem constant byte address 0x4 - core index']
  #allocation1 [shape = 'u32[144,128]{1,0:T(1,128)}', space=vmem, size = 0x12000, scoped, tag = 'internal scratch']
  %s0 = inlined_call_operand.vmem [shape: bf16[128,54], index: 0, kind: input, shape index: {}]
  %s1 = inlined_call_operand.vmem [shape: bf16[54,16], index: 1, kind: input, shape index: {}]
  %s2 = inlined_call_operand.vmem [shape: f32[1,16], index: 2, kind: input, shape index: {}]
  %s3 = inlined_call_operand.vmem [shape: bf16[128,16], index: 3, kind: output, shape index: {}]
  %s4 = sld [smem:[#allocation0]]
  $region22: #{rhythm_discriminator_forward.2} parent=0
    _
  %s6 = ssub.s32 1, %s4
  %s7 = scalar_select 0, %s6, %s4
  // Predicated region
  $region2: #{rhythm_discriminator_forward.2} parent=0 // pred_check
    _
  $region3: #{rhythm_discriminator_forward.2} parent=0 // pred_check_branch
    %9 = sbr.rel (0) target = $region5
  $region4: #{rhythm_discriminator_forward.2} parent=0 // pred_region
    _
  $region5: #{rhythm_discriminator_forward.2} parent=0 // pred_fallthru
    _
  // Predicated region
  $region6: #{rhythm_discriminator_forward.2} parent=0 // pred_check
    _
  $region7: #{rhythm_discriminator_forward.2} parent=0 // pred_check_branch
    %11 = sbr.rel (0) target = $region9
  $region8: #{rhythm_discriminator_forward.2} parent=0 // pred_region
    _
  $region9: #{rhythm_discriminator_forward.2} parent=0 // pred_fallthru
    _
  // Predicated region
  $region10: #{rhythm_discriminator_forward.2} parent=0 // pred_check
    _
  $region11: #{rhythm_discriminator_forward.2} parent=0 // pred_check_branch
    %13 = sbr.rel (0) target = $region13
  $region12: #{rhythm_discriminator_forward.2} parent=0 // pred_region
    _
  $region13: #{rhythm_discriminator_forward.2} parent=0 // pred_fallthru
    _
  %v15 = vld [vmem:[%s0] sm:$0xf]
  %v16 = vld [vmem:[%s0 + $0x4] sm:$0xf]
  %v17 = vld [vmem:[%s0 + $0x8] sm:$0xf]
  %v18 = vld [vmem:[%s0 + $0xc] sm:$0xf]
  %v19 = vld [vmem:[%s0 + $0x10] sm:$0xf]
  %v20 = vld [vmem:[%s0 + $0x14] sm:$0xf]
  %v21 = vld [vmem:[%s0 + $0x18] sm:$0xf]
  %v22 = vld [vmem:[%s0 + $0x1c] sm:$0xf]
  %v23 = vld [vmem:[%s0 + $0x20] sm:$0xf]
  %v24 = vld [vmem:[%s0 + $0x24] sm:$0xf]
  %v25 = vld [vmem:[%s0 + $0x28] sm:$0xf]
  %v26 = vld [vmem:[%s0 + $0x2c] sm:$0xf]
  %v27 = vld [vmem:[%s0 + $0x30] sm:$0xf]
  %v28 = vld [vmem:[%s0 + $0x34] sm:$0xf]
  %v29 = vld [vmem:[%s0 + $0x38] sm:$0xf]
  %v30 = vld [vmem:[%s0 + $0x3c] sm:$0xf]
  %v31 = vld [vmem:[%s1] sm:$0xf]
  %v32 = vld [vmem:[%s1 + $0x4] sm:$0xf]
  %v33 = vld [vmem:[%s1 + $0x8] sm:$0xf]
  %v34 = vld [vmem:[%s1 + $0xc] sm:$0xf]
  %v35 = vld [vmem:[%s1 + $0x10] sm:$0xf]
  %v36 = vld [vmem:[%s1 + $0x14] sm:$0xf]
  %v37 = vld [vmem:[%s1 + $0x18] sm:$0x7]
  %v38 = vld [vmem:[%s2] sm:$0x1]
  %v40 = vlaneseq
  %v41 = vshrl.u32 %v40, 7
  %v42 = vsub.s32 0, %v41
  %v43 = vrot.slane %v38, %v42
  %v61 = vunpack.c.l.b16 %v15
  %v62 = vunpack.c.l.b16 %v16
  %v63 = vunpack.c.l.b16 %v17
  %v64 = vunpack.c.l.b16 %v18
  %v65 = vunpack.c.l.b16 %v19
  %v66 = vunpack.c.l.b16 %v20
  %v67 = vunpack.c.l.b16 %v21
  %v68 = vunpack.c.l.b16 %v22
  %v69 = vunpack.c.l.b16 %v23
  %v70 = vunpack.c.l.b16 %v24
  %v71 = vunpack.c.l.b16 %v25
  %v72 = vunpack.c.l.b16 %v26
  %v73 = vunpack.c.l.b16 %v27
  %v74 = vunpack.c.l.b16 %v28
  %v75 = vunpack.c.l.b16 %v29
  %v76 = vunpack.c.l.b16 %v30
  %v77 = vpack.c.b16 %v62, %v61
  %v78 = vpack.c.b16 %v64, %v63
  %v79 = vpack.c.b16 %v66, %v65
  %v80 = vpack.c.b16 %v68, %v67
  %v81 = vpack.c.b16 %v70, %v69
  %v82 = vpack.c.b16 %v72, %v71
  %v83 = vpack.c.b16 %v74, %v73
  %v84 = vpack.c.b16 %v76, %v75
  %v92 = vunpack.c.l.b16 %v31
  %v93 = vunpack.c.l.b16 %v32
  %v94 = vunpack.c.l.b16 %v33
  %v95 = vunpack.c.l.b16 %v34
  %v96 = vunpack.c.l.b16 %v35
  %v97 = vunpack.c.l.b16 %v36
  %v98 = vunpack.c.l.b16 %v37
  %v99 = vpack.c.b16 %v93, %v92
  %v100 = vpack.c.b16 %v95, %v94
  %v101 = vpack.c.b16 %v97, %v96
  %v102 = vpack.c.b16 %v98, %v98
  %vm106 = vcmask 441344
  %v108 = vsel %vm106, %v77, 0
  %v111 = vsel %vm106, %v78, 0
  %v114 = vsel %vm106, %v79, 0
  %v117 = vsel %vm106, %v80, 0
  %v120 = vsel %vm106, %v81, 0
  %v123 = vsel %vm106, %v82, 0
  %v126 = vsel %vm106, %v83, 0
  %v129 = vsel %vm106, %v84, 0
  %vm131 = vcmask 1042432
  %v133 = vsel %vm131, %v102, 0
  %135 = vmatprep.subr.bf16.mxu0 0
  %136 = vmatpush1.bf16.msra.mxu0 %v99
  %137 = vmatprep.subr.bf16.mxu0 0
  %138 = vmatpush1.bf16.msra.mxu0 %v100
  %139 = vmatprep.subr.bf16.mxu0 0
  %140 = vmatpush1.bf16.msra.mxu0 %v101
  %141 = vmatprep.subr.bf16.mxu0 0
  %142 = vmatpush1.bf16.msra.mxu0 %v133
  %143 = vmatprep.subr.bf16.mxu0 0
  %144 = vmatpush1.bf16.msra.mxu0 0
  %145 = vmatprep.subr.bf16.mxu0 0
  %146 = vmatpush1.bf16.msra.mxu0 0
  %147 = vmatprep.subr.bf16.mxu0 0
  %148 = vmatpush1.bf16.msra.mxu0 0
  %149 = vmatprep.subr.bf16.mxu0 0
  %150 = vmatpush1.bf16.msra.mxu0 0
  %151 = vmatprep.subr.bf16.mxu0 0
  %152 = vmatpush1.bf16.msra.mxu0 0
  %153 = vmatprep.subr.bf16.mxu0 0
  %154 = vmatpush1.bf16.msra.mxu0 0
  %155 = vmatprep.subr.bf16.mxu0 0
  %156 = vmatpush1.bf16.msra.mxu0 0
  %157 = vmatprep.subr.bf16.mxu0 0
  %158 = vmatpush1.bf16.msra.mxu0 0
  %159 = vmatprep.subr.bf16.mxu0 0
  %160 = vmatpush1.bf16.msra.mxu0 0
  %161 = vmatprep.subr.bf16.mxu0 0
  %162 = vmatpush1.bf16.msra.mxu0 0
  %163 = vmatprep.subr.bf16.mxu0 0
  %164 = vmatpush1.bf16.msra.mxu0 0
  %165 = vmatprep.subr.bf16.mxu0 0
  %166 = vmatpush1.bf16.msra.mxu0 0
  %167 = vmatprep.mubr.bf16.mxu0 0
  %168 = vmatmul.mubr.bf16.gmra.mrb[0].mxu0 %v108
  %v169 = vpop.f32.mrb[0].mxu0
  %v170 = vadd.f32 %v43, %v169
  %v171 = vpop.f32.mrb[0].mxu0
  %v172 = vpop.f32.mrb[0].mxu0
  %v173 = vadd.f32 %v43, %v172
  %v174 = vpop.f32.mrb[0].mxu0
  %175 = vmatprep.mubr.bf16.mxu0 0
  %176 = vmatmul.mubr.bf16.gmra.mrb[0].mxu0 %v111
  %v177 = vpop.f32.mrb[0].mxu0
  %v178 = vadd.f32 %v43, %v177
  %v179 = vpop.f32.mrb[0].mxu0
  %v180 = vpop.f32.mrb[0].mxu0
  %v181 = vadd.f32 %v43, %v180
  %v182 = vpop.f32.mrb[0].mxu0
  %183 = vmatprep.mubr.bf16.mxu0 0
  %184 = vmatmul.mubr.bf16.gmra.mrb[0].mxu0 %v114
  %v185 = vpop.f32.mrb[0].mxu0
  %v186 = vadd.f32 %v43, %v185
  %v187 = vpop.f32.mrb[0].mxu0
  %v188 = vpop.f32.mrb[0].mxu0
  %v189 = vadd.f32 %v43, %v188
  %v190 = vpop.f32.mrb[0].mxu0
  %191 = vmatprep.mubr.bf16.mxu0 0
  %192 = vmatmul.mubr.bf16.gmra.mrb[0].mxu0 %v117
  %v193 = vpop.f32.mrb[0].mxu0
  %v194 = vadd.f32 %v43, %v193
  %v195 = vpop.f32.mrb[0].mxu0
  %v196 = vpop.f32.mrb[0].mxu0
  %v197 = vadd.f32 %v43, %v196
  %v198 = vpop.f32.mrb[0].mxu0
  %199 = vmatprep.mubr.bf16.mxu0 0
  %200 = vmatmul.mubr.bf16.gmra.mrb[0].mxu0 %v120
  %v201 = vpop.f32.mrb[0].mxu0
  %v202 = vadd.f32 %v43, %v201
  %v203 = vpop.f32.mrb[0].mxu0
  %v204 = vpop.f32.mrb[0].mxu0
  %v205 = vadd.f32 %v43, %v204
  %v206 = vpop.f32.mrb[0].mxu0
  %207 = vmatprep.mubr.bf16.mxu0 0
  %208 = vmatmul.mubr.bf16.gmra.mrb[0].mxu0 %v123
  %v209 = vpop.f32.mrb[0].mxu0
  %v210 = vadd.f32 %v43, %v209
  %v211 = vpop.f32.mrb[0].mxu0
  %v212 = vpop.f32.mrb[0].mxu0
  %v213 = vadd.f32 %v43, %v212
  %v214 = vpop.f32.mrb[0].mxu0
  %215 = vmatprep.mubr.bf16.mxu0 0
  %216 = vmatmul.mubr.bf16.gmra.mrb[0].mxu0 %v126
  %v217 = vpop.f32.mrb[0].mxu0
  %v218 = vadd.f32 %v43, %v217
  %v219 = vpop.f32.mrb[0].mxu0
  %v220 = vpop.f32.mrb[0].mxu0
  %v221 = vadd.f32 %v43, %v220
  %v222 = vpop.f32.mrb[0].mxu0
  %223 = vmatprep.mubr.bf16.mxu0 0
  %224 = vmatmul.mubr.bf16.gmra.mrb[0].mxu0 %v129
  %v225 = vpop.f32.mrb[0].mxu0
  %v226 = vadd.f32 %v43, %v225
  %v227 = vpop.f32.mrb[0].mxu0
  %v228 = vpop.f32.mrb[0].mxu0
  %v229 = vadd.f32 %v43, %v228
  %v230 = vpop.f32.mrb[0].mxu0
  %231 = vdwg.mxu0
  %vm232 = vcmp.gt.f32.partialorder %v170, 0.0
  %vm233 = vcmp.gt.f32.partialorder %v173, 0.0
  %vm234 = vcmp.gt.f32.partialorder %v178, 0.0
  %vm235 = vcmp.gt.f32.partialorder %v181, 0.0
  %vm236 = vcmp.gt.f32.partialorder %v186, 0.0
  %vm237 = vcmp.gt.f32.partialorder %v189, 0.0
  %vm238 = vcmp.gt.f32.partialorder %v194, 0.0
  %vm239 = vcmp.gt.f32.partialorder %v197, 0.0
  %vm240 = vcmp.gt.f32.partialorder %v202, 0.0
  %vm241 = vcmp.gt.f32.partialorder %v205, 0.0
  %vm242 = vcmp.gt.f32.partialorder %v210, 0.0
  %vm243 = vcmp.gt.f32.partialorder %v213, 0.0
  %vm244 = vcmp.gt.f32.partialorder %v218, 0.0
  %vm245 = vcmp.gt.f32.partialorder %v221, 0.0
  %vm246 = vcmp.gt.f32.partialorder %v226, 0.0
  %vm247 = vcmp.gt.f32.partialorder %v229, 0.0
  %v248 = vmul.f32 %v170, 0.2
  %v249 = vmul.f32 %v173, 0.2
  %v250 = vmul.f32 %v178, 0.2
  %v251 = vmul.f32 %v181, 0.2
  %v252 = vmul.f32 %v186, 0.2
  %v253 = vmul.f32 %v189, 0.2
  %v254 = vmul.f32 %v194, 0.2
  %v255 = vmul.f32 %v197, 0.2
  %v256 = vmul.f32 %v202, 0.2
  %v257 = vmul.f32 %v205, 0.2
  %v258 = vmul.f32 %v210, 0.2
  %v259 = vmul.f32 %v213, 0.2
  %v260 = vmul.f32 %v218, 0.2
  %v261 = vmul.f32 %v221, 0.2
  %v262 = vmul.f32 %v226, 0.2
  %v263 = vmul.f32 %v229, 0.2
  %v264 = vsel %vm232, %v170, %v248
  %v265 = vsel %vm233, %v173, %v249
  %v266 = vsel %vm234, %v178, %v250
  %v267 = vsel %vm235, %v181, %v251
  %v268 = vsel %vm236, %v186, %v252
  %v269 = vsel %vm237, %v189, %v253
  %v270 = vsel %vm238, %v194, %v254
  %v271 = vsel %vm239, %v197, %v255
  %v272 = vsel %vm240, %v202, %v256
  %v273 = vsel %vm241, %v205, %v257
  %v274 = vsel %vm242, %v210, %v258
  %v275 = vsel %vm243, %v213, %v259
  %v276 = vsel %vm244, %v218, %v260
  %v277 = vsel %vm245, %v221, %v261
  %v278 = vsel %vm246, %v226, %v262
  %v279 = vsel %vm247, %v229, %v263
  %v280 = vpack.c.bf16 %v265, %v264
  %v281 = vpack.c.bf16 %v267, %v266
  %v282 = vpack.c.bf16 %v269, %v268
  %v283 = vpack.c.bf16 %v271, %v270
  %v284 = vpack.c.bf16 %v273, %v272
  %v285 = vpack.c.bf16 %v275, %v274
  %v286 = vpack.c.bf16 %v277, %v276
  %v287 = vpack.c.bf16 %v279, %v278
  %v296 = vunpack.c.l.b16 %v280
  %v297 = vunpack.c.h.b16 %v280
  %v298 = vunpack.c.l.b16 %v281
  %v299 = vunpack.c.h.b16 %v281
  %v300 = vunpack.c.l.b16 %v282
  %v301 = vunpack.c.h.b16 %v282
  %v302 = vunpack.c.l.b16 %v283
  %v303 = vunpack.c.h.b16 %v283
  %v304 = vunpack.c.l.b16 %v284
  %v305 = vunpack.c.h.b16 %v284
  %v306 = vunpack.c.l.b16 %v285
  %v307 = vunpack.c.h.b16 %v285
  %v308 = vunpack.c.l.b16 %v286
  %v309 = vunpack.c.h.b16 %v286
  %v310 = vunpack.c.l.b16 %v287
  %v311 = vunpack.c.h.b16 %v287
  %v312 = vpack.c.b16 %v296, %v296
  %v313 = vpack.c.b16 %v297, %v297
  %v314 = vpack.c.b16 %v298, %v298
  %v315 = vpack.c.b16 %v299, %v299
  %v316 = vpack.c.b16 %v300, %v300
  %v317 = vpack.c.b16 %v301, %v301
  %v318 = vpack.c.b16 %v302, %v302
  %v319 = vpack.c.b16 %v303, %v303
  %v320 = vpack.c.b16 %v304, %v304
  %v321 = vpack.c.b16 %v305, %v305
  %v322 = vpack.c.b16 %v306, %v306
  %v323 = vpack.c.b16 %v307, %v307
  %v324 = vpack.c.b16 %v308, %v308
  %v325 = vpack.c.b16 %v309, %v309
  %v326 = vpack.c.b16 %v310, %v310
  %v327 = vpack.c.b16 %v311, %v311
  %vm344 = vcmask 125952
  %345 = vst.msk [vmem:[%s3] sm:$0xf] %vm344, %v312
  %346 = vst.msk [vmem:[%s3 + $0x4] sm:$0xf] %vm344, %v313
  %347 = vst.msk [vmem:[%s3 + $0x8] sm:$0xf] %vm344, %v314
  %348 = vst.msk [vmem:[%s3 + $0xc] sm:$0xf] %vm344, %v315
  %349 = vst.msk [vmem:[%s3 + $0x10] sm:$0xf] %vm344, %v316
  %350 = vst.msk [vmem:[%s3 + $0x14] sm:$0xf] %vm344, %v317
  %351 = vst.msk [vmem:[%s3 + $0x18] sm:$0xf] %vm344, %v318
  %352 = vst.msk [vmem:[%s3 + $0x1c] sm:$0xf] %vm344, %v319
  %353 = vst.msk [vmem:[%s3 + $0x20] sm:$0xf] %vm344, %v320
  %354 = vst.msk [vmem:[%s3 + $0x24] sm:$0xf] %vm344, %v321
  %355 = vst.msk [vmem:[%s3 + $0x28] sm:$0xf] %vm344, %v322
  %356 = vst.msk [vmem:[%s3 + $0x2c] sm:$0xf] %vm344, %v323
  %357 = vst.msk [vmem:[%s3 + $0x30] sm:$0xf] %vm344, %v324
  %358 = vst.msk [vmem:[%s3 + $0x34] sm:$0xf] %vm344, %v325
  %359 = vst.msk [vmem:[%s3 + $0x38] sm:$0xf] %vm344, %v326
  %360 = vst.msk [vmem:[%s3 + $0x3c] sm:$0xf] %vm344, %v327
  // Predicated region
  $region14: #{rhythm_discriminator_forward.2} parent=0 // pred_check
    _
  $region15: #{rhythm_discriminator_forward.2} parent=0 // pred_check_branch
    %362 = sbr.rel (0) target = $region17
  $region16: #{rhythm_discriminator_forward.2} parent=0 // pred_region
    _
  $region17: #{rhythm_discriminator_forward.2} parent=0 // pred_fallthru
    _
  // Predicated region
  $region18: #{rhythm_discriminator_forward.2} parent=0 // pred_check
    _
  $region19: #{rhythm_discriminator_forward.2} parent=0 // pred_check_branch
    %364 = sbr.rel (0) target = $region21
  $region20: #{rhythm_discriminator_forward.2} parent=0 // pred_region
    _
  $region21: #{rhythm_discriminator_forward.2} parent=0 // pred_fallthru
    _

// kernel: rhythm_discriminator_forward.3
$region0: #{rhythm_discriminator_forward.3}
  #allocation0 [shape = 'u32[]', space=smem, size = 0x4, offset = 0x4, fixed_abs, tag = 'smem constant byte address 0x4 - core index']
  #allocation1 [shape = 'u32[144,128]{1,0:T(1,128)}', space=vmem, size = 0x12000, scoped, tag = 'internal scratch']
  %s0 = inlined_call_operand.vmem [shape: bf16[1,128,16], index: 0, kind: input, shape index: {}]
  %s1 = inlined_call_operand.vmem [shape: bf16[9,32,128], index: 1, kind: input, shape index: {}]
  %s2 = inlined_call_operand.vmem [shape: bf16[27,16,32], index: 2, kind: input, shape index: {}]
  %s3 = inlined_call_operand.vmem [shape: f32[1,32], index: 3, kind: input, shape index: {}]
  %s4 = inlined_call_operand.vmem [shape: bf16[6,8,32], index: 4, kind: input, shape index: {}]
  %s5 = inlined_call_operand.vmem [shape: bf16[27,32,64], index: 5, kind: input, shape index: {}]
  %s6 = inlined_call_operand.vmem [shape: f32[1,64], index: 6, kind: input, shape index: {}]
  %s7 = inlined_call_operand.vmem [shape: bf16[3,4,8], index: 7, kind: input, shape index: {}]
  %s8 = inlined_call_operand.vmem [shape: bf16[27,64,128], index: 8, kind: input, shape index: {}]
  %s9 = inlined_call_operand.vmem [shape: f32[1,128], index: 9, kind: input, shape index: {}]
  %s10 = inlined_call_operand.vmem [shape: f32[128,128], index: 10, kind: input, shape index: {}]
  %s11 = inlined_call_operand.vmem [shape: f32[1,128], index: 11, kind: input, shape index: {}]
  %s12 = inlined_call_operand.hbm [shape: f32[1,1,128], index: 12, kind: output, shape index: {}]
  %s13 = sld [smem:[#allocation0]]
  $region58: #{rhythm_discriminator_forward.3} parent=0
    _
  %s15 = ssub.s32 1, %s13
  %s16 = scalar_select 0, %s15, %s13
  $region1: #{rhythm_discriminator_forward.3} parent=0
    #allocation2 [shape = 'u8[512]{0}', space=vmem, size = 0x400, scoped, tag = 'output window, operand 0, single buffered']
    #allocation3 [shape = 's32[1]{0}', space=sflag, size = 0x4, scoped, tag = 'scoped memory for rhythm_discriminator_forward.3']
    %17 = vsyncpa [#allocation3], 0
    // Predicated region
    $region2: #{rhythm_discriminator_forward.3} parent=1 // pred_check
      _
    $region3: #{rhythm_discriminator_forward.3} parent=1 // pred_check_branch
      %19 = sbr.rel (0) target = $region5
    $region4: #{rhythm_discriminator_forward.3} parent=1 // pred_region
      _
    $region5: #{rhythm_discriminator_forward.3} parent=1 // pred_fallthru
      _
    // Predicated region
    $region6: #{rhythm_discriminator_forward.3} parent=1 // pred_check
      _
    $region7: #{rhythm_discriminator_forward.3} parent=1 // pred_check_branch
      %21 = sbr.rel (0) target = $region9
    $region8: #{rhythm_discriminator_forward.3} parent=1 // pred_region
      _
    $region9: #{rhythm_discriminator_forward.3} parent=1 // pred_fallthru
      _
    // Predicated region
    $region10: #{rhythm_discriminator_forward.3} parent=1 // pred_check
      _
    $region11: #{rhythm_discriminator_forward.3} parent=1 // pred_check_branch
      %23 = sbr.rel (0) target = $region13
    $region12: #{rhythm_discriminator_forward.3} parent=1 // pred_region
      _
    $region13: #{rhythm_discriminator_forward.3} parent=1 // pred_fallthru
      _
    // Predicated region
    $region14: #{rhythm_discriminator_forward.3} parent=1 // pred_check
      _
    $region15: #{rhythm_discriminator_forward.3} parent=1 // pred_check_branch
      %25 = sbr.rel (0) target = $region17
    $region16: #{rhythm_discriminator_forward.3} parent=1 // pred_region
      _
    $region17: #{rhythm_discriminator_forward.3} parent=1 // pred_fallthru
      _
    // Predicated region
    $region18: #{rhythm_discriminator_forward.3} parent=1 // pred_check
      _
    $region19: #{rhythm_discriminator_forward.3} parent=1 // pred_check_branch
      %27 = sbr.rel (0) target = $region21
    $region20: #{rhythm_discriminator_forward.3} parent=1 // pred_region
      _
    $region21: #{rhythm_discriminator_forward.3} parent=1 // pred_fallthru
      _
    // Predicated region
    $region22: #{rhythm_discriminator_forward.3} parent=1 // pred_check
      _
    $region23: #{rhythm_discriminator_forward.3} parent=1 // pred_check_branch
      %29 = sbr.rel (0) target = $region25
    $region24: #{rhythm_discriminator_forward.3} parent=1 // pred_region
      _
    $region25: #{rhythm_discriminator_forward.3} parent=1 // pred_fallthru
      _
    // Predicated region
    $region26: #{rhythm_discriminator_forward.3} parent=1 // pred_check
      _
    $region27: #{rhythm_discriminator_forward.3} parent=1 // pred_check_branch
      %31 = sbr.rel (0) target = $region29
    $region28: #{rhythm_discriminator_forward.3} parent=1 // pred_region
      _
    $region29: #{rhythm_discriminator_forward.3} parent=1 // pred_fallthru
      _
    // Predicated region
    $region30: #{rhythm_discriminator_forward.3} parent=1 // pred_check
      _
    $region31: #{rhythm_discriminator_forward.3} parent=1 // pred_check_branch
      %33 = sbr.rel (0) target = $region33
    $region32: #{rhythm_discriminator_forward.3} parent=1 // pred_region
      _
    $region33: #{rhythm_discriminator_forward.3} parent=1 // pred_fallthru
      _
    // Predicated region
    $region34: #{rhythm_discriminator_forward.3} parent=1 // pred_check
      _
    $region35: #{rhythm_discriminator_forward.3} parent=1 // pred_check_branch
      %35 = sbr.rel (0) target = $region37
    $region36: #{rhythm_discriminator_forward.3} parent=1 // pred_region
      _
    $region37: #{rhythm_discriminator_forward.3} parent=1 // pred_fallthru
      _
    // Predicated region
    $region38: #{rhythm_discriminator_forward.3} parent=1 // pred_check
      _
    $region39: #{rhythm_discriminator_forward.3} parent=1 // pred_check_branch
      %37 = sbr.rel (0) target = $region41
    $region40: #{rhythm_discriminator_forward.3} parent=1 // pred_region
      _
    $region41: #{rhythm_discriminator_forward.3} parent=1 // pred_fallthru
      _
    // Predicated region
    $region42: #{rhythm_discriminator_forward.3} parent=1 // pred_check
      _
    $region43: #{rhythm_discriminator_forward.3} parent=1 // pred_check_branch
      %39 = sbr.rel (0) target = $region45
    $region44: #{rhythm_discriminator_forward.3} parent=1 // pred_region
      _
    $region45: #{rhythm_discriminator_forward.3} parent=1 // pred_fallthru
      _
    // Predicated region
    $region46: #{rhythm_discriminator_forward.3} parent=1 // pred_check
      _
    $region47: #{rhythm_discriminator_forward.3} parent=1 // pred_check_branch
      %41 = sbr.rel (0) target = $region49
    $region48: #{rhythm_discriminator_forward.3} parent=1 // pred_region
      _
    $region49: #{rhythm_discriminator_forward.3} parent=1 // pred_fallthru
      _
    %v43 = vld [vmem:[%s0] sm:$0xf]
    %v44 = vld [vmem:[%s0 + $0x4] sm:$0xf]
    %v45 = vld [vmem:[%s0 + $0x8] sm:$0xf]
    %v46 = vld [vmem:[%s0 + $0xc] sm:$0xf]
    %v47 = vld [vmem:[%s0 + $0x10] sm:$0xf]
    %v48 = vld [vmem:[%s0 + $0x14] sm:$0xf]
    %v49 = vld [vmem:[%s0 + $0x18] sm:$0xf]
    %v50 = vld [vmem:[%s0 + $0x1c] sm:$0xf]
    %v51 = vld [vmem:[%s0 + $0x20] sm:$0xf]
    %v52 = vld [vmem:[%s0 + $0x24] sm:$0xf]
    %v53 = vld [vmem:[%s0 + $0x28] sm:$0xf]
    %v54 = vld [vmem:[%s0 + $0x2c] sm:$0xf]
    %v55 = vld [vmem:[%s0 + $0x30] sm:$0xf]
    %v56 = vld [vmem:[%s0 + $0x34] sm:$0xf]
    %v57 = vld [vmem:[%s0 + $0x38] sm:$0xf]
    %v58 = vld [vmem:[%s0 + $0x3c] sm:$0xf]
    %v59 = vld [vmem:[%s1] sm:$0xf]
    %v60 = vld [vmem:[%s1 + $0x4] sm:$0xf]
    %v61 = vld [vmem:[%s1 + $0x8] sm:$0xf]
    %v62 = vld [vmem:[%s1 + $0xc] sm:$0xf]
    %v67 = vunpack.c.l.b16 %v59
    %v68 = vunpack.c.l.b16 %v60
    %v69 = vunpack.c.l.b16 %v61
    %v70 = vunpack.c.l.b16 %v62
    %v71 = vpack.c.b16 %v68, %v67
    %v72 = vpack.c.b16 %v70, %v69
    %v91 = vunpack.c.l.b16 %v43
    %v92 = vunpack.c.l.b16 %v44
    %v93 = vunpack.c.l.b16 %v45
    %v94 = vunpack.c.l.b16 %v46
    %v95 = vunpack.c.l.b16 %v47
    %v96 = vunpack.c.l.b16 %v48
    %v97 = vunpack.c.l.b16 %v49
    %v98 = vunpack.c.l.b16 %v50
    %v99 = vunpack.c.l.b16 %v51
    %v100 = vunpack.c.l.b16 %v52
    %v101 = vunpack.c.l.b16 %v53
    %v102 = vunpack.c.l.b16 %v54
    %v103 = vunpack.c.l.b16 %v55
    %v104 = vunpack.c.l.b16 %v56
    %v105 = vunpack.c.l.b16 %v57
    %v106 = vunpack.c.l.b16 %v58
    %v107 = vpack.c.b16 %v92, %v91
    %v108 = vpack.c.b16 %v94, %v93
    %v109 = vpack.c.b16 %v96, %v95
    %v110 = vpack.c.b16 %v98, %v97
    %v111 = vpack.c.b16 %v100, %v99
    %v112 = vpack.c.b16 %v102, %v101
    %v113 = vpack.c.b16 %v104, %v103
    %v114 = vpack.c.b16 %v106, %v105
    %123 = vmatprep.subr.bf16.mxu0 0
    %124 = vmatpush1.bf16.msra.mxu0 %v107
    %125 = vmatprep.subr.bf16.mxu0 0
    %126 = vmatpush1.bf16.msra.mxu0 %v108
    %127 = vmatprep.subr.bf16.mxu0 0
    %128 = vmatpush1.bf16.msra.mxu0 %v109
    %129 = vmatprep.subr.bf16.mxu0 0
    %130 = vmatpush1.bf16.msra.mxu0 %v110
    %131 = vmatprep.subr.bf16.mxu0 0
    %132 = vmatpush1.bf16.msra.mxu0 %v111
    %133 = vmatprep.subr.bf16.mxu0 0
    %134 = vmatpush1.bf16.msra.mxu0 %v112
    %135 = vmatprep.subr.bf16.mxu0 0
    %136 = vmatpush1.bf16.msra.mxu0 %v113
    %137 = vmatprep.subr.bf16.mxu0 0
    %138 = vmatpush1.bf16.msra.mxu0 %v114
    %139 = vmatprep.subr.bf16.mxu0 0
    %140 = vmatpush1.bf16.msra.mxu0 0
    %141 = vmatprep.subr.bf16.mxu0 0
    %142 = vmatpush1.bf16.msra.mxu0 0
    %143 = vmatprep.subr.bf16.mxu0 0
    %144 = vmatpush1.bf16.msra.mxu0 0
    %145 = vmatprep.subr.bf16.mxu0 0
    %146 = vmatpush1.bf16.msra.mxu0 0
    %147 = vmatprep.subr.bf16.mxu0 0
    %148 = vmatpush1.bf16.msra.mxu0 0
    %149 = vmatprep.subr.bf16.mxu0 0
    %150 = vmatpush1.bf16.msra.mxu0 0
    %151 = vmatprep.subr.bf16.mxu0 0
    %152 = vmatpush1.bf16.msra.mxu0 0
    %153 = vmatprep.subr.bf16.mxu0 0
    %154 = vmatpush1.bf16.msra.mxu0 0
    %155 = vmatprep.mubr.bf16.mxu0 0
    %156 = vmatmul.mubr.bf16.gmra.mrb[0].mxu0 %v71
    %v157 = vpop.f32.mrb[0].mxu0
    %v158 = vadd.f32 0.0, %v157
    %v159 = vpop.f32.mrb[0].mxu0
    %v160 = vpop.f32.mrb[0].mxu0
    %v161 = vadd.f32 0.0, %v160
    %v162 = vpop.f32.mrb[0].mxu0
    %163 = vmatprep.mubr.bf16.mxu0 0
    %164 = vmatmul.mubr.bf16.gmra.mrb[0].mxu0 %v72
    %v165 = vpop.f32.mrb[0].mxu0
    %v166 = vadd.f32 0.0, %v165
    %v167 = vpop.f32.mrb[0].mxu0
    %v168 = vpop.f32.mrb[0].mxu0
    %v169 = vadd.f32 0.0, %v168
    %v170 = vpop.f32.mrb[0].mxu0
    %171 = vdwg.mxu0
    %v172 = vpack.c.bf16 %v161, %v158
    %v173 = vpack.c.bf16 %v169, %v166
    %s174 = scalar_lea.vmem %s2, 8
    %v175 = vld [vmem:[%s174] sm:$0xf]
    %v176 = vld [vmem:[%s174 + $0x4] sm:$0xf]
    %s177 = scalar_lea.vmem %s1, 16
    %v178 = vld [vmem:[%s177] sm:$0xf]
    %v179 = vld [vmem:[%s177 + $0x4] sm:$0xf]
    %v180 = vld [vmem:[%s177 + $0x8] sm:$0xf]
    %v181 = vld [vmem:[%s177 + $0xc] sm:$0xf]
    %v186 = vunpack.c.l.b16 %v178
    %v187 = vunpack.c.l.b16 %v179
    %v188 = vunpack.c.l.b16 %v180
    %v189 = vunpack.c.l.b16 %v181
    %v190 = vpack.c.b16 %v187, %v186
    %v191 = vpack.c.b16 %v189, %v188
    %194 = vmatprep.subr.bf16.mxu0 0
    %195 = vmatpush1.bf16.msra.mxu0 %v107
    %196 = vmatprep.subr.bf16.mxu0 0
    %197 = vmatpush1.bf16.msra.mxu0 %v108
    %198 = vmatprep.subr.bf16.mxu0 0
    %199 = vmatpush1.bf16.msra.mxu0 %v109
    %200 = vmatprep.subr.bf16.mxu0 0
    %201 = vmatpush1.bf16.msra.mxu0 %v110
    %202 = vmatprep.subr.bf16.mxu0 0
    %203 = vmatpush1.bf16.msra.mxu0 %v111
    %204 = vmatprep.subr.bf16.mxu0 0
    %205 = vmatpush1.bf16.msra.mxu0 %v112
    %206 = vmatprep.subr.bf16.mxu0 0
    %207 = vmatpush1.bf16.msra.mxu0 %v113
    %208 = vmatprep.subr.bf16.mxu0 0
    %209 = vmatpush1.bf16.msra.mxu0 %v114
    %210 = vmatprep.subr.bf16.mxu0 0
    %211 = vmatpush1.bf16.msra.mxu0 0
    %212 = vmatprep.subr.bf16.mxu0 0
    %213 = vmatpush1.bf16.msra.mxu0 0
    %214 = vmatprep.subr.bf16.mxu0 0
    %215 = vmatpush1.bf16.msra.mxu0 0
    %216 = vmatprep.subr.bf16.mxu0 0
    %217 = vmatpush1.bf16.msra.mxu0 0
    %218 = vmatprep.subr.bf16.mxu0 0
    %219 = vmatpush1.bf16.msra.mxu0 0
    %220 = vmatprep.subr.bf16.mxu0 0
    %221 = vmatpush1.bf16.msra.mxu0 0
    %222 = vmatprep.subr.bf16.mxu0 0
    %223 = vmatpush1.bf16.msra.mxu0 0
    %224 = vmatprep.subr.bf16.mxu0 0
    %225 = vmatpush1.bf16.msra.mxu0 0
    %226 = vmatprep.mubr.bf16.mxu0 0
    %227 = vmatmul.mubr.bf16.gmra.mrb[0].mxu0 %v190
    %v228 = vpop.f32.mrb[0].mxu0
    %v229 = vadd.f32 0.0, %v228
    %v230 = vpop.f32.mrb[0].mxu0
    %v231 = vpop.f32.mrb[0].mxu0
    %v232 = vadd.f32 0.0, %v231
    %v233 = vpop.f32.mrb[0].mxu0
    %234 = vmatprep.mubr.bf16.mxu0 0
    %235 = vmatmul.mubr.bf16.gmra.mrb[0].mxu0 %v191
    %v236 = vpop.f32.mrb[0].mxu0
    %v237 = vadd.f32 0.0, %v236
    %v238 = vpop.f32.mrb[0].mxu0
    %v239 = vpop.f32.mrb[0].mxu0
    %v240 = vadd.f32 0.0, %v239
    %v241 = vpop.f32.mrb[0].mxu0
    %242 = vdwg.mxu0
    %v243 = vpack.c.bf16 %v232, %v229
    %v244 = vpack.c.bf16 %v240, %v237
    %s245 = scalar_lea.vmem %s2, 32
    %v246 = vld [vmem:[%s245] sm:$0xf]
    %v247 = vld [vmem:[%s245 + $0x4] sm:$0xf]
    %v250 = vunpack.c.l.b16 %v246
    %v251 = vunpack.c.l.b16 %v247
    %v252 = vpack.c.b16 %v251, %v250
    %vm254 = vcmask 130048
    %v256 = vsel %vm254, %v243, 0
    %v259 = vsel %vm254, %v244, 0
    %261 = vmatprep.subr.bf16.mxu0 0
    %262 = vmatpush1.bf16.msra.mxu0 %v252
    %263 = vmatprep.subr.bf16.mxu0 0
    %264 = vmatpush1.bf16.msra.mxu0 0
    %265 = vmatprep.subr.bf16.mxu0 0
    %266 = vmatpush1.bf16.msra.mxu0 0
    %267 = vmatprep.subr.bf16.mxu0 0
    %268 = vmatpush1.bf16.msra.mxu0 0
    %269 = vmatprep.subr.bf16.mxu0 0
    %270 = vmatpush1.bf16.msra.mxu0 0
    %271 = vmatprep.subr.bf16.mxu0 0
    %272 = vmatpush1.bf16.msra.mxu0 0
    %273 = vmatprep.subr.bf16.mxu0 0
    %274 = vmatpush1.bf16.msra.mxu0 0
    %275 = vmatprep.subr.bf16.mxu0 0
    %276 = vmatpush1.bf16.msra.mxu0 0
    %277 = vmatprep.subr.bf16.mxu0 0
    %278 = vmatpush1.bf16.msra.mxu0 0
    %279 = vmatprep.subr.bf16.mxu0 0
    %280 = vmatpush1.bf16.msra.mxu0 0
    %281 = vmatprep.subr.bf16.mxu0 0
    %282 = vmatpush1.bf16.msra.mxu0 0
    %283 = vmatprep.subr.bf16.mxu0 0
    %284 = vmatpush1.bf16.msra.mxu0 0
    %285 = vmatprep.subr.bf16.mxu0 0
    %286 = vmatpush1.bf16.msra.mxu0 0
    %287 = vmatprep.subr.bf16.mxu0 0
    %288 = vmatpush1.bf16.msra.mxu0 0
    %289 = vmatprep.subr.bf16.mxu0 0
    %290 = vmatpush1.bf16.msra.mxu0 0
    %291 = vmatprep.subr.bf16.mxu0 0
    %292 = vmatpush1.bf16.msra.mxu0 0
    %293 = vmatprep.mubr.bf16.mxu0 0
    %294 = vmatmul.mubr.bf16.gmra.mrb[0].mxu0 %v256
    %v295 = vpop.f32.mrb[0].mxu0
    %v296 = vadd.f32 0.0, %v295
    %v297 = vpop.f32.mrb[0].mxu0
    %v298 = vpop.f32.mrb[0].mxu0
    %v299 = vadd.f32 0.0, %v298
    %v300 = vpop.f32.mrb[0].mxu0
    %301 = vmatprep.mubr.bf16.mxu0 0
    %302 = vmatmul.mubr.bf16.gmra.mrb[0].mxu0 %v259
    %v303 = vpop.f32.mrb[0].mxu0
    %v304 = vadd.f32 0.0, %v303
    %v305 = vpop.f32.mrb[0].mxu0
    %v306 = vpop.f32.mrb[0].mxu0
    %v307 = vadd.f32 0.0, %v306
    %v308 = vpop.f32.mrb[0].mxu0
    %309 = vdwg.mxu0
    %v312 = vunpack.c.l.b16 %v175
    %v313 = vunpack.c.l.b16 %v176
    %v314 = vpack.c.b16 %v313, %v312
    %v317 = vsel %vm254, %v172, 0
    %v320 = vsel %vm254, %v173, 0
    %322 = vmatprep.subr.bf16.mxu0 0
    %323 = vmatpush1.bf16.msra.mxu0 %v314
    %324 = vmatprep.subr.bf16.mxu0 0
    %325 = vmatpush1.bf16.msra.mxu0 0
    %326 = vmatprep.subr.bf16.mxu0 0
    %327 = vmatpush1.bf16.msra.mxu0 0
    %328 = vmatprep.subr.bf16.mxu0 0
    %329 = vmatpush1.bf16.msra.mxu0 0
    %330 = vmatprep.subr.bf16.mxu0 0
    %331 = vmatpush1.bf16.msra.mxu0 0
    %332 = vmatprep.subr.bf16.mxu0 0
    %333 = vmatpush1.bf16.msra.mxu0 0
    %334 = vmatprep.subr.bf16.mxu0 0
    %335 = vmatpush1.bf16.msra.mxu0 0
    %336 = vmatprep.subr.bf16.mxu0 0
    %337 = vmatpush1.bf16.msra.mxu0 0
    %338 = vmatprep.subr.bf16.mxu0 0
    %339 = vmatpush1.bf16.msra.mxu0 0
    %340 = vmatprep.subr.bf16.mxu0 0
    %341 = vmatpush1.bf16.msra.mxu0 0
    %342 = vmatprep.subr.bf16.mxu0 0
    %343 = vmatpush1.bf16.msra.mxu0 0
    %344 = vmatprep.subr.bf16.mxu0 0
    %345 = vmatpush1.bf16.msra.mxu0 0
    %346 = vmatprep.subr.bf16.mxu0 0
    %347 = vmatpush1.bf16.msra.mxu0 0
    %348 = vmatprep.subr.bf16.mxu0 0
    %349 = vmatpush1.bf16.msra.mxu0 0
    %350 = vmatprep.subr.bf16.mxu0 0
    %351 = vmatpush1.bf16.msra.mxu0 0
    %352 = vmatprep.subr.bf16.mxu0 0
    %353 = vmatpush1.bf16.msra.mxu0 0
    %354 = vmatprep.mubr.bf16.mxu0 0
    %355 = vmatmul.mubr.bf16.gmra.mrb[0].mxu0 %v317
    %v356 = vpop.f32.mrb[0].mxu0
    %v357 = vadd.f32 %v296, %v356
    %v358 = vpop.f32.mrb[0].mxu0
    %v359 = vpop.f32.mrb[0].mxu0
    %v360 = vadd.f32 %v299, %v359
    %v361 = vpop.f32.mrb[0].mxu0
    %362 = vmatprep.mubr.bf16.mxu0 0
    %363 = vmatmul.mubr.bf16.gmra.mrb[0].mxu0 %v320
    %v364 = vpop.f32.mrb[0].mxu0
    %v365 = vadd.f32 %v304, %v364
    %v366 = vpop.f32.mrb[0].mxu0
    %v367 = vpop.f32.mrb[0].mxu0
    %v368 = vadd.f32 %v307, %v367
    %v369 = vpop.f32.mrb[0].mxu0
    %370 = vdwg.mxu0
    %s371 = scalar_lea.vmem %s1, 32
    %v372 = vld [vmem:[%s371] sm:$0xf]
    %v373 = vld [vmem:[%s371 + $0x4] sm:$0xf]
    %v374 = vld [vmem:[%s371 + $0x8] sm:$0xf]
    %v375 = vld [vmem:[%s371 + $0xc] sm:$0xf]
    %v380 = vunpack.c.l.b16 %v372
    %v381 = vunpack.c.l.b16 %v373
    %v382 = vunpack.c.l.b16 %v374
    %v383 = vunpack.c.l.b16 %v375
    %v384 = vpack.c.b16 %v381, %v380
    %v385 = vpack.c.b16 %v383, %v382
    %388 = vmatprep.subr.bf16.mxu0 0
    %389 = vmatpush1.bf16.msra.mxu0 %v107
    %390 = vmatprep.subr.bf16.mxu0 0
    %391 = vmatpush1.bf16.msra.mxu0 %v108
    %392 = vmatprep.subr.bf16.mxu0 0
    %393 = vmatpush1.bf16.msra.mxu0 %v109
    %394 = vmatprep.subr.bf16.mxu0 0
    %395 = vmatpush1.bf16.msra.mxu0 %v110
    %396 = vmatprep.subr.bf16.mxu0 0
    %397 = vmatpush1.bf16.msra.mxu0 %v111
    %398 = vmatprep.subr.bf16.mxu0 0
    %399 = vmatpush1.bf16.msra.mxu0 %v112
    %400 = vmatprep.subr.bf16.mxu0 0
    %401 = vmatpush1.bf16.msra.mxu0 %v113
    %402 = vmatprep.subr.bf16.mxu0 0
    %403 = vmatpush1.bf16.msra.mxu0 %v114
    %404 = vmatprep.subr.bf16.mxu0 0
    %405 = vmatpush1.bf16.msra.mxu0 0
    %406 = vmatprep.subr.bf16.mxu0 0
    %407 = vmatpush1.bf16.msra.mxu0 0
    %408 = vmatprep.subr.bf16.mxu0 0
    %409 = vmatpush1.bf16.msra.mxu0 0
    %410 = vmatprep.subr.bf16.mxu0 0
    %411 = vmatpush1.bf16.msra.mxu0 0
    %412 = vmatprep.subr.bf16.mxu0 0
    %413 = vmatpush1.bf16.msra.mxu0 0
    %414 = vmatprep.subr.bf16.mxu0 0
    %415 = vmatpush1.bf16.msra.mxu0 0
    %416 = vmatprep.subr.bf16.mxu0 0
    %417 = vmatpush1.bf16.msra.mxu0 0
    %418 = vmatprep.subr.bf16.mxu0 0
    %419 = vmatpush1.bf16.msra.mxu0 0
    %420 = vmatprep.mubr.bf16.mxu0 0
    %421 = vmatmul.mubr.bf16.gmra.mrb[0].mxu0 %v384
    %v422 = vpop.f32.mrb[0].mxu0
    %v423 = vadd.f32 0.0, %v422
    %v424 = vpop.f32.mrb[0].mxu0
    %v425 = vpop.f32.mrb[0].mxu0
    %v426 = vadd.f32 0.0, %v425
    %v427 = vpop.f32.mrb[0].mxu0
    %428 = vmatprep.mubr.bf16.mxu0 0
    %429 = vmatmul.mubr.bf16.gmra.mrb[0].mxu0 %v385
    %v430 = vpop.f32.mrb[0].mxu0
    %v431 = vadd.f32 0.0, %v430
    %v432 = vpop.f32.mrb[0].mxu0
    %v433 = vpop.f32.mrb[0].mxu0
    %v434 = vadd.f32 0.0, %v433
    %v435 = vpop.f32.mrb[0].mxu0
    %436 = vdwg.mxu0
    %v437 = vpack.c.bf16 %v426, %v423
    %v438 = vpack.c.bf16 %v434, %v431
    %s439 = scalar_lea.vmem %s2, 56
    %v440 = vld [vmem:[%s439] sm:$0xf]
    %v441 = vld [vmem:[%s439 + $0x4] sm:$0xf]
    %v444 = vunpack.c.l.b16 %v440
    %v445 = vunpack.c.l.b16 %v441
    %v446 = vpack.c.b16 %v445, %v444
    %v449 = vsel %vm254, %v437, 0
    %v452 = vsel %vm254, %v438, 0
    %454 = vmatprep.subr.bf16.mxu0 0
    %455 = vmatpush1.bf16.msra.mxu0 %v446
    %456 = vmatprep.subr.bf16.mxu0 0
    %457 = vmatpush1.bf16.msra.mxu0 0
    %458 = vmatprep.subr.bf16.mxu0 0
    %459 = vmatpush1.bf16.msra.mxu0 0
    %460 = vmatprep.subr.bf16.mxu0 0
    %461 = vmatpush1.bf16.msra.mxu0 0
    %462 = vmatprep.subr.bf16.mxu0 0
    %463 = vmatpush1.bf16.msra.mxu0 0
    %464 = vmatprep.subr.bf16.mxu0 0
    %465 = vmatpush1.bf16.msra.mxu0 0
    %466 = vmatprep.subr.bf16.mxu0 0
    %467 = vmatpush1.bf16.msra.mxu0 0
    %468 = vmatprep.subr.bf16.mxu0 0
    %469 = vmatpush1.bf16.msra.mxu0 0
    %470 = vmatprep.subr.bf16.mxu0 0
    %471 = vmatpush1.bf16.msra.mxu0 0
    %472 = vmatprep.subr.bf16.mxu0 0
    %473 = vmatpush1.bf16.msra.mxu0 0
    %474 = vmatprep.subr.bf16.mxu0 0
    %475 = vmatpush1.bf16.msra.mxu0 0
    %476 = vmatprep.subr.bf16.mxu0 0
    %477 = vmatpush1.bf16.msra.mxu0 0
    %478 = vmatprep.subr.bf16.mxu0 0
    %479 = vmatpush1.bf16.msra.mxu0 0
    %480 = vmatprep.subr.bf16.mxu0 0
    %481 = vmatpush1.bf16.msra.mxu0 0
    %482 = vmatprep.subr.bf16.mxu0 0
    %483 = vmatpush1.bf16.msra.mxu0 0
    %484 = vmatprep.subr.bf16.mxu0 0
    %485 = vmatpush1.bf16.msra.mxu0 0
    %486 = vmatprep.mubr.bf16.mxu0 0
    %487 = vmatmul.mubr.bf16.gmra.mrb[0].mxu0 %v449
    %v488 = vpop.f32.mrb[0].mxu0
    %v489 = vadd.f32 0.0, %v488
    %v490 = vpop.f32.mrb[0].mxu0
    %v491 = vpop.f32.mrb[0].mxu0
    %v492 = vadd.f32 0.0, %v491
    %v493 = vpop.f32.mrb[0].mxu0
    %494 = vmatprep.mubr.bf16.mxu0 0
    %495 = vmatmul.mubr.bf16.gmra.mrb[0].mxu0 %v452
    %v496 = vpop.f32.mrb[0].mxu0
    %v497 = vadd.f32 0.0, %v496
    %v498 = vpop.f32.mrb[0].mxu0
    %v499 = vpop.f32.mrb[0].mxu0
    %v500 = vadd.f32 0.0, %v499
    %v501 = vpop.f32.mrb[0].mxu0
    %502 = vdwg.mxu0
    %v503 = vadd.f32 %v357, %v489
    %v504 = vadd.f32 %v360, %v492
    %v505 = vadd.f32 %v365, %v497
    %v506 = vadd.f32 %v368, %v500
    %s507 = scalar_lea.vmem %s1, 48
    %v508 = vld [vmem:[%s507] sm:$0xf]
    %v509 = vld [vmem:[%s507 + $0x4] sm:$0xf]
    %v510 = vld [vmem:[%s507 + $0x8] sm:$0xf]
    %v511 = vld [vmem:[%s507 + $0xc] sm:$0xf]
    %v516 = vunpack.c.l.b16 %v508
    %v517 = vunpack.c.l.b16 %v509
    %v518 = vunpack.c.l.b16 %v510
    %v519 = vunpack.c.l.b16 %v511
    %v520 = vpack.c.b16 %v517, %v516
    %v521 = vpack.c.b16 %v519, %v518
    %524 = vmatprep.subr.bf16.mxu0 0
    %525 = vmatpush1.bf16.msra.mxu0 %v107
    %526 = vmatprep.subr.bf16.mxu0 0
    %527 = vmatpush1.bf16.msra.mxu0 %v108
    %528 = vmatprep.subr.bf16.mxu0 0
    %529 = vmatpush1.bf16.msra.mxu0 %v109
    %530 = vmatprep.subr.bf16.mxu0 0
    %531 = vmatpush1.bf16.msra.mxu0 %v110
    %532 = vmatprep.subr.bf16.mxu0 0
    %533 = vmatpush1.bf16.msra.mxu0 %v111
    %534 = vmatprep.subr.bf16.mxu0 0
    %535 = vmatpush1.bf16.msra.mxu0 %v112
    %536 = vmatprep.subr.bf16.mxu0 0
    %537 = vmatpush1.bf16.msra.mxu0 %v113
    %538 = vmatprep.subr.bf16.mxu0 0
    %539 = vmatpush1.bf16.msra.mxu0 %v114
    %540 = vmatprep.subr.bf16.mxu0 0
    %541 = vmatpush1.bf16.msra.mxu0 0
    %542 = vmatprep.subr.bf16.mxu0 0
    %543 = vmatpush1.bf16.msra.mxu0 0
    %544 = vmatprep.subr.bf16.mxu0 0
    %545 = vmatpush1.bf16.msra.mxu0 0
    %546 = vmatprep.subr.bf16.mxu0 0
    %547 = vmatpush1.bf16.msra.mxu0 0
    %548 = vmatprep.subr.bf16.mxu0 0
    %549 = vmatpush1.bf16.msra.mxu0 0
    %550 = vmatprep.subr.bf16.mxu0 0
    %551 = vmatpush1.bf16.msra.mxu0 0
    %552 = vmatprep.subr.bf16.mxu0 0
    %553 = vmatpush1.bf16.msra.mxu0 0
    %554 = vmatprep.subr.bf16.mxu0 0
    %555 = vmatpush1.bf16.msra.mxu0 0
    %556 = vmatprep.mubr.bf16.mxu0 0
    %557 = vmatmul.mubr.bf16.gmra.mrb[0].mxu0 %v520
    %v558 = vpop.f32.mrb[0].mxu0
    %v559 = vadd.f32 0.0, %v558
    %v560 = vpop.f32.mrb[0].mxu0
    %v561 = vpop.f32.mrb[0].mxu0
    %v562 = vadd.f32 0.0, %v561
    %v563 = vpop.f32.mrb[0].mxu0
    %564 = vmatprep.mubr.bf16.mxu0 0
    %565 = vmatmul.mubr.bf16.gmra.mrb[0].mxu0 %v521
    %v566 = vpop.f32.mrb[0].mxu0
    %v567 = vadd.f32 0.0, %v566
    %v568 = vpop.f32.mrb[0].mxu0
    %v569 = vpop.f32.mrb[0].mxu0
    %v570 = vadd.f32 0.0, %v569
    %v571 = vpop.f32.mrb[0].mxu0
    %572 = vdwg.mxu0
    %v573 = vpack.c.bf16 %v562, %v559
    %v574 = vpack.c.bf16 %v570, %v567
    %s575 = scalar_lea.vmem %s2, 80
    %v576 = vld [vmem:[%s575] sm:$0xf]
    %v577 = vld [vmem:[%s575 + $0x4] sm:$0xf]
    %v580 = vunpack.c.l.b16 %v576
    %v581 = vunpack.c.l.b16 %v577
    %v582 = vpack.c.b16 %v581, %v580
    %v585 = vsel %vm254, %v573, 0
    %v588 = vsel %vm254, %v574, 0
    %590 = vmatprep.subr.bf16.mxu0 0
    %591 = vmatpush1.bf16.msra.mxu0 %v582
    %592 = vmatprep.subr.bf16.mxu0 0
    %593 = vmatpush1.bf16.msra.mxu0 0
    %594 = vmatprep.subr.bf16.mxu0 0
    %595 = vmatpush1.bf16.msra.mxu0 0
    %596 = vmatprep.subr.bf16.mxu0 0
    %597 = vmatpush1.bf16.msra.mxu0 0
    %598 = vmatprep.subr.bf16.mxu0 0
    %599 = vmatpush1.bf16.msra.mxu0 0
    %600 = vmatprep.subr.bf16.mxu0 0
    %601 = vmatpush1.bf16.msra.mxu0 0
    %602 = vmatprep.subr.bf16.mxu0 0
    %603 = vmatpush1.bf16.msra.mxu0 0
    %604 = vmatprep.subr.bf16.mxu0 0
    %605 = vmatpush1.bf16.msra.mxu0 0
    %606 = vmatprep.subr.bf16.mxu0 0
    %607 = vmatpush1.bf16.msra.mxu0 0
    %608 = vmatprep.subr.bf16.mxu0 0
    %609 = vmatpush1.bf16.msra.mxu0 0
    %610 = vmatprep.subr.bf16.mxu0 0
    %611 = vmatpush1.bf16.msra.mxu0 0
    %612 = vmatprep.subr.bf16.mxu0 0
    %613 = vmatpush1.bf16.msra.mxu0 0
    %614 = vmatprep.subr.bf16.mxu0 0
    %615 = vmatpush1.bf16.msra.mxu0 0
    %616 = vmatprep.subr.bf16.mxu0 0
    %617 = vmatpush1.bf16.msra.mxu0 0
    %618 = vmatprep.subr.bf16.mxu0 0
    %619 = vmatpush1.bf16.msra.mxu0 0
    %620 = vmatprep.subr.bf16.mxu0 0
    %621 = vmatpush1.bf16.msra.mxu0 0
    %622 = vmatprep.mubr.bf16.mxu0 0
    %623 = vmatmul.mubr.bf16.gmra.mrb[0].mxu0 %v585
    %v624 = vpop.f32.mrb[0].mxu0
    %v625 = vadd.f32 0.0, %v624
    %v626 = vpop.f32.mrb[0].mxu0
    %v627 = vpop.f32.mrb[0].mxu0
    %v628 = vadd.f32 0.0, %v627
    %v629 = vpop.f32.mrb[0].mxu0
    %630 = vmatprep.mubr.bf16.mxu0 0
    %631 = vmatmul.mubr.bf16.gmra.mrb[0].mxu0 %v588
    %v632 = vpop.f32.mrb[0].mxu0
    %v633 = vadd.f32 0.0, %v632
    %v634 = vpop.f32.mrb[0].mxu0
    %v635 = vpop.f32.mrb[0].mxu0
    %v636 = vadd.f32 0.0, %v635
    %v637 = vpop.f32.mrb[0].mxu0
    %638 = vdwg.mxu0
    %v639 = vadd.f32 %v503, %v625
    %v640 = vadd.f32 %v504, %v628
    %v641 = vadd.f32 %v505, %v633
    %v642 = vadd.f32 %v506, %v636
    %s643 = scalar_lea.vmem %s1, 64
    %v644 = vld [vmem:[%s643] sm:$0xf]
    %v645 = vld [vmem:[%s643 + $0x4] sm:$0xf]
    %v646 = vld [vmem:[%s643 + $0x8] sm:$0xf]
    %v647 = vld [vmem:[%s643 + $0xc] sm:$0xf]
    %v652 = vunpack.c.l.b16 %v644
    %v653 = vunpack.c.l.b16 %v645
    %v654 = vunpack.c.l.b16 %v646
    %v655 = vunpack.c.l.b16 %v647
    %v656 = vpack.c.b16 %v653, %v652
    %v657 = vpack.c.b16 %v655, %v654
    %660 = vmatprep.subr.bf16.mxu0 0
    %661 = vmatpush1.bf16.msra.mxu0 %v107
    %662 = vmatprep.subr.bf16.mxu0 0
    %663 = vmatpush1.bf16.msra.mxu0 %v108
    %664 = vmatprep.subr.bf16.mxu0 0
    %665 = vmatpush1.bf16.msra.mxu0 %v109
    %666 = vmatprep.subr.bf16.mxu0 0
    %667 = vmatpush1.bf16.msra.mxu0 %v110
    %668 = vmatprep.subr.bf16.mxu0 0
    %669 = vmatpush1.bf16.msra.mxu0 %v111
    %670 = vmatprep.subr.bf16.mxu0 0
    %671 = vmatpush1.bf16.msra.mxu0 %v112
    %672 = vmatprep.subr.bf16.mxu0 0
    %673 = vmatpush1.bf16.msra.mxu0 %v113
    %674 = vmatprep.subr.bf16.mxu0 0
    %675 = vmatpush1.bf16.msra.mxu0 %v114
    %676 = vmatprep.subr.bf16.mxu0 0
    %677 = vmatpush1.bf16.msra.mxu0 0
    %678 = vmatprep.subr.bf16.mxu0 0
    %679 = vmatpush1.bf16.msra.mxu0 0
    %680 = vmatprep.subr.bf16.mxu0 0
    %681 = vmatpush1.bf16.msra.mxu0 0
    %682 = vmatprep.subr.bf16.mxu0 0
    %683 = vmatpush1.bf16.msra.mxu0 0
    %684 = vmatprep.subr.bf16.mxu0 0
    %685 = vmatpush1.bf16.msra.mxu0 0
    %686 = vmatprep.subr.bf16.mxu0 0
    %687 = vmatpush1.bf16.msra.mxu0 0
    %688 = vmatprep.subr.bf16.mxu0 0
    %689 = vmatpush1.bf16.msra.mxu0 0
    %690 = vmatprep.subr.bf16.mxu0 0
    %691 = vmatpush1.bf16.msra.mxu0 0
    %692 = vmatprep.mubr.bf16.mxu0 0
    %693 = vmatmul.mubr.bf16.gmra.mrb[0].mxu0 %v656
    %v694 = vpop.f32.mrb[0].mxu0
    %v695 = vadd.f32 0.0, %v694
    %v696 = vpop.f32.mrb[0].mxu0
    %v697 = vpop.f32.mrb[0].mxu0
    %v698 = vadd.f32 0.0, %v697
    %v699 = vpop.f32.mrb[0].mxu0
    %700 = vmatprep.mubr.bf16.mxu0 0
    %701 = vmatmul.mubr.bf16.gmra.mrb[0].mxu0 %v657
    %v702 = vpop.f32.mrb[0].mxu0
    %v703 = vadd.f32 0.0, %v702
    %v704 = vpop.f32.mrb[0].mxu0
    %v705 = vpop.f32.mrb[0].mxu0
    %v706 = vadd.f32 0.0, %v705
    %v707 = vpop.f32.mrb[0].mxu0
    %708 = vdwg.mxu0
    %v709 = vpack.c.bf16 %v698, %v695
    %v710 = vpack.c.bf16 %v706, %v703
    %s711 = scalar_lea.vmem %s2, 104
    %v712 = vld [vmem:[%s711] sm:$0xf]
    %v713 = vld [vmem:[%s711 + $0x4] sm:$0xf]
    %v716 = vunpack.c.l.b16 %v712
    %v717 = vunpack.c.l.b16 %v713
    %v718 = vpack.c.b16 %v717, %v716
    %v721 = vsel %vm254, %v709, 0
    %v724 = vsel %vm254, %v710, 0
    %726 = vmatprep.subr.bf16.mxu0 0
    %727 = vmatpush1.bf16.msra.mxu0 %v718
    %728 = vmatprep.subr.bf16.mxu0 0
    %729 = vmatpush1.bf16.msra.mxu0 0
    %730 = vmatprep.subr.bf16.mxu0 0
    %731 = vmatpush1.bf16.msra.mxu0 0
    %732 = vmatprep.subr.bf16.mxu0 0
    %733 = vmatpush1.bf16.msra.mxu0 0
    %734 = vmatprep.subr.bf16.mxu0 0
    %735 = vmatpush1.bf16.msra.mxu0 0
    %736 = vmatprep.subr.bf16.mxu0 0
    %737 = vmatpush1.bf16.msra.mxu0 0
    %738 = vmatprep.subr.bf16.mxu0 0
    %739 = vmatpush1.bf16.msra.mxu0 0
    %740 = vmatprep.subr.bf16.mxu0 0
    %741 = vmatpush1.bf16.msra.mxu0 0
    %742 = vmatprep.subr.bf16.mxu0 0
    %743 = vmatpush1.bf16.msra.mxu0 0
    %744 = vmatprep.subr.bf16.mxu0 0
    %745 = vmatpush1.bf16.msra.mxu0 0
    %746 = vmatprep.subr.bf16.mxu0 0
    %747 = vmatpush1.bf16.msra.mxu0 0
    %748 = vmatprep.subr.bf16.mxu0 0
    %749 = vmatpush1.bf16.msra.mxu0 0
    %750 = vmatprep.subr.bf16.mxu0 0
    %751 = vmatpush1.bf16.msra.mxu0 0
    %752 = vmatprep.subr.bf16.mxu0 0
    %753 = vmatpush1.bf16.msra.mxu0 0
    %754 = vmatprep.subr.bf16.mxu0 0
    %755 = vmatpush1.bf16.msra.mxu0 0
    %756 = vmatprep.subr.bf16.mxu0 0
    %757 = vmatpush1.bf16.msra.mxu0 0
    %758 = vmatprep.mubr.bf16.mxu0 0
    %759 = vmatmul.mubr.bf16.gmra.mrb[0].mxu0 %v721
    %v760 = vpop.f32.mrb[0].mxu0
    %v761 = vadd.f32 0.0, %v760
    %v762 = vpop.f32.mrb[0].mxu0
    %v763 = vpop.f32.mrb[0].mxu0
    %v764 = vadd.f32 0.0, %v763
    %v765 = vpop.f32.mrb[0].mxu0
    %766 = vmatprep.mubr.bf16.mxu0 0
    %767 = vmatmul.mubr.bf16.gmra.mrb[0].mxu0 %v724
    %v768 = vpop.f32.mrb[0].mxu0
    %v769 = vadd.f32 0.0, %v768
    %v770 = vpop.f32.mrb[0].mxu0
    %v771 = vpop.f32.mrb[0].mxu0
    %v772 = vadd.f32 0.0, %v771
    %v773 = vpop.f32.mrb[0].mxu0
    %774 = vdwg.mxu0
    %v775 = vadd.f32 %v639, %v761
    %v776 = vadd.f32 %v640, %v764
    %v777 = vadd.f32 %v641, %v769
    %v778 = vadd.f32 %v642, %v772
    %s779 = scalar_lea.vmem %s1, 80
    %v780 = vld [vmem:[%s779] sm:$0xf]
    %v781 = vld [vmem:[%s779 + $0x4] sm:$0xf]
    %v782 = vld [vmem:[%s779 + $0x8] sm:$0xf]
    %v783 = vld [vmem:[%s779 + $0xc] sm:$0xf]
    %v788 = vunpack.c.l.b16 %v780
    %v789 = vunpack.c.l.b16 %v781
    %v790 = vunpack.c.l.b16 %v782
    %v791 = vunpack.c.l.b16 %v783
    %v792 = vpack.c.b16 %v789, %v788
    %v793 = vpack.c.b16 %v791, %v790
    %796 = vmatprep.subr.bf16.mxu0 0
    %797 = vmatpush1.bf16.msra.mxu0 %v107
    %798 = vmatprep.subr.bf16.mxu0 0
    %799 = vmatpush1.bf16.msra.mxu0 %v108
    %800 = vmatprep.subr.bf16.mxu0 0
    %801 = vmatpush1.bf16.msra.mxu0 %v109
    %802 = vmatprep.subr.bf16.mxu0 0
    %803 = vmatpush1.bf16.msra.mxu0 %v110
    %804 = vmatprep.subr.bf16.mxu0 0
    %805 = vmatpush1.bf16.msra.mxu0 %v111
    %806 = vmatprep.subr.bf16.mxu0 0
    %807 = vmatpush1.bf16.msra.mxu0 %v112
    %808 = vmatprep.subr.bf16.mxu0 0
    %809 = vmatpush1.bf16.msra.mxu0 %v113
    %810 = vmatprep.subr.bf16.mxu0 0
    %811 = vmatpush1.bf16.msra.mxu0 %v114
    %812 = vmatprep.subr.bf16.mxu0 0
    %813 = vmatpush1.bf16.msra.mxu0 0
    %814 = vmatprep.subr.bf16.mxu0 0
    %815 = vmatpush1.bf16.msra.mxu0 0
    %816 = vmatprep.subr.bf16.mxu0 0
    %817 = vmatpush1.bf16.msra.mxu0 0
    %818 = vmatprep.subr.bf16.mxu0 0
    %819 = vmatpush1.bf16.msra.mxu0 0
    %820 = vmatprep.subr.bf16.mxu0 0
    %821 = vmatpush1.bf16.msra.mxu0 0
    %822 = vmatprep.subr.bf16.mxu0 0
    %823 = vmatpush1.bf16.msra.mxu0 0
    %824 = vmatprep.subr.bf16.mxu0 0
    %825 = vmatpush1.bf16.msra.mxu0 0
    %826 = vmatprep.subr.bf16.mxu0 0
    %827 = vmatpush1.bf16.msra.mxu0 0
    %828 = vmatprep.mubr.bf16.mxu0 0
    %829 = vmatmul.mubr.bf16.gmra.mrb[0].mxu0 %v792
    %v830 = vpop.f32.mrb[0].mxu0
    %v831 = vadd.f32 0.0, %v830
    %v832 = vpop.f32.mrb[0].mxu0
    %v833 = vpop.f32.mrb[0].mxu0
    %v834 = vadd.f32 0.0, %v833
    %v835 = vpop.f32.mrb[0].mxu0
    %836 = vmatprep.mubr.bf16.mxu0 0
    %837 = vmatmul.mubr.bf16.gmra.mrb[0].mxu0 %v793
    %v838 = vpop.f32.mrb[0].mxu0
    %v839 = vadd.f32 0.0, %v838
    %v840 = vpop.f32.mrb[0].mxu0
    %v841 = vpop.f32.mrb[0].mxu0
    %v842 = vadd.f32 0.0, %v841
    %v843 = vpop.f32.mrb[0].mxu0
    %844 = vdwg.mxu0
    %v845 = vpack.c.bf16 %v834, %v831
    %v846 = vpack.c.bf16 %v842, %v839
    %s847 = scalar_lea.vmem %s2, 128
    %v848 = vld [vmem:[%s847] sm:$0xf]
    %v849 = vld [vmem:[%s847 + $0x4] sm:$0xf]
    %v852 = vunpack.c.l.b16 %v848
    %v853 = vunpack.c.l.b16 %v849
    %v854 = vpack.c.b16 %v853, %v852
    %v857 = vsel %vm254, %v845, 0
    %v860 = vsel %vm254, %v846, 0
    %862 = vmatprep.subr.bf16.mxu0 0
    %863 = vmatpush1.bf16.msra.mxu0 %v854
    %864 = vmatprep.subr.bf16.mxu0 0
    %865 = vmatpush1.bf16.msra.mxu0 0
    %866 = vmatprep.subr.bf16.mxu0 0
    %867 = vmatpush1.bf16.msra.mxu0 0
    %868 = vmatprep.subr.bf16.mxu0 0
    %869 = vmatpush1.bf16.msra.mxu0 0
    %870 = vmatprep.subr.bf16.mxu0 0
    %871 = vmatpush1.bf16.msra.mxu0 0
    %872 = vmatprep.subr.bf16.mxu0 0
    %873 = vmatpush1.bf16.msra.mxu0 0
    %874 = vmatprep.subr.bf16.mxu0 0
    %875 = vmatpush1.bf16.msra.mxu0 0
    %876 = vmatprep.subr.bf16.mxu0 0
    %877 = vmatpush1.bf16.msra.mxu0 0
    %878 = vmatprep.subr.bf16.mxu0 0
    %879 = vmatpush1.bf16.msra.mxu0 0
    %880 = vmatprep.subr.bf16.mxu0 0
    %881 = vmatpush1.bf16.msra.mxu0 0
    %882 = vmatprep.subr.bf16.mxu0 0
    %883 = vmatpush1.bf16.msra.mxu0 0
    %884 = vmatprep.subr.bf16.mxu0 0
    %885 = vmatpush1.bf16.msra.mxu0 0
    %886 = vmatprep.subr.bf16.mxu0 0
    %887 = vmatpush1.bf16.msra.mxu0 0
    %888 = vmatprep.subr.bf16.mxu0 0
    %889 = vmatpush1.bf16.msra.mxu0 0
    %890 = vmatprep.subr.bf16.mxu0 0
    %891 = vmatpush1.bf16.msra.mxu0 0
    %892 = vmatprep.subr.bf16.mxu0 0
    %893 = vmatpush1.bf16.msra.mxu0 0
    %894 = vmatprep.mubr.bf16.mxu0 0
    %895 = vmatmul.mubr.bf16.gmra.mrb[0].mxu0 %v857
    %v896 = vpop.f32.mrb[0].mxu0
    %v897 = vadd.f32 0.0, %v896
    %v898 = vpop.f32.mrb[0].mxu0
    %v899 = vpop.f32.mrb[0].mxu0
    %v900 = vadd.f32 0.0, %v899
    %v901 = vpop.f32.mrb[0].mxu0
    %902 = vmatprep.mubr.bf16.mxu0 0
    %903 = vmatmul.mubr.bf16.gmra.mrb[0].mxu0 %v860
    %v904 = vpop.f32.mrb[0].mxu0
    %v905 = vadd.f32 0.0, %v904
    %v906 = vpop.f32.mrb[0].mxu0
    %v907 = vpop.f32.mrb[0].mxu0
    %v908 = vadd.f32 0.0, %v907
    %v909 = vpop.f32.mrb[0].mxu0
    %910 = vdwg.mxu0
    %v911 = vadd.f32 %v775, %v897
    %v912 = vadd.f32 %v776, %v900
    %v913 = vadd.f32 %v777, %v905
    %v914 = vadd.f32 %v778, %v908
    %s915 = scalar_lea.vmem %s1, 96
    %v916 = vld [vmem:[%s915] sm:$0xf]
    %v917 = vld [vmem:[%s915 + $0x4] sm:$0xf]
    %v918 = vld [vmem:[%s915 + $0x8] sm:$0xf]
    %v919 = vld [vmem:[%s915 + $0xc] sm:$0xf]
    %v924 = vunpack.c.l.b16 %v916
    %v925 = vunpack.c.l.b16 %v917
    %v926 = vunpack.c.l.b16 %v918
    %v927 = vunpack.c.l.b16 %v919
    %v928 = vpack.c.b16 %v925, %v924
    %v929 = vpack.c.b16 %v927, %v926
    %932 = vmatprep.subr.bf16.mxu0 0
    %933 = vmatpush1.bf16.msra.mxu0 %v107
    %934 = vmatprep.subr.bf16.mxu0 0
    %935 = vmatpush1.bf16.msra.mxu0 %v108
    %936 = vmatprep.subr.bf16.mxu0 0
    %937 = vmatpush1.bf16.msra.mxu0 %v109
    %938 = vmatprep.subr.bf16.mxu0 0
    %939 = vmatpush1.bf16.msra.mxu0 %v110
    %940 = vmatprep.subr.bf16.mxu0 0
    %941 = vmatpush1.bf16.msra.mxu0 %v111
    %942 = vmatprep.subr.bf16.mxu0 0
    %943 = vmatpush1.bf16.msra.mxu0 %v112
    %944 = vmatprep.subr.bf16.mxu0 0
    %945 = vmatpush1.bf16.msra.mxu0 %v113
    %946 = vmatprep.subr.bf16.mxu0 0
    %947 = vmatpush1.bf16.msra.mxu0 %v114
    %948 = vmatprep.subr.bf16.mxu0 0
    %949 = vmatpush1.bf16.msra.mxu0 0
    %950 = vmatprep.subr.bf16.mxu0 0
    %951 = vmatpush1.bf16.msra.mxu0 0
    %952 = vmatprep.subr.bf16.mxu0 0
    %953 = vmatpush1.bf16.msra.mxu0 0
    %954 = vmatprep.subr.bf16.mxu0 0
    %955 = vmatpush1.bf16.msra.mxu0 0
    %956 = vmatprep.subr.bf16.mxu0 0
    %957 = vmatpush1.bf16.msra.mxu0 0
    %958 = vmatprep.subr.bf16.mxu0 0
    %959 = vmatpush1.bf16.msra.mxu0 0
    %960 = vmatprep.subr.bf16.mxu0 0
    %961 = vmatpush1.bf16.msra.mxu0 0
    %962 = vmatprep.subr.bf16.mxu0 0
    %963 = vmatpush1.bf16.msra.mxu0 0
    %964 = vmatprep.mubr.bf16.mxu0 0
    %965 = vmatmul.mubr.bf16.gmra.mrb[0].mxu0 %v928
    %v966 = vpop.f32.mrb[0].mxu0
    %v967 = vadd.f32 0.0, %v966
    %v968 = vpop.f32.mrb[0].mxu0
    %v969 = vpop.f32.mrb[0].mxu0
    %v970 = vadd.f32 0.0, %v969
    %v971 = vpop.f32.mrb[0].mxu0
    %972 = vmatprep.mubr.bf16.mxu0 0
    %973 = vmatmul.mubr.bf16.gmra.mrb[0].mxu0 %v929
    %v974 = vpop.f32.mrb[0].mxu0
    %v975 = vadd.f32 0.0, %v974
    %v976 = vpop.f32.mrb[0].mxu0
    %v977 = vpop.f32.mrb[0].mxu0
    %v978 = vadd.f32 0.0, %v977
    %v979 = vpop.f32.mrb[0].mxu0
    %980 = vdwg.mxu0
    %v981 = vpack.c.bf16 %v970, %v967
    %v982 = vpack.c.bf16 %v978, %v975
    %s983 = scalar_lea.vmem %s2, 152
    %v984 = vld [vmem:[%s983] sm:$0xf]
    %v985 = vld [vmem:[%s983 + $0x4] sm:$0xf]
    %v988 = vunpack.c.l.b16 %v984
    %v989 = vunpack.c.l.b16 %v985
    %v990 = vpack.c.b16 %v989, %v988
    %v993 = vsel %vm254, %v981, 0
    %v996 = vsel %vm254, %v982, 0
    %998 = vmatprep.subr.bf16.mxu0 0
    %999 = vmatpush1.bf16.msra.mxu0 %v990
    %1000 = vmatprep.subr.bf16.mxu0 0
    %1001 = vmatpush1.bf16.msra.mxu0 0
    %1002 = vmatprep.subr.bf16.mxu0 0
    %1003 = vmatpush1.bf16.msra.mxu0 0
    %1004 = vmatprep.subr.bf16.mxu0 0
    %1005 = vmatpush1.bf16.msra.mxu0 0
    %1006 = vmatprep.subr.bf16.mxu0 0
    %1007 = vmatpush1.bf16.msra.mxu0 0
    %1008 = vmatprep.subr.bf16.mxu0 0
    %1009 = vmatpush1.bf16.msra.mxu0 0
    %1010 = vmatprep.subr.bf16.mxu0 0
    %1011 = vmatpush1.bf16.msra.mxu0 0
    %1012 = vmatprep.subr.bf16.mxu0 0
    %1013 = vmatpush1.bf16.msra.mxu0 0
    %1014 = vmatprep.subr.bf16.mxu0 0
    %1015 = vmatpush1.bf16.msra.mxu0 0
    %1016 = vmatprep.subr.bf16.mxu0 0
    %1017 = vmatpush1.bf16.msra.mxu0 0
    %1018 = vmatprep.subr.bf16.mxu0 0
    %1019 = vmatpush1.bf16.msra.mxu0 0
    %1020 = vmatprep.subr.bf16.mxu0 0
    %1021 = vmatpush1.bf16.msra.mxu0 0
    %1022 = vmatprep.subr.bf16.mxu0 0
    %1023 = vmatpush1.bf16.msra.mxu0 0
    %1024 = vmatprep.subr.bf16.mxu0 0
    %1025 = vmatpush1.bf16.msra.mxu0 0
    %1026 = vmatprep.subr.bf16.mxu0 0
    %1027 = vmatpush1.bf16.msra.mxu0 0
    %1028 = vmatprep.subr.bf16.mxu0 0
    %1029 = vmatpush1.bf16.msra.mxu0 0
    %1030 = vmatprep.mubr.bf16.mxu0 0
    %1031 = vmatmul.mubr.bf16.gmra.mrb[0].mxu0 %v993
    %v1032 = vpop.f32.mrb[0].mxu0
    %v1033 = vadd.f32 0.0, %v1032
    %v1034 = vpop.f32.mrb[0].mxu0
    %v1035 = vpop.f32.mrb[0].mxu0
    %v1036 = vadd.f32 0.0, %v1035
    %v1037 = vpop.f32.mrb[0].mxu0
    %1038 = vmatprep.mubr.bf16.mxu0 0
    %1039 = vmatmul.mubr.bf16.gmra.mrb[0].mxu0 %v996
    %v1040 = vpop.f32.mrb[0].mxu0
    %v1041 = vadd.f32 0.0, %v1040
    %v1042 = vpop.f32.mrb[0].mxu0
    %v1043 = vpop.f32.mrb[0].mxu0
    %v1044 = vadd.f32 0.0, %v1043
    %v1045 = vpop.f32.mrb[0].mxu0
    %1046 = vdwg.mxu0
    %v1047 = vadd.f32 %v911, %v1033
    %v1048 = vadd.f32 %v912, %v1036
    %v1049 = vadd.f32 %v913, %v1041
    %v1050 = vadd.f32 %v914, %v1044
    %s1051 = scalar_lea.vmem %s1, 112
    %v1052 = vld [vmem:[%s1051] sm:$0xf]
    %v1053 = vld [vmem:[%s1051 + $0x4] sm:$0xf]
    %v1054 = vld [vmem:[%s1051 + $0x8] sm:$0xf]
    %v1055 = vld [vmem:[%s1051 + $0xc] sm:$0xf]
    %v1060 = vunpack.c.l.b16 %v1052
    %v1061 = vunpack.c.l.b16 %v1053
    %v1062 = vunpack.c.l.b16 %v1054
    %v1063 = vunpack.c.l.b16 %v1055
    %v1064 = vpack.c.b16 %v1061, %v1060
    %v1065 = vpack.c.b16 %v1063, %v1062
    %1068 = vmatprep.subr.bf16.mxu0 0
    %1069 = vmatpush1.bf16.msra.mxu0 %v107
    %1070 = vmatprep.subr.bf16.mxu0 0
    %1071 = vmatpush1.bf16.msra.mxu0 %v108
    %1072 = vmatprep.subr.bf16.mxu0 0
    %1073 = vmatpush1.bf16.msra.mxu0 %v109
    %1074 = vmatprep.subr.bf16.mxu0 0
    %1075 = vmatpush1.bf16.msra.mxu0 %v110
    %1076 = vmatprep.subr.bf16.mxu0 0
    %1077 = vmatpush1.bf16.msra.mxu0 %v111
    %1078 = vmatprep.subr.bf16.mxu0 0
    %1079 = vmatpush1.bf16.msra.mxu0 %v112
    %1080 = vmatprep.subr.bf16.mxu0 0
    %1081 = vmatpush1.bf16.msra.mxu0 %v113
    %1082 = vmatprep.subr.bf16.mxu0 0
    %1083 = vmatpush1.bf16.msra.mxu0 %v114
    %1084 = vmatprep.subr.bf16.mxu0 0
    %1085 = vmatpush1.bf16.msra.mxu0 0
    %1086 = vmatprep.subr.bf16.mxu0 0
    %1087 = vmatpush1.bf16.msra.mxu0 0
    %1088 = vmatprep.subr.bf16.mxu0 0
    %1089 = vmatpush1.bf16.msra.mxu0 0
    %1090 = vmatprep.subr.bf16.mxu0 0
    %1091 = vmatpush1.bf16.msra.mxu0 0
    %1092 = vmatprep.subr.bf16.mxu0 0
    %1093 = vmatpush1.bf16.msra.mxu0 0
    %1094 = vmatprep.subr.bf16.mxu0 0
    %1095 = vmatpush1.bf16.msra.mxu0 0
    %1096 = vmatprep.subr.bf16.mxu0 0
    %1097 = vmatpush1.bf16.msra.mxu0 0
    %1098 = vmatprep.subr.bf16.mxu0 0
    %1099 = vmatpush1.bf16.msra.mxu0 0
    %1100 = vmatprep.mubr.bf16.mxu0 0
    %1101 = vmatmul.mubr.bf16.gmra.mrb[0].mxu0 %v1064
    %v1102 = vpop.f32.mrb[0].mxu0
    %v1103 = vadd.f32 0.0, %v1102
    %v1104 = vpop.f32.mrb[0].mxu0
    %v1105 = vpop.f32.mrb[0].mxu0
    %v1106 = vadd.f32 0.0, %v1105
    %v1107 = vpop.f32.mrb[0].mxu0
    %1108 = vmatprep.mubr.bf16.mxu0 0
    %1109 = vmatmul.mubr.bf16.gmra.mrb[0].mxu0 %v1065
    %v1110 = vpop.f32.mrb[0].mxu0
    %v1111 = vadd.f32 0.0, %v1110
    %v1112 = vpop.f32.mrb[0].mxu0
    %v1113 = vpop.f32.mrb[0].mxu0
    %v1114 = vadd.f32 0.0, %v1113
    %v1115 = vpop.f32.mrb[0].mxu0
    %1116 = vdwg.mxu0
    %v1117 = vpack.c.bf16 %v1106, %v1103
    %v1118 = vpack.c.bf16 %v1114, %v1111
    %s1119 = scalar_lea.vmem %s2, 176
    %v1120 = vld [vmem:[%s1119] sm:$0xf]
    %v1121 = vld [vmem:[%s1119 + $0x4] sm:$0xf]
    %v1124 = vunpack.c.l.b16 %v1120
    %v1125 = vunpack.c.l.b16 %v1121
    %v1126 = vpack.c.b16 %v1125, %v1124
    %v1129 = vsel %vm254, %v1117, 0
    %v1132 = vsel %vm254, %v1118, 0
    %1134 = vmatprep.subr.bf16.mxu0 0
    %1135 = vmatpush1.bf16.msra.mxu0 %v1126
    %1136 = vmatprep.subr.bf16.mxu0 0
    %1137 = vmatpush1.bf16.msra.mxu0 0
    %1138 = vmatprep.subr.bf16.mxu0 0
    %1139 = vmatpush1.bf16.msra.mxu0 0
    %1140 = vmatprep.subr.bf16.mxu0 0
    %1141 = vmatpush1.bf16.msra.mxu0 0
    %1142 = vmatprep.subr.bf16.mxu0 0
    %1143 = vmatpush1.bf16.msra.mxu0 0
    %1144 = vmatprep.subr.bf16.mxu0 0
    %1145 = vmatpush1.bf16.msra.mxu0 0
    %1146 = vmatprep.subr.bf16.mxu0 0
    %1147 = vmatpush1.bf16.msra.mxu0 0
    %1148 = vmatprep.subr.bf16.mxu0 0
    %1149 = vmatpush1.bf16.msra.mxu0 0
    %1150 = vmatprep.subr.bf16.mxu0 0
    %1151 = vmatpush1.bf16.msra.mxu0 0
    %1152 = vmatprep.subr.bf16.mxu0 0
    %1153 = vmatpush1.bf16.msra.mxu0 0
    %1154 = vmatprep.subr.bf16.mxu0 0
    %1155 = vmatpush1.bf16.msra.mxu0 0
    %1156 = vmatprep.subr.bf16.mxu0 0
    %1157 = vmatpush1.bf16.msra.mxu0 0
    %1158 = vmatprep.subr.bf16.mxu0 0
    %1159 = vmatpush1.bf16.msra.mxu0 0
    %1160 = vmatprep.subr.bf16.mxu0 0
    %1161 = vmatpush1.bf16.msra.mxu0 0
    %1162 = vmatprep.subr.bf16.mxu0 0
    %1163 = vmatpush1.bf16.msra.mxu0 0
    %1164 = vmatprep.subr.bf16.mxu0 0
    %1165 = vmatpush1.bf16.msra.mxu0 0
    %1166 = vmatprep.mubr.bf16.mxu0 0
    %1167 = vmatmul.mubr.bf16.gmra.mrb[0].mxu0 %v1129
    %v1168 = vpop.f32.mrb[0].mxu0
    %v1169 = vadd.f32 0.0, %v1168
    %v1170 = vpop.f32.mrb[0].mxu0
    %v1171 = vpop.f32.mrb[0].mxu0
    %v1172 = vadd.f32 0.0, %v1171
    %v1173 = vpop.f32.mrb[0].mxu0
    %1174 = vmatprep.mubr.bf16.mxu0 0
    %1175 = vmatmul.mubr.bf16.gmra.mrb[0].mxu0 %v1132
    %v1176 = vpop.f32.mrb[0].mxu0
    %v1177 = vadd.f32 0.0, %v1176
    %v1178 = vpop.f32.mrb[0].mxu0
    %v1179 = vpop.f32.mrb[0].mxu0
    %v1180 = vadd.f32 0.0, %v1179
    %v1181 = vpop.f32.mrb[0].mxu0
    %1182 = vdwg.mxu0
    %v1183 = vadd.f32 %v1047, %v1169
    %v1184 = vadd.f32 %v1048, %v1172
    %v1185 = vadd.f32 %v1049, %v1177
    %v1186 = vadd.f32 %v1050, %v1180
    %s1187 = scalar_lea.vmem %s1, 128
    %v1188 = vld [vmem:[%s1187] sm:$0xf]
    %v1189 = vld [vmem:[%s1187 + $0x4] sm:$0xf]
    %v1190 = vld [vmem:[%s1187 + $0x8] sm:$0xf]
    %v1191 = vld [vmem:[%s1187 + $0xc] sm:$0xf]
    %v1196 = vunpack.c.l.b16 %v1188
    %v1197 = vunpack.c.l.b16 %v1189
    %v1198 = vunpack.c.l.b16 %v1190
    %v1199 = vunpack.c.l.b16 %v1191
    %v1200 = vpack.c.b16 %v1197, %v1196
    %v1201 = vpack.c.b16 %v1199, %v1198
    %1204 = vmatprep.subr.bf16.mxu0 0
    %1205 = vmatpush1.bf16.msra.mxu0 %v107
    %1206 = vmatprep.subr.bf16.mxu0 0
    %1207 = vmatpush1.bf16.msra.mxu0 %v108
    %1208 = vmatprep.subr.bf16.mxu0 0
    %1209 = vmatpush1.bf16.msra.mxu0 %v109
    %1210 = vmatprep.subr.bf16.mxu0 0
    %1211 = vmatpush1.bf16.msra.mxu0 %v110
    %1212 = vmatprep.subr.bf16.mxu0 0
    %1213 = vmatpush1.bf16.msra.mxu0 %v111
    %1214 = vmatprep.subr.bf16.mxu0 0
    %1215 = vmatpush1.bf16.msra.mxu0 %v112
    %1216 = vmatprep.subr.bf16.mxu0 0
    %1217 = vmatpush1.bf16.msra.mxu0 %v113
    %1218 = vmatprep.subr.bf16.mxu0 0
    %1219 = vmatpush1.bf16.msra.mxu0 %v114
    %1220 = vmatprep.subr.bf16.mxu0 0
    %1221 = vmatpush1.bf16.msra.mxu0 0
    %1222 = vmatprep.subr.bf16.mxu0 0
    %1223 = vmatpush1.bf16.msra.mxu0 0
    %1224 = vmatprep.subr.bf16.mxu0 0
    %1225 = vmatpush1.bf16.msra.mxu0 0
    %1226 = vmatprep.subr.bf16.mxu0 0
    %1227 = vmatpush1.bf16.msra.mxu0 0
    %1228 = vmatprep.subr.bf16.mxu0 0
    %1229 = vmatpush1.bf16.msra.mxu0 0
    %1230 = vmatprep.subr.bf16.mxu0 0
    %1231 = vmatpush1.bf16.msra.mxu0 0
    %1232 = vmatprep.subr.bf16.mxu0 0
    %1233 = vmatpush1.bf16.msra.mxu0 0
    %1234 = vmatprep.subr.bf16.mxu0 0
    %1235 = vmatpush1.bf16.msra.mxu0 0
    %1236 = vmatprep.mubr.bf16.mxu0 0
    %1237 = vmatmul.mubr.bf16.gmra.mrb[0].mxu0 %v1200
    %v1238 = vpop.f32.mrb[0].mxu0
    %v1239 = vadd.f32 0.0, %v1238
    %v1240 = vpop.f32.mrb[0].mxu0
    %v1241 = vpop.f32.mrb[0].mxu0
    %v1242 = vadd.f32 0.0, %v1241
    %v1243 = vpop.f32.mrb[0].mxu0
    %1244 = vmatprep.mubr.bf16.mxu0 0
    %1245 = vmatmul.mubr.bf16.gmra.mrb[0].mxu0 %v1201
    %v1246 = vpop.f32.mrb[0].mxu0
    %v1247 = vadd.f32 0.0, %v1246
    %v1248 = vpop.f32.mrb[0].mxu0
    %v1249 = vpop.f32.mrb[0].mxu0
    %v1250 = vadd.f32 0.0, %v1249
    %v1251 = vpop.f32.mrb[0].mxu0
    %1252 = vdwg.mxu0
    %v1253 = vpack.c.bf16 %v1242, %v1239
    %v1254 = vpack.c.bf16 %v1250, %v1247
    %s1255 = scalar_lea.vmem %s2, 200
    %v1256 = vld [vmem:[%s1255] sm:$0xf]
    %v1257 = vld [vmem:[%s1255 + $0x4] sm:$0xf]
    %v1260 = vunpack.c.l.b16 %v1256
    %v1261 = vunpack.c.l.b16 %v1257
    %v1262 = vpack.c.b16 %v1261, %v1260
    %v1265 = vsel %vm254, %v1253, 0
    %v1268 = vsel %vm254, %v1254, 0
    %1270 = vmatprep.subr.bf16.mxu0 0
    %1271 = vmatpush1.bf16.msra.mxu0 %v1262
    %1272 = vmatprep.subr.bf16.mxu0 0
    %1273 = vmatpush1.bf16.msra.mxu0 0
    %1274 = vmatprep.subr.bf16.mxu0 0
    %1275 = vmatpush1.bf16.msra.mxu0 0
    %1276 = vmatprep.subr.bf16.mxu0 0
    %1277 = vmatpush1.bf16.msra.mxu0 0
    %1278 = vmatprep.subr.bf16.mxu0 0
    %1279 = vmatpush1.bf16.msra.mxu0 0
    %1280 = vmatprep.subr.bf16.mxu0 0
    %1281 = vmatpush1.bf16.msra.mxu0 0
    %1282 = vmatprep.subr.bf16.mxu0 0
    %1283 = vmatpush1.bf16.msra.mxu0 0
    %1284 = vmatprep.subr.bf16.mxu0 0
    %1285 = vmatpush1.bf16.msra.mxu0 0
    %1286 = vmatprep.subr.bf16.mxu0 0
    %1287 = vmatpush1.bf16.msra.mxu0 0
    %1288 = vmatprep.subr.bf16.mxu0 0
    %1289 = vmatpush1.bf16.msra.mxu0 0
    %1290 = vmatprep.subr.bf16.mxu0 0
    %1291 = vmatpush1.bf16.msra.mxu0 0
    %1292 = vmatprep.subr.bf16.mxu0 0
    %1293 = vmatpush1.bf16.msra.mxu0 0
    %1294 = vmatprep.subr.bf16.mxu0 0
    %1295 = vmatpush1.bf16.msra.mxu0 0
    %1296 = vmatprep.subr.bf16.mxu0 0
    %1297 = vmatpush1.bf16.msra.mxu0 0
    %1298 = vmatprep.subr.bf16.mxu0 0
    %1299 = vmatpush1.bf16.msra.mxu0 0
    %1300 = vmatprep.subr.bf16.mxu0 0
    %1301 = vmatpush1.bf16.msra.mxu0 0
    %1302 = vmatprep.mubr.bf16.mxu0 0
    %1303 = vmatmul.mubr.bf16.gmra.mrb[0].mxu0 %v1265
    %v1304 = vpop.f32.mrb[0].mxu0
    %v1305 = vadd.f32 0.0, %v1304
    %v1306 = vpop.f32.mrb[0].mxu0
    %v1307 = vpop.f32.mrb[0].mxu0
    %v1308 = vadd.f32 0.0, %v1307
    %v1309 = vpop.f32.mrb[0].mxu0
    %1310 = vmatprep.mubr.bf16.mxu0 0
    %1311 = vmatmul.mubr.bf16.gmra.mrb[0].mxu0 %v1268
    %v1312 = vpop.f32.mrb[0].mxu0
    %v1313 = vadd.f32 0.0, %v1312
    %v1314 = vpop.f32.mrb[0].mxu0
    %v1315 = vpop.f32.mrb[0].mxu0
    %v1316 = vadd.f32 0.0, %v1315
    %v1317 = vpop.f32.mrb[0].mxu0
    %1318 = vdwg.mxu0
    %v1319 = vadd.f32 %v1183, %v1305
    %v1320 = vadd.f32 %v1184, %v1308
    %v1321 = vadd.f32 %v1185, %v1313
    %v1322 = vadd.f32 %v1186, %v1316
    %v1323 = vld [vmem:[%s3] sm:$0x1]
    %v1325 = vlaneseq
    %v1326 = vshrl.u32 %v1325, 7
    %v1327 = vsub.s32 0, %v1326
    %v1328 = vrot.slane %v1323, %v1327
    %v1330 = vadd.f32 %v1319, %v1328
    %v1331 = vadd.f32 %v1320, %v1328
    %v1332 = vadd.f32 %v1321, %v1328
    %v1333 = vadd.f32 %v1322, %v1328
    %vm1334 = vcmp.gt.f32.partialorder %v1330, 0.0
    %vm1335 = vcmp.gt.f32.partialorder %v1331, 0.0
    %vm1336 = vcmp.gt.f32.partialorder %v1332, 0.0
    %vm1337 = vcmp.gt.f32.partialorder %v1333, 0.0
    %v1338 = vmul.f32 %v1330, 0.2
    %v1339 = vmul.f32 %v1331, 0.2
    %v1340 = vmul.f32 %v1332, 0.2
    %v1341 = vmul.f32 %v1333, 0.2
    %v1342 = vsel %vm1334, %v1330, %v1338
    %v1343 = vsel %vm1335, %v1331, %v1339
    %v1344 = vsel %vm1336, %v1332, %v1340
    %v1345 = vsel %vm1337, %v1333, %v1341
    %v1346 = vpack.c.bf16 %v1343, %v1342
    %v1347 = vpack.c.bf16 %v1345, %v1344
    %v1348 = vld [vmem:[%s4] sm:$0xf]
    %vm1349 = vcmask 261120
    %v1351 = vsel %vm1349, %v1348, 0
    %1353 = vmatprep.subr.bf16.mxu0 0
    %1354 = vmatpush1.bf16.msra.mxu0 %v1346
    %1355 = vmatprep.subr.bf16.mxu0 0
    %1356 = vmatpush1.bf16.msra.mxu0 %v1347
    %1357 = vmatprep.subr.bf16.mxu0 0
    %1358 = vmatpush1.bf16.msra.mxu0 0
    %1359 = vmatprep.subr.bf16.mxu0 0
    %1360 = vmatpush1.bf16.msra.mxu0 0
    %1361 = vmatprep.subr.bf16.mxu0 0
    %1362 = vmatpush1.bf16.msra.mxu0 0
    %1363 = vmatprep.subr.bf16.mxu0 0
    %1364 = vmatpush1.bf16.msra.mxu0 0
    %1365 = vmatprep.subr.bf16.mxu0 0
    %1366 = vmatpush1.bf16.msra.mxu0 0
    %1367 = vmatprep.subr.bf16.mxu0 0
    %1368 = vmatpush1.bf16.msra.mxu0 0
    %1369 = vmatprep.subr.bf16.mxu0 0
    %1370 = vmatpush1.bf16.msra.mxu0 0
    %1371 = vmatprep.subr.bf16.mxu0 0
    %1372 = vmatpush1.bf16.msra.mxu0 0
    %1373 = vmatprep.subr.bf16.mxu0 0
    %1374 = vmatpush1.bf16.msra.mxu0 0
    %1375 = vmatprep.subr.bf16.mxu0 0
    %1376 = vmatpush1.bf16.msra.mxu0 0
    %1377 = vmatprep.subr.bf16.mxu0 0
    %1378 = vmatpush1.bf16.msra.mxu0 0
    %1379 = vmatprep.subr.bf16.mxu0 0
    %1380 = vmatpush1.bf16.msra.mxu0 0
    %1381 = vmatprep.subr.bf16.mxu0 0
    %1382 = vmatpush1.bf16.msra.mxu0 0
    %1383 = vmatprep.subr.bf16.mxu0 0
    %1384 = vmatpush1.bf16.msra.mxu0 0
    %1385 = vmatprep.mubr.bf16.mxu0 0
    %1386 = vmatmul.mubr.bf16.gmra.mrb[0].mxu0 %v1351
    %v1387 = vpop.f32.mrb[0].mxu0
    %v1388 = vadd.f32 0.0, %v1387
    %v1389 = vpop.f32.mrb[0].mxu0
    %v1390 = vpop.f32.mrb[0].mxu0
    %v1391 = vpop.f32.mrb[0].mxu0
    %1392 = vdwg.mxu0
    %v1393 = vpack.c.bf16 %v1388, %v1388
    %s1394 = scalar_lea.vmem %s5, 160
    %v1395 = vld [vmem:[%s1394] sm:$0xf]
    %v1396 = vld [vmem:[%s1394 + $0x4] sm:$0xf]
    %v1397 = vld [vmem:[%s1394 + $0x8] sm:$0xf]
    %v1398 = vld [vmem:[%s1394 + $0xc] sm:$0xf]
    %s1399 = scalar_lea.vmem %s4, 4
    %v1400 = vld [vmem:[%s1399] sm:$0xf]
    %v1402 = vsel %vm1349, %v1400, 0
    %1404 = vmatprep.subr.bf16.mxu0 0
    %1405 = vmatpush1.bf16.msra.mxu0 %v1346
    %1406 = vmatprep.subr.bf16.mxu0 0
    %1407 = vmatpush1.bf16.msra.mxu0 %v1347
    %1408 = vmatprep.subr.bf16.mxu0 0
    %1409 = vmatpush1.bf16.msra.mxu0 0
    %1410 = vmatprep.subr.bf16.mxu0 0
    %1411 = vmatpush1.bf16.msra.mxu0 0
    %1412 = vmatprep.subr.bf16.mxu0 0
    %1413 = vmatpush1.bf16.msra.mxu0 0
    %1414 = vmatprep.subr.bf16.mxu0 0
    %1415 = vmatpush1.bf16.msra.mxu0 0
    %1416 = vmatprep.subr.bf16.mxu0 0
    %1417 = vmatpush1.bf16.msra.mxu0 0
    %1418 = vmatprep.subr.bf16.mxu0 0
    %1419 = vmatpush1.bf16.msra.mxu0 0
    %1420 = vmatprep.subr.bf16.mxu0 0
    %1421 = vmatpush1.bf16.msra.mxu0 0
    %1422 = vmatprep.subr.bf16.mxu0 0
    %1423 = vmatpush1.bf16.msra.mxu0 0
    %1424 = vmatprep.subr.bf16.mxu0 0
    %1425 = vmatpush1.bf16.msra.mxu0 0
    %1426 = vmatprep.subr.bf16.mxu0 0
    %1427 = vmatpush1.bf16.msra.mxu0 0
    %1428 = vmatprep.subr.bf16.mxu0 0
    %1429 = vmatpush1.bf16.msra.mxu0 0
    %1430 = vmatprep.subr.bf16.mxu0 0
    %1431 = vmatpush1.bf16.msra.mxu0 0
    %1432 = vmatprep.subr.bf16.mxu0 0
    %1433 = vmatpush1.bf16.msra.mxu0 0
    %1434 = vmatprep.subr.bf16.mxu0 0
    %1435 = vmatpush1.bf16.msra.mxu0 0
    %1436 = vmatprep.mubr.bf16.mxu0 0
    %1437 = vmatmul.mubr.bf16.gmra.mrb[0].mxu0 %v1402
    %v1438 = vpop.f32.mrb[0].mxu0
    %v1439 = vadd.f32 0.0, %v1438
    %v1440 = vpop.f32.mrb[0].mxu0
    %v1441 = vpop.f32.mrb[0].mxu0
    %v1442 = vpop.f32.mrb[0].mxu0
    %1443 = vdwg.mxu0
    %v1444 = vpack.c.bf16 %v1439, %v1439
    %s1445 = scalar_lea.vmem %s5, 208
    %v1446 = vld [vmem:[%s1445] sm:$0xf]
    %v1447 = vld [vmem:[%s1445 + $0x4] sm:$0xf]
    %v1448 = vld [vmem:[%s1445 + $0x8] sm:$0xf]
    %v1449 = vld [vmem:[%s1445 + $0xc] sm:$0xf]
    %v1454 = vunpack.c.l.b16 %v1446
    %v1455 = vunpack.c.l.b16 %v1447
    %v1456 = vunpack.c.l.b16 %v1448
    %v1457 = vunpack.c.l.b16 %v1449
    %v1458 = vpack.c.b16 %v1455, %v1454
    %v1459 = vpack.c.b16 %v1457, %v1456
    %v1463 = vsel %vm1349, %v1444, 0
    %1465 = vmatprep.subr.bf16.mxu0 0
    %1466 = vmatpush1.bf16.msra.mxu0 %v1458
    %1467 = vmatprep.subr.bf16.mxu0 0
    %1468 = vmatpush1.bf16.msra.mxu0 %v1459
    %1469 = vmatprep.subr.bf16.mxu0 0
    %1470 = vmatpush1.bf16.msra.mxu0 0
    %1471 = vmatprep.subr.bf16.mxu0 0
    %1472 = vmatpush1.bf16.msra.mxu0 0
    %1473 = vmatprep.subr.bf16.mxu0 0
    %1474 = vmatpush1.bf16.msra.mxu0 0
    %1475 = vmatprep.subr.bf16.mxu0 0
    %1476 = vmatpush1.bf16.msra.mxu0 0
    %1477 = vmatprep.subr.bf16.mxu0 0
    %1478 = vmatpush1.bf16.msra.mxu0 0
    %1479 = vmatprep.subr.bf16.mxu0 0
    %1480 = vmatpush1.bf16.msra.mxu0 0
    %1481 = vmatprep.subr.bf16.mxu0 0
    %1482 = vmatpush1.bf16.msra.mxu0 0
    %1483 = vmatprep.subr.bf16.mxu0 0
    %1484 = vmatpush1.bf16.msra.mxu0 0
    %1485 = vmatprep.subr.bf16.mxu0 0
    %1486 = vmatpush1.bf16.msra.mxu0 0
    %1487 = vmatprep.subr.bf16.mxu0 0
    %1488 = vmatpush1.bf16.msra.mxu0 0
    %1489 = vmatprep.subr.bf16.mxu0 0
    %1490 = vmatpush1.bf16.msra.mxu0 0
    %1491 = vmatprep.subr.bf16.mxu0 0
    %1492 = vmatpush1.bf16.msra.mxu0 0
    %1493 = vmatprep.subr.bf16.mxu0 0
    %1494 = vmatpush1.bf16.msra.mxu0 0
    %1495 = vmatprep.subr.bf16.mxu0 0
    %1496 = vmatpush1.bf16.msra.mxu0 0
    %1497 = vmatprep.mubr.bf16.mxu0 0
    %1498 = vmatmul.mubr.bf16.gmra.mrb[0].mxu0 %v1463
    %v1499 = vpop.f32.mrb[0].mxu0
    %v1500 = vadd.f32 0.0, %v1499
    %v1501 = vpop.f32.mrb[0].mxu0
    %v1502 = vpop.f32.mrb[0].mxu0
    %v1503 = vpop.f32.mrb[0].mxu0
    %1504 = vdwg.mxu0
    %v1509 = vunpack.c.l.b16 %v1395
    %v1510 = vunpack.c.l.b16 %v1396
    %v1511 = vunpack.c.l.b16 %v1397
    %v1512 = vunpack.c.l.b16 %v1398
    %v1513 = vpack.c.b16 %v1510, %v1509
    %v1514 = vpack.c.b16 %v1512, %v1511
    %v1518 = vsel %vm1349, %v1393, 0
    %1520 = vmatprep.subr.bf16.mxu0 0
    %1521 = vmatpush1.bf16.msra.mxu0 %v1513
    %1522 = vmatprep.subr.bf16.mxu0 0
    %1523 = vmatpush1.bf16.msra.mxu0 %v1514
    %1524 = vmatprep.subr.bf16.mxu0 0
    %1525 = vmatpush1.bf16.msra.mxu0 0
    %1526 = vmatprep.subr.bf16.mxu0 0
    %1527 = vmatpush1.bf16.msra.mxu0 0
    %1528 = vmatprep.subr.bf16.mxu0 0
    %1529 = vmatpush1.bf16.msra.mxu0 0
    %1530 = vmatprep.subr.bf16.mxu0 0
    %1531 = vmatpush1.bf16.msra.mxu0 0
    %1532 = vmatprep.subr.bf16.mxu0 0
    %1533 = vmatpush1.bf16.msra.mxu0 0
    %1534 = vmatprep.subr.bf16.mxu0 0
    %1535 = vmatpush1.bf16.msra.mxu0 0
    %1536 = vmatprep.subr.bf16.mxu0 0
    %1537 = vmatpush1.bf16.msra.mxu0 0
    %1538 = vmatprep.subr.bf16.mxu0 0
    %1539 = vmatpush1.bf16.msra.mxu0 0
    %1540 = vmatprep.subr.bf16.mxu0 0
    %1541 = vmatpush1.bf16.msra.mxu0 0
    %1542 = vmatprep.subr.bf16.mxu0 0
    %1543 = vmatpush1.bf16.msra.mxu0 0
    %1544 = vmatprep.subr.bf16.mxu0 0
    %1545 = vmatpush1.bf16.msra.mxu0 0
    %1546 = vmatprep.subr.bf16.mxu0 0
    %1547 = vmatpush1.bf16.msra.mxu0 0
    %1548 = vmatprep.subr.bf16.mxu0 0
    %1549 = vmatpush1.bf16.msra.mxu0 0
    %1550 = vmatprep.subr.bf16.mxu0 0
    %1551 = vmatpush1.bf16.msra.mxu0 0
    %1552 = vmatprep.mubr.bf16.mxu0 0
    %1553 = vmatmul.mubr.bf16.gmra.mrb[0].mxu0 %v1518
    %v1554 = vpop.f32.mrb[0].mxu0
    %v1555 = vadd.f32 %v1500, %v1554
    %v1556 = vpop.f32.mrb[0].mxu0
    %v1557 = vpop.f32.mrb[0].mxu0
    %v1558 = vpop.f32.mrb[0].mxu0
    %1559 = vdwg.mxu0
    %s1560 = scalar_lea.vmem %s4, 8
    %v1561 = vld [vmem:[%s1560] sm:$0xf]
    %v1563 = vsel %vm1349, %v1561, 0
    %1565 = vmatprep.subr.bf16.mxu0 0
    %1566 = vmatpush1.bf16.msra.mxu0 %v1346
    %1567 = vmatprep.subr.bf16.mxu0 0
    %1568 = vmatpush1.bf16.msra.mxu0 %v1347
    %1569 = vmatprep.subr.bf16.mxu0 0
    %1570 = vmatpush1.bf16.msra.mxu0 0
    %1571 = vmatprep.subr.bf16.mxu0 0
    %1572 = vmatpush1.bf16.msra.mxu0 0
    %1573 = vmatprep.subr.bf16.mxu0 0
    %1574 = vmatpush1.bf16.msra.mxu0 0
    %1575 = vmatprep.subr.bf16.mxu0 0
    %1576 = vmatpush1.bf16.msra.mxu0 0
    %1577 = vmatprep.subr.bf16.mxu0 0
    %1578 = vmatpush1.bf16.msra.mxu0 0
    %1579 = vmatprep.subr.bf16.mxu0 0
    %1580 = vmatpush1.bf16.msra.mxu0 0
    %1581 = vmatprep.subr.bf16.mxu0 0
    %1582 = vmatpush1.bf16.msra.mxu0 0
    %1583 = vmatprep.subr.bf16.mxu0 0
    %1584 = vmatpush1.bf16.msra.mxu0 0
    %1585 = vmatprep.subr.bf16.mxu0 0
    %1586 = vmatpush1.bf16.msra.mxu0 0
    %1587 = vmatprep.subr.bf16.mxu0 0
    %1588 = vmatpush1.bf16.msra.mxu0 0
    %1589 = vmatprep.subr.bf16.mxu0 0
    %1590 = vmatpush1.bf16.msra.mxu0 0
    %1591 = vmatprep.subr.bf16.mxu0 0
    %1592 = vmatpush1.bf16.msra.mxu0 0
    %1593 = vmatprep.subr.bf16.mxu0 0
    %1594 = vmatpush1.bf16.msra.mxu0 0
    %1595 = vmatprep.subr.bf16.mxu0 0
    %1596 = vmatpush1.bf16.msra.mxu0 0
    %1597 = vmatprep.mubr.bf16.mxu0 0
    %1598 = vmatmul.mubr.bf16.gmra.mrb[0].mxu0 %v1563
    %v1599 = vpop.f32.mrb[0].mxu0
    %v1600 = vadd.f32 0.0, %v1599
    %v1601 = vpop.f32.mrb[0].mxu0
    %v1602 = vpop.f32.mrb[0].mxu0
    %v1603 = vpop.f32.mrb[0].mxu0
    %1604 = vdwg.mxu0
    %v1605 = vpack.c.bf16 %v1600, %v1600
    %s1606 = scalar_lea.vmem %s5, 256
    %v1607 = vld [vmem:[%s1606] sm:$0xf]
    %v1608 = vld [vmem:[%s1606 + $0x4] sm:$0xf]
    %v1609 = vld [vmem:[%s1606 + $0x8] sm:$0xf]
    %v1610 = vld [vmem:[%s1606 + $0xc] sm:$0xf]
    %v1615 = vunpack.c.l.b16 %v1607
    %v1616 = vunpack.c.l.b16 %v1608
    %v1617 = vunpack.c.l.b16 %v1609
    %v1618 = vunpack.c.l.b16 %v1610
    %v1619 = vpack.c.b16 %v1616, %v1615
    %v1620 = vpack.c.b16 %v1618, %v1617
    %v1624 = vsel %vm1349, %v1605, 0
    %1626 = vmatprep.subr.bf16.mxu0 0
    %1627 = vmatpush1.bf16.msra.mxu0 %v1619
    %1628 = vmatprep.subr.bf16.mxu0 0
    %1629 = vmatpush1.bf16.msra.mxu0 %v1620
    %1630 = vmatprep.subr.bf16.mxu0 0
    %1631 = vmatpush1.bf16.msra.mxu0 0
    %1632 = vmatprep.subr.bf16.mxu0 0
    %1633 = vmatpush1.bf16.msra.mxu0 0
    %1634 = vmatprep.subr.bf16.mxu0 0
    %1635 = vmatpush1.bf16.msra.mxu0 0
    %1636 = vmatprep.subr.bf16.mxu0 0
    %1637 = vmatpush1.bf16.msra.mxu0 0
    %1638 = vmatprep.subr.bf16.mxu0 0
    %1639 = vmatpush1.bf16.msra.mxu0 0
    %1640 = vmatprep.subr.bf16.mxu0 0
    %1641 = vmatpush1.bf16.msra.mxu0 0
    %1642 = vmatprep.subr.bf16.mxu0 0
    %1643 = vmatpush1.bf16.msra.mxu0 0
    %1644 = vmatprep.subr.bf16.mxu0 0
    %1645 = vmatpush1.bf16.msra.mxu0 0
    %1646 = vmatprep.subr.bf16.mxu0 0
    %1647 = vmatpush1.bf16.msra.mxu0 0
    %1648 = vmatprep.subr.bf16.mxu0 0
    %1649 = vmatpush1.bf16.msra.mxu0 0
    %1650 = vmatprep.subr.bf16.mxu0 0
    %1651 = vmatpush1.bf16.msra.mxu0 0
    %1652 = vmatprep.subr.bf16.mxu0 0
    %1653 = vmatpush1.bf16.msra.mxu0 0
    %1654 = vmatprep.subr.bf16.mxu0 0
    %1655 = vmatpush1.bf16.msra.mxu0 0
    %1656 = vmatprep.subr.bf16.mxu0 0
    %1657 = vmatpush1.bf16.msra.mxu0 0
    %1658 = vmatprep.mubr.bf16.mxu0 0
    %1659 = vmatmul.mubr.bf16.gmra.mrb[0].mxu0 %v1624
    %v1660 = vpop.f32.mrb[0].mxu0
    %v1661 = vadd.f32 0.0, %v1660
    %v1662 = vpop.f32.mrb[0].mxu0
    %v1663 = vpop.f32.mrb[0].mxu0
    %v1664 = vpop.f32.mrb[0].mxu0
    %1665 = vdwg.mxu0
    %v1666 = vadd.f32 %v1555, %v1661
    %s1667 = scalar_lea.vmem %s4, 12
    %v1668 = vld [vmem:[%s1667] sm:$0xf]
    %v1670 = vsel %vm1349, %v1668, 0
    %1672 = vmatprep.subr.bf16.mxu0 0
    %1673 = vmatpush1.bf16.msra.mxu0 %v1346
    %1674 = vmatprep.subr.bf16.mxu0 0
    %1675 = vmatpush1.bf16.msra.mxu0 %v1347
    %1676 = vmatprep.subr.bf16.mxu0 0
    %1677 = vmatpush1.bf16.msra.mxu0 0
    %1678 = vmatprep.subr.bf16.mxu0 0
    %1679 = vmatpush1.bf16.msra.mxu0 0
    %1680 = vmatprep.subr.bf16.mxu0 0
    %1681 = vmatpush1.bf16.msra.mxu0 0
    %1682 = vmatprep.subr.bf16.mxu0 0
    %1683 = vmatpush1.bf16.msra.mxu0 0
    %1684 = vmatprep.subr.bf16.mxu0 0
    %1685 = vmatpush1.bf16.msra.mxu0 0
    %1686 = vmatprep.subr.bf16.mxu0 0
    %1687 = vmatpush1.bf16.msra.mxu0 0
    %1688 = vmatprep.subr.bf16.mxu0 0
    %1689 = vmatpush1.bf16.msra.mxu0 0
    %1690 = vmatprep.subr.bf16.mxu0 0
    %1691 = vmatpush1.bf16.msra.mxu0 0
    %1692 = vmatprep.subr.bf16.mxu0 0
    %1693 = vmatpush1.bf16.msra.mxu0 0
    %1694 = vmatprep.subr.bf16.mxu0 0
    %1695 = vmatpush1.bf16.msra.mxu0 0
    %1696 = vmatprep.subr.bf16.mxu0 0
    %1697 = vmatpush1.bf16.msra.mxu0 0
    %1698 = vmatprep.subr.bf16.mxu0 0
    %1699 = vmatpush1.bf16.msra.mxu0 0
    %1700 = vmatprep.subr.bf16.mxu0 0
    %1701 = vmatpush1.bf16.msra.mxu0 0
    %1702 = vmatprep.subr.bf16.mxu0 0
    %1703 = vmatpush1.bf16.msra.mxu0 0
    %1704 = vmatprep.mubr.bf16.mxu0 0
    %1705 = vmatmul.mubr.bf16.gmra.mrb[0].mxu0 %v1670
    %v1706 = vpop.f32.mrb[0].mxu0
    %v1707 = vadd.f32 0.0, %v1706
    %v1708 = vpop.f32.mrb[0].mxu0
    %v1709 = vpop.f32.mrb[0].mxu0
    %v1710 = vpop.f32.mrb[0].mxu0
    %1711 = vdwg.mxu0
    %v1712 = vpack.c.bf16 %v1707, %v1707
    %s1713 = scalar_lea.vmem %s5, 304
    %v1714 = vld [vmem:[%s1713] sm:$0xf]
    %v1715 = vld [vmem:[%s1713 + $0x4] sm:$0xf]
    %v1716 = vld [vmem:[%s1713 + $0x8] sm:$0xf]
    %v1717 = vld [vmem:[%s1713 + $0xc] sm:$0xf]
    %v1722 = vunpack.c.l.b16 %v1714
    %v1723 = vunpack.c.l.b16 %v1715
    %v1724 = vunpack.c.l.b16 %v1716
    %v1725 = vunpack.c.l.b16 %v1717
    %v1726 = vpack.c.b16 %v1723, %v1722
    %v1727 = vpack.c.b16 %v1725, %v1724
    %v1731 = vsel %vm1349, %v1712, 0
    %1733 = vmatprep.subr.bf16.mxu0 0
    %1734 = vmatpush1.bf16.msra.mxu0 %v1726
    %1735 = vmatprep.subr.bf16.mxu0 0
    %1736 = vmatpush1.bf16.msra.mxu0 %v1727
    %1737 = vmatprep.subr.bf16.mxu0 0
    %1738 = vmatpush1.bf16.msra.mxu0 0
    %1739 = vmatprep.subr.bf16.mxu0 0
    %1740 = vmatpush1.bf16.msra.mxu0 0
    %1741 = vmatprep.subr.bf16.mxu0 0
    %1742 = vmatpush1.bf16.msra.mxu0 0
    %1743 = vmatprep.subr.bf16.mxu0 0
    %1744 = vmatpush1.bf16.msra.mxu0 0
    %1745 = vmatprep.subr.bf16.mxu0 0
    %1746 = vmatpush1.bf16.msra.mxu0 0
    %1747 = vmatprep.subr.bf16.mxu0 0
    %1748 = vmatpush1.bf16.msra.mxu0 0
    %1749 = vmatprep.subr.bf16.mxu0 0
    %1750 = vmatpush1.bf16.msra.mxu0 0
    %1751 = vmatprep.subr.bf16.mxu0 0
    %1752 = vmatpush1.bf16.msra.mxu0 0
    %1753 = vmatprep.subr.bf16.mxu0 0
    %1754 = vmatpush1.bf16.msra.mxu0 0
    %1755 = vmatprep.subr.bf16.mxu0 0
    %1756 = vmatpush1.bf16.msra.mxu0 0
    %1757 = vmatprep.subr.bf16.mxu0 0
    %1758 = vmatpush1.bf16.msra.mxu0 0
    %1759 = vmatprep.subr.bf16.mxu0 0
    %1760 = vmatpush1.bf16.msra.mxu0 0
    %1761 = vmatprep.subr.bf16.mxu0 0
    %1762 = vmatpush1.bf16.msra.mxu0 0
    %1763 = vmatprep.subr.bf16.mxu0 0
    %1764 = vmatpush1.bf16.msra.mxu0 0
    %1765 = vmatprep.mubr.bf16.mxu0 0
    %1766 = vmatmul.mubr.bf16.gmra.mrb[0].mxu0 %v1731
    %v1767 = vpop.f32.mrb[0].mxu0
    %v1768 = vadd.f32 0.0, %v1767
    %v1769 = vpop.f32.mrb[0].mxu0
    %v1770 = vpop.f32.mrb[0].mxu0
    %v1771 = vpop.f32.mrb[0].mxu0
    %1772 = vdwg.mxu0
    %v1773 = vadd.f32 %v1666, %v1768
    %s1774 = scalar_lea.vmem %s4, 16
    %v1775 = vld [vmem:[%s1774] sm:$0xf]
    %v1777 = vsel %vm1349, %v1775, 0
    %1779 = vmatprep.subr.bf16.mxu0 0
    %1780 = vmatpush1.bf16.msra.mxu0 %v1346
    %1781 = vmatprep.subr.bf16.mxu0 0
    %1782 = vmatpush1.bf16.msra.mxu0 %v1347
    %1783 = vmatprep.subr.bf16.mxu0 0
    %1784 = vmatpush1.bf16.msra.mxu0 0
    %1785 = vmatprep.subr.bf16.mxu0 0
    %1786 = vmatpush1.bf16.msra.mxu0 0
    %1787 = vmatprep.subr.bf16.mxu0 0
    %1788 = vmatpush1.bf16.msra.mxu0 0
    %1789 = vmatprep.subr.bf16.mxu0 0
    %1790 = vmatpush1.bf16.msra.mxu0 0
    %1791 = vmatprep.subr.bf16.mxu0 0
    %1792 = vmatpush1.bf16.msra.mxu0 0
    %1793 = vmatprep.subr.bf16.mxu0 0
    %1794 = vmatpush1.bf16.msra.mxu0 0
    %1795 = vmatprep.subr.bf16.mxu0 0
    %1796 = vmatpush1.bf16.msra.mxu0 0
    %1797 = vmatprep.subr.bf16.mxu0 0
    %1798 = vmatpush1.bf16.msra.mxu0 0
    %1799 = vmatprep.subr.bf16.mxu0 0
    %1800 = vmatpush1.bf16.msra.mxu0 0
    %1801 = vmatprep.subr.bf16.mxu0 0
    %1802 = vmatpush1.bf16.msra.mxu0 0
    %1803 = vmatprep.subr.bf16.mxu0 0
    %1804 = vmatpush1.bf16.msra.mxu0 0
    %1805 = vmatprep.subr.bf16.mxu0 0
    %1806 = vmatpush1.bf16.msra.mxu0 0
    %1807 = vmatprep.subr.bf16.mxu0 0
    %1808 = vmatpush1.bf16.msra.mxu0 0
    %1809 = vmatprep.subr.bf16.mxu0 0
    %1810 = vmatpush1.bf16.msra.mxu0 0
    %1811 = vmatprep.mubr.bf16.mxu0 0
    %1812 = vmatmul.mubr.bf16.gmra.mrb[0].mxu0 %v1777
    %v1813 = vpop.f32.mrb[0].mxu0
    %v1814 = vadd.f32 0.0, %v1813
    %v1815 = vpop.f32.mrb[0].mxu0
    %v1816 = vpop.f32.mrb[0].mxu0
    %v1817 = vpop.f32.mrb[0].mxu0
    %1818 = vdwg.mxu0
    %v1819 = vpack.c.bf16 %v1814, %v1814
    %s1820 = scalar_lea.vmem %s5, 352
    %v1821 = vld [vmem:[%s1820] sm:$0xf]
    %v1822 = vld [vmem:[%s1820 + $0x4] sm:$0xf]
    %v1823 = vld [vmem:[%s1820 + $0x8] sm:$0xf]
    %v1824 = vld [vmem:[%s1820 + $0xc] sm:$0xf]
    %v1829 = vunpack.c.l.b16 %v1821
    %v1830 = vunpack.c.l.b16 %v1822
    %v1831 = vunpack.c.l.b16 %v1823
    %v1832 = vunpack.c.l.b16 %v1824
    %v1833 = vpack.c.b16 %v1830, %v1829
    %v1834 = vpack.c.b16 %v1832, %v1831
    %v1838 = vsel %vm1349, %v1819, 0
    %1840 = vmatprep.subr.bf16.mxu0 0
    %1841 = vmatpush1.bf16.msra.mxu0 %v1833
    %1842 = vmatprep.subr.bf16.mxu0 0
    %1843 = vmatpush1.bf16.msra.mxu0 %v1834
    %1844 = vmatprep.subr.bf16.mxu0 0
    %1845 = vmatpush1.bf16.msra.mxu0 0
    %1846 = vmatprep.subr.bf16.mxu0 0
    %1847 = vmatpush1.bf16.msra.mxu0 0
    %1848 = vmatprep.subr.bf16.mxu0 0
    %1849 = vmatpush1.bf16.msra.mxu0 0
    %1850 = vmatprep.subr.bf16.mxu0 0
    %1851 = vmatpush1.bf16.msra.mxu0 0
    %1852 = vmatprep.subr.bf16.mxu0 0
    %1853 = vmatpush1.bf16.msra.mxu0 0
    %1854 = vmatprep.subr.bf16.mxu0 0
    %1855 = vmatpush1.bf16.msra.mxu0 0
    %1856 = vmatprep.subr.bf16.mxu0 0
    %1857 = vmatpush1.bf16.msra.mxu0 0
    %1858 = vmatprep.subr.bf16.mxu0 0
    %1859 = vmatpush1.bf16.msra.mxu0 0
    %1860 = vmatprep.subr.bf16.mxu0 0
    %1861 = vmatpush1.bf16.msra.mxu0 0
    %1862 = vmatprep.subr.bf16.mxu0 0
    %1863 = vmatpush1.bf16.msra.mxu0 0
    %1864 = vmatprep.subr.bf16.mxu0 0
    %1865 = vmatpush1.bf16.msra.mxu0 0
    %1866 = vmatprep.subr.bf16.mxu0 0
    %1867 = vmatpush1.bf16.msra.mxu0 0
    %1868 = vmatprep.subr.bf16.mxu0 0
    %1869 = vmatpush1.bf16.msra.mxu0 0
    %1870 = vmatprep.subr.bf16.mxu0 0
    %1871 = vmatpush1.bf16.msra.mxu0 0
    %1872 = vmatprep.mubr.bf16.mxu0 0
    %1873 = vmatmul.mubr.bf16.gmra.mrb[0].mxu0 %v1838
    %v1874 = vpop.f32.mrb[0].mxu0
    %v1875 = vadd.f32 0.0, %v1874
    %v1876 = vpop.f32.mrb[0].mxu0
    %v1877 = vpop.f32.mrb[0].mxu0
    %v1878 = vpop.f32.mrb[0].mxu0
    %1879 = vdwg.mxu0
    %v1880 = vadd.f32 %v1773, %v1875
    %s1881 = scalar_lea.vmem %s4, 20
    %v1882 = vld [vmem:[%s1881] sm:$0xf]
    %v1884 = vsel %vm1349, %v1882, 0
    %1886 = vmatprep.subr.bf16.mxu0 0
    %1887 = vmatpush1.bf16.msra.mxu0 %v1346
    %1888 = vmatprep.subr.bf16.mxu0 0
    %1889 = vmatpush1.bf16.msra.mxu0 %v1347
    %1890 = vmatprep.subr.bf16.mxu0 0
    %1891 = vmatpush1.bf16.msra.mxu0 0
    %1892 = vmatprep.subr.bf16.mxu0 0
    %1893 = vmatpush1.bf16.msra.mxu0 0
    %1894 = vmatprep.subr.bf16.mxu0 0
    %1895 = vmatpush1.bf16.msra.mxu0 0
    %1896 = vmatprep.subr.bf16.mxu0 0
    %1897 = vmatpush1.bf16.msra.mxu0 0
    %1898 = vmatprep.subr.bf16.mxu0 0
    %1899 = vmatpush1.bf16.msra.mxu0 0
    %1900 = vmatprep.subr.bf16.mxu0 0
    %1901 = vmatpush1.bf16.msra.mxu0 0
    %1902 = vmatprep.subr.bf16.mxu0 0
    %1903 = vmatpush1.bf16.msra.mxu0 0
    %1904 = vmatprep.subr.bf16.mxu0 0
    %1905 = vmatpush1.bf16.msra.mxu0 0
    %1906 = vmatprep.subr.bf16.mxu0 0
    %1907 = vmatpush1.bf16.msra.mxu0 0
    %1908 = vmatprep.subr.bf16.mxu0 0
    %1909 = vmatpush1.bf16.msra.mxu0 0
    %1910 = vmatprep.subr.bf16.mxu0 0
    %1911 = vmatpush1.bf16.msra.mxu0 0
    %1912 = vmatprep.subr.bf16.mxu0 0
    %1913 = vmatpush1.bf16.msra.mxu0 0
    %1914 = vmatprep.subr.bf16.mxu0 0
    %1915 = vmatpush1.bf16.msra.mxu0 0
    %1916 = vmatprep.subr.bf16.mxu0 0
    %1917 = vmatpush1.bf16.msra.mxu0 0
    %1918 = vmatprep.mubr.bf16.mxu0 0
    %1919 = vmatmul.mubr.bf16.gmra.mrb[0].mxu0 %v1884
    %v1920 = vpop.f32.mrb[0].mxu0
    %v1921 = vadd.f32 0.0, %v1920
    %v1922 = vpop.f32.mrb[0].mxu0
    %v1923 = vpop.f32.mrb[0].mxu0
    %v1924 = vpop.f32.mrb[0].mxu0
    %1925 = vdwg.mxu0
    %v1926 = vpack.c.bf16 %v1921, %v1921
    %s1927 = scalar_lea.vmem %s5, 400
    %v1928 = vld [vmem:[%s1927] sm:$0xf]
    %v1929 = vld [vmem:[%s1927 + $0x4] sm:$0xf]
    %v1930 = vld [vmem:[%s1927 + $0x8] sm:$0xf]
    %v1931 = vld [vmem:[%s1927 + $0xc] sm:$0xf]
    %v1936 = vunpack.c.l.b16 %v1928
    %v1937 = vunpack.c.l.b16 %v1929
    %v1938 = vunpack.c.l.b16 %v1930
    %v1939 = vunpack.c.l.b16 %v1931
    %v1940 = vpack.c.b16 %v1937, %v1936
    %v1941 = vpack.c.b16 %v1939, %v1938
    %v1945 = vsel %vm1349, %v1926, 0
    %1947 = vmatprep.subr.bf16.mxu0 0
    %1948 = vmatpush1.bf16.msra.mxu0 %v1940
    %1949 = vmatprep.subr.bf16.mxu0 0
    %1950 = vmatpush1.bf16.msra.mxu0 %v1941
    %1951 = vmatprep.subr.bf16.mxu0 0
    %1952 = vmatpush1.bf16.msra.mxu0 0
    %1953 = vmatprep.subr.bf16.mxu0 0
    %1954 = vmatpush1.bf16.msra.mxu0 0
    %1955 = vmatprep.subr.bf16.mxu0 0
    %1956 = vmatpush1.bf16.msra.mxu0 0
    %1957 = vmatprep.subr.bf16.mxu0 0
    %1958 = vmatpush1.bf16.msra.mxu0 0
    %1959 = vmatprep.subr.bf16.mxu0 0
    %1960 = vmatpush1.bf16.msra.mxu0 0
    %1961 = vmatprep.subr.bf16.mxu0 0
    %1962 = vmatpush1.bf16.msra.mxu0 0
    %1963 = vmatprep.subr.bf16.mxu0 0
    %1964 = vmatpush1.bf16.msra.mxu0 0
    %1965 = vmatprep.subr.bf16.mxu0 0
    %1966 = vmatpush1.bf16.msra.mxu0 0
    %1967 = vmatprep.subr.bf16.mxu0 0
    %1968 = vmatpush1.bf16.msra.mxu0 0
    %1969 = vmatprep.subr.bf16.mxu0 0
    %1970 = vmatpush1.bf16.msra.mxu0 0
    %1971 = vmatprep.subr.bf16.mxu0 0
    %1972 = vmatpush1.bf16.msra.mxu0 0
    %1973 = vmatprep.subr.bf16.mxu0 0
    %1974 = vmatpush1.bf16.msra.mxu0 0
    %1975 = vmatprep.subr.bf16.mxu0 0
    %1976 = vmatpush1.bf16.msra.mxu0 0
    %1977 = vmatprep.subr.bf16.mxu0 0
    %1978 = vmatpush1.bf16.msra.mxu0 0
    %1979 = vmatprep.mubr.bf16.mxu0 0
    %1980 = vmatmul.mubr.bf16.gmra.mrb[0].mxu0 %v1945
    %v1981 = vpop.f32.mrb[0].mxu0
    %v1982 = vadd.f32 0.0, %v1981
    %v1983 = vpop.f32.mrb[0].mxu0
    %v1984 = vpop.f32.mrb[0].mxu0
    %v1985 = vpop.f32.mrb[0].mxu0
    %1986 = vdwg.mxu0
    %v1987 = vadd.f32 %v1880, %v1982
    %v1988 = vld [vmem:[%s6] sm:$0x1]
    %v1990 = vlaneseq
    %v1991 = vshrl.u32 %v1990, 7
    %v1992 = vsub.s32 0, %v1991
    %v1993 = vrot.slane %v1988, %v1992
    %v1995 = vadd.f32 %v1987, %v1993
    %vm1996 = vcmp.gt.f32.partialorder %v1995, 0.0
    %v1997 = vmul.f32 %v1995, 0.2
    %v1998 = vsel %vm1996, %v1995, %v1997
    %v1999 = vpack.c.bf16 %v1998, %v1998
    %v2000 = vld [vmem:[%s7] sm:$0x3]
    %vm2001 = vcmask 64512
    %v2003 = vsel %vm2001, %v2000, 0
    %vm2005 = vcmask 1043456
    %v2007 = vsel %vm2005, %v1999, 0
    %2009 = vmatprep.subr.bf16.mxu0 0
    %2010 = vmatpush1.bf16.msra.mxu0 %v2007
    %2011 = vmatprep.subr.bf16.mxu0 0
    %2012 = vmatpush1.bf16.msra.mxu0 0
    %2013 = vmatprep.subr.bf16.mxu0 0
    %2014 = vmatpush1.bf16.msra.mxu0 0
    %2015 = vmatprep.subr.bf16.mxu0 0
    %2016 = vmatpush1.bf16.msra.mxu0 0
    %2017 = vmatprep.subr.bf16.mxu0 0
    %2018 = vmatpush1.bf16.msra.mxu0 0
    %2019 = vmatprep.subr.bf16.mxu0 0
    %2020 = vmatpush1.bf16.msra.mxu0 0
    %2021 = vmatprep.subr.bf16.mxu0 0
    %2022 = vmatpush1.bf16.msra.mxu0 0
    %2023 = vmatprep.subr.bf16.mxu0 0
    %2024 = vmatpush1.bf16.msra.mxu0 0
    %2025 = vmatprep.subr.bf16.mxu0 0
    %2026 = vmatpush1.bf16.msra.mxu0 0
    %2027 = vmatprep.subr.bf16.mxu0 0
    %2028 = vmatpush1.bf16.msra.mxu0 0
    %2029 = vmatprep.subr.bf16.mxu0 0
    %2030 = vmatpush1.bf16.msra.mxu0 0
    %2031 = vmatprep.subr.bf16.mxu0 0
    %2032 = vmatpush1.bf16.msra.mxu0 0
    %2033 = vmatprep.subr.bf16.mxu0 0
    %2034 = vmatpush1.bf16.msra.mxu0 0
    %2035 = vmatprep.subr.bf16.mxu0 0
    %2036 = vmatpush1.bf16.msra.mxu0 0
    %2037 = vmatprep.subr.bf16.mxu0 0
    %2038 = vmatpush1.bf16.msra.mxu0 0
    %2039 = vmatprep.subr.bf16.mxu0 0
    %2040 = vmatpush1.bf16.msra.mxu0 0
    %2041 = vmatprep.mubr.bf16.mxu0 0
    %2042 = vmatmul.mubr.bf16.gmra.mrb[0].mxu0 %v2003
    %v2043 = vpop.f32.mrb[0].mxu0
    %v2044 = vadd.f32 0.0, %v2043
    %v2045 = vpop.f32.mrb[0].mxu0
    %v2046 = vpop.f32.mrb[0].mxu0
    %v2047 = vpop.f32.mrb[0].mxu0
    %2048 = vdwg.mxu0
    %v2049 = vpack.c.bf16 %v2044, %v2044
    %s2050 = scalar_lea.vmem %s8, 320
    %v2051 = vld [vmem:[%s2050] sm:$0xf]
    %v2052 = vld [vmem:[%s2050 + $0x4] sm:$0xf]
    %v2053 = vld [vmem:[%s2050 + $0x8] sm:$0xf]
    %v2054 = vld [vmem:[%s2050 + $0xc] sm:$0xf]
    %v2055 = vld [vmem:[%s2050 + $0x10] sm:$0xf]
    %v2056 = vld [vmem:[%s2050 + $0x14] sm:$0xf]
    %v2057 = vld [vmem:[%s2050 + $0x18] sm:$0xf]
    %v2058 = vld [vmem:[%s2050 + $0x1c] sm:$0xf]
    %s2059 = scalar_lea.vmem %s7, 2
    %v2060 = vld [vmem:[%s2059] sm:$0x3]
    %v2062 = vsel %vm2001, %v2060, 0
    %2064 = vmatprep.subr.bf16.mxu0 0
    %2065 = vmatpush1.bf16.msra.mxu0 %v2007
    %2066 = vmatprep.subr.bf16.mxu0 0
    %2067 = vmatpush1.bf16.msra.mxu0 0
    %2068 = vmatprep.subr.bf16.mxu0 0
    %2069 = vmatpush1.bf16.msra.mxu0 0
    %2070 = vmatprep.subr.bf16.mxu0 0
    %2071 = vmatpush1.bf16.msra.mxu0 0
    %2072 = vmatprep.subr.bf16.mxu0 0
    %2073 = vmatpush1.bf16.msra.mxu0 0
    %2074 = vmatprep.subr.bf16.mxu0 0
    %2075 = vmatpush1.bf16.msra.mxu0 0
    %2076 = vmatprep.subr.bf16.mxu0 0
    %2077 = vmatpush1.bf16.msra.mxu0 0
    %2078 = vmatprep.subr.bf16.mxu0 0
    %2079 = vmatpush1.bf16.msra.mxu0 0
    %2080 = vmatprep.subr.bf16.mxu0 0
    %2081 = vmatpush1.bf16.msra.mxu0 0
    %2082 = vmatprep.subr.bf16.mxu0 0
    %2083 = vmatpush1.bf16.msra.mxu0 0
    %2084 = vmatprep.subr.bf16.mxu0 0
    %2085 = vmatpush1.bf16.msra.mxu0 0
    %2086 = vmatprep.subr.bf16.mxu0 0
    %2087 = vmatpush1.bf16.msra.mxu0 0
    %2088 = vmatprep.subr.bf16.mxu0 0
    %2089 = vmatpush1.bf16.msra.mxu0 0
    %2090 = vmatprep.subr.bf16.mxu0 0
    %2091 = vmatpush1.bf16.msra.mxu0 0
    %2092 = vmatprep.subr.bf16.mxu0 0
    %2093 = vmatpush1.bf16.msra.mxu0 0
    %2094 = vmatprep.subr.bf16.mxu0 0
    %2095 = vmatpush1.bf16.msra.mxu0 0
    %2096 = vmatprep.mubr.bf16.mxu0 0
    %2097 = vmatmul.mubr.bf16.gmra.mrb[0].mxu0 %v2062
    %v2098 = vpop.f32.mrb[0].mxu0
    %v2099 = vadd.f32 0.0, %v2098
    %v2100 = vpop.f32.mrb[0].mxu0
    %v2101 = vpop.f32.mrb[0].mxu0
    %v2102 = vpop.f32.mrb[0].mxu0
    %2103 = vdwg.mxu0
    %v2104 = vpack.c.bf16 %v2099, %v2099
    %s2105 = scalar_lea.vmem %s8, 416
    %v2106 = vld [vmem:[%s2105] sm:$0xf]
    %v2107 = vld [vmem:[%s2105 + $0x4] sm:$0xf]
    %v2108 = vld [vmem:[%s2105 + $0x8] sm:$0xf]
    %v2109 = vld [vmem:[%s2105 + $0xc] sm:$0xf]
    %v2110 = vld [vmem:[%s2105 + $0x10] sm:$0xf]
    %v2111 = vld [vmem:[%s2105 + $0x14] sm:$0xf]
    %v2112 = vld [vmem:[%s2105 + $0x18] sm:$0xf]
    %v2113 = vld [vmem:[%s2105 + $0x1c] sm:$0xf]
    %v2122 = vunpack.c.l.b16 %v2106
    %v2123 = vunpack.c.l.b16 %v2107
    %v2124 = vunpack.c.l.b16 %v2108
    %v2125 = vunpack.c.l.b16 %v2109
    %v2126 = vunpack.c.l.b16 %v2110
    %v2127 = vunpack.c.l.b16 %v2111
    %v2128 = vunpack.c.l.b16 %v2112
    %v2129 = vunpack.c.l.b16 %v2113
    %v2130 = vpack.c.b16 %v2123, %v2122
    %v2131 = vpack.c.b16 %v2125, %v2124
    %v2132 = vpack.c.b16 %v2127, %v2126
    %v2133 = vpack.c.b16 %v2129, %v2128
    %vm2138 = vcmask 523264
    %v2140 = vsel %vm2138, %v2104, 0
    %2142 = vmatprep.subr.bf16.mxu0 0
    %2143 = vmatpush1.bf16.msra.mxu0 %v2130
    %2144 = vmatprep.subr.bf16.mxu0 0
    %2145 = vmatpush1.bf16.msra.mxu0 %v2131
    %2146 = vmatprep.subr.bf16.mxu0 0
    %2147 = vmatpush1.bf16.msra.mxu0 %v2132
    %2148 = vmatprep.subr.bf16.mxu0 0
    %2149 = vmatpush1.bf16.msra.mxu0 %v2133
    %2150 = vmatprep.subr.bf16.mxu0 0
    %2151 = vmatpush1.bf16.msra.mxu0 0
    %2152 = vmatprep.subr.bf16.mxu0 0
    %2153 = vmatpush1.bf16.msra.mxu0 0
    %2154 = vmatprep.subr.bf16.mxu0 0
    %2155 = vmatpush1.bf16.msra.mxu0 0
    %2156 = vmatprep.subr.bf16.mxu0 0
    %2157 = vmatpush1.bf16.msra.mxu0 0
    %2158 = vmatprep.subr.bf16.mxu0 0
    %2159 = vmatpush1.bf16.msra.mxu0 0
    %2160 = vmatprep.subr.bf16.mxu0 0
    %2161 = vmatpush1.bf16.msra.mxu0 0
    %2162 = vmatprep.subr.bf16.mxu0 0
    %2163 = vmatpush1.bf16.msra.mxu0 0
    %2164 = vmatprep.subr.bf16.mxu0 0
    %2165 = vmatpush1.bf16.msra.mxu0 0
    %2166 = vmatprep.subr.bf16.mxu0 0
    %2167 = vmatpush1.bf16.msra.mxu0 0
    %2168 = vmatprep.subr.bf16.mxu0 0
    %2169 = vmatpush1.bf16.msra.mxu0 0
    %2170 = vmatprep.subr.bf16.mxu0 0
    %2171 = vmatpush1.bf16.msra.mxu0 0
    %2172 = vmatprep.subr.bf16.mxu0 0
    %2173 = vmatpush1.bf16.msra.mxu0 0
    %2174 = vmatprep.mubr.bf16.mxu0 0
    %2175 = vmatmul.mubr.bf16.gmra.mrb[0].mxu0 %v2140
    %v2176 = vpop.f32.mrb[0].mxu0
    %v2177 = vadd.f32 0.0, %v2176
    %v2178 = vpop.f32.mrb[0].mxu0
    %v2179 = vpop.f32.mrb[0].mxu0
    %v2180 = vpop.f32.mrb[0].mxu0
    %2181 = vdwg.mxu0
    %v2190 = vunpack.c.l.b16 %v2051
    %v2191 = vunpack.c.l.b16 %v2052
    %v2192 = vunpack.c.l.b16 %v2053
    %v2193 = vunpack.c.l.b16 %v2054
    %v2194 = vunpack.c.l.b16 %v2055
    %v2195 = vunpack.c.l.b16 %v2056
    %v2196 = vunpack.c.l.b16 %v2057
    %v2197 = vunpack.c.l.b16 %v2058
    %v2198 = vpack.c.b16 %v2191, %v2190
    %v2199 = vpack.c.b16 %v2193, %v2192
    %v2200 = vpack.c.b16 %v2195, %v2194
    %v2201 = vpack.c.b16 %v2197, %v2196
    %v2207 = vsel %vm2138, %v2049, 0
    %2209 = vmatprep.subr.bf16.mxu0 0
    %2210 = vmatpush1.bf16.msra.mxu0 %v2198
    %2211 = vmatprep.subr.bf16.mxu0 0
    %2212 = vmatpush1.bf16.msra.mxu0 %v2199
    %2213 = vmatprep.subr.bf16.mxu0 0
    %2214 = vmatpush1.bf16.msra.mxu0 %v2200
    %2215 = vmatprep.subr.bf16.mxu0 0
    %2216 = vmatpush1.bf16.msra.mxu0 %v2201
    %2217 = vmatprep.subr.bf16.mxu0 0
    %2218 = vmatpush1.bf16.msra.mxu0 0
    %2219 = vmatprep.subr.bf16.mxu0 0
    %2220 = vmatpush1.bf16.msra.mxu0 0
    %2221 = vmatprep.subr.bf16.mxu0 0
    %2222 = vmatpush1.bf16.msra.mxu0 0
    %2223 = vmatprep.subr.bf16.mxu0 0
    %2224 = vmatpush1.bf16.msra.mxu0 0
    %2225 = vmatprep.subr.bf16.mxu0 0
    %2226 = vmatpush1.bf16.msra.mxu0 0
    %2227 = vmatprep.subr.bf16.mxu0 0
    %2228 = vmatpush1.bf16.msra.mxu0 0
    %2229 = vmatprep.subr.bf16.mxu0 0
    %2230 = vmatpush1.bf16.msra.mxu0 0
    %2231 = vmatprep.subr.bf16.mxu0 0
    %2232 = vmatpush1.bf16.msra.mxu0 0
    %2233 = vmatprep.subr.bf16.mxu0 0
    %2234 = vmatpush1.bf16.msra.mxu0 0
    %2235 = vmatprep.subr.bf16.mxu0 0
    %2236 = vmatpush1.bf16.msra.mxu0 0
    %2237 = vmatprep.subr.bf16.mxu0 0
    %2238 = vmatpush1.bf16.msra.mxu0 0
    %2239 = vmatprep.subr.bf16.mxu0 0
    %2240 = vmatpush1.bf16.msra.mxu0 0
    %2241 = vmatprep.mubr.bf16.mxu0 0
    %2242 = vmatmul.mubr.bf16.gmra.mrb[0].mxu0 %v2207
    %v2243 = vpop.f32.mrb[0].mxu0
    %v2244 = vadd.f32 %v2177, %v2243
    %v2245 = vpop.f32.mrb[0].mxu0
    %v2246 = vpop.f32.mrb[0].mxu0
    %v2247 = vpop.f32.mrb[0].mxu0
    %2248 = vdwg.mxu0
    %s2249 = scalar_lea.vmem %s7, 4
    %v2250 = vld [vmem:[%s2249] sm:$0x3]
    %v2252 = vsel %vm2001, %v2250, 0
    %2254 = vmatprep.subr.bf16.mxu0 0
    %2255 = vmatpush1.bf16.msra.mxu0 %v2007
    %2256 = vmatprep.subr.bf16.mxu0 0
    %2257 = vmatpush1.bf16.msra.mxu0 0
    %2258 = vmatprep.subr.bf16.mxu0 0
    %2259 = vmatpush1.bf16.msra.mxu0 0
    %2260 = vmatprep.subr.bf16.mxu0 0
    %2261 = vmatpush1.bf16.msra.mxu0 0
    %2262 = vmatprep.subr.bf16.mxu0 0
    %2263 = vmatpush1.bf16.msra.mxu0 0
    %2264 = vmatprep.subr.bf16.mxu0 0
    %2265 = vmatpush1.bf16.msra.mxu0 0
    %2266 = vmatprep.subr.bf16.mxu0 0
    %2267 = vmatpush1.bf16.msra.mxu0 0
    %2268 = vmatprep.subr.bf16.mxu0 0
    %2269 = vmatpush1.bf16.msra.mxu0 0
    %2270 = vmatprep.subr.bf16.mxu0 0
    %2271 = vmatpush1.bf16.msra.mxu0 0
    %2272 = vmatprep.subr.bf16.mxu0 0
    %2273 = vmatpush1.bf16.msra.mxu0 0
    %2274 = vmatprep.subr.bf16.mxu0 0
    %2275 = vmatpush1.bf16.msra.mxu0 0
    %2276 = vmatprep.subr.bf16.mxu0 0
    %2277 = vmatpush1.bf16.msra.mxu0 0
    %2278 = vmatprep.subr.bf16.mxu0 0
    %2279 = vmatpush1.bf16.msra.mxu0 0
    %2280 = vmatprep.subr.bf16.mxu0 0
    %2281 = vmatpush1.bf16.msra.mxu0 0
    %2282 = vmatprep.subr.bf16.mxu0 0
    %2283 = vmatpush1.bf16.msra.mxu0 0
    %2284 = vmatprep.subr.bf16.mxu0 0
    %2285 = vmatpush1.bf16.msra.mxu0 0
    %2286 = vmatprep.mubr.bf16.mxu0 0
    %2287 = vmatmul.mubr.bf16.gmra.mrb[0].mxu0 %v2252
    %v2288 = vpop.f32.mrb[0].mxu0
    %v2289 = vadd.f32 0.0, %v2288
    %v2290 = vpop.f32.mrb[0].mxu0
    %v2291 = vpop.f32.mrb[0].mxu0
    %v2292 = vpop.f32.mrb[0].mxu0
    %2293 = vdwg.mxu0
    %v2294 = vpack.c.bf16 %v2289, %v2289
    %s2295 = scalar_lea.vmem %s8, 512
    %v2296 = vld [vmem:[%s2295] sm:$0xf]
    %v2297 = vld [vmem:[%s2295 + $0x4] sm:$0xf]
    %v2298 = vld [vmem:[%s2295 + $0x8] sm:$0xf]
    %v2299 = vld [vmem:[%s2295 + $0xc] sm:$0xf]
    %v2300 = vld [vmem:[%s2295 + $0x10] sm:$0xf]
    %v2301 = vld [vmem:[%s2295 + $0x14] sm:$0xf]
    %v2302 = vld [vmem:[%s2295 + $0x18] sm:$0xf]
    %v2303 = vld [vmem:[%s2295 + $0x1c] sm:$0xf]
    %v2312 = vunpack.c.l.b16 %v2296
    %v2313 = vunpack.c.l.b16 %v2297
    %v2314 = vunpack.c.l.b16 %v2298
    %v2315 = vunpack.c.l.b16 %v2299
    %v2316 = vunpack.c.l.b16 %v2300
    %v2317 = vunpack.c.l.b16 %v2301
    %v2318 = vunpack.c.l.b16 %v2302
    %v2319 = vunpack.c.l.b16 %v2303
    %v2320 = vpack.c.b16 %v2313, %v2312
    %v2321 = vpack.c.b16 %v2315, %v2314
    %v2322 = vpack.c.b16 %v2317, %v2316
    %v2323 = vpack.c.b16 %v2319, %v2318
    %v2329 = vsel %vm2138, %v2294, 0
    %2331 = vmatprep.subr.bf16.mxu0 0
    %2332 = vmatpush1.bf16.msra.mxu0 %v2320
    %2333 = vmatprep.subr.bf16.mxu0 0
    %2334 = vmatpush1.bf16.msra.mxu0 %v2321
    %2335 = vmatprep.subr.bf16.mxu0 0
    %2336 = vmatpush1.bf16.msra.mxu0 %v2322
    %2337 = vmatprep.subr.bf16.mxu0 0
    %2338 = vmatpush1.bf16.msra.mxu0 %v2323
    %2339 = vmatprep.subr.bf16.mxu0 0
    %2340 = vmatpush1.bf16.msra.mxu0 0
    %2341 = vmatprep.subr.bf16.mxu0 0
    %2342 = vmatpush1.bf16.msra.mxu0 0
    %2343 = vmatprep.subr.bf16.mxu0 0
    %2344 = vmatpush1.bf16.msra.mxu0 0
    %2345 = vmatprep.subr.bf16.mxu0 0
    %2346 = vmatpush1.bf16.msra.mxu0 0
    %2347 = vmatprep.subr.bf16.mxu0 0
    %2348 = vmatpush1.bf16.msra.mxu0 0
    %2349 = vmatprep.subr.bf16.mxu0 0
    %2350 = vmatpush1.bf16.msra.mxu0 0
    %2351 = vmatprep.subr.bf16.mxu0 0
    %2352 = vmatpush1.bf16.msra.mxu0 0
    %2353 = vmatprep.subr.bf16.mxu0 0
    %2354 = vmatpush1.bf16.msra.mxu0 0
    %2355 = vmatprep.subr.bf16.mxu0 0
    %2356 = vmatpush1.bf16.msra.mxu0 0
    %2357 = vmatprep.subr.bf16.mxu0 0
    %2358 = vmatpush1.bf16.msra.mxu0 0
    %2359 = vmatprep.subr.bf16.mxu0 0
    %2360 = vmatpush1.bf16.msra.mxu0 0
    %2361 = vmatprep.subr.bf16.mxu0 0
    %2362 = vmatpush1.bf16.msra.mxu0 0
    %2363 = vmatprep.mubr.bf16.mxu0 0
    %2364 = vmatmul.mubr.bf16.gmra.mrb[0].mxu0 %v2329
    %v2365 = vpop.f32.mrb[0].mxu0
    %v2366 = vadd.f32 0.0, %v2365
    %v2367 = vpop.f32.mrb[0].mxu0
    %v2368 = vpop.f32.mrb[0].mxu0
    %v2369 = vpop.f32.mrb[0].mxu0
    %2370 = vdwg.mxu0
    %v2371 = vadd.f32 %v2244, %v2366
    %v2372 = vld [vmem:[%s9] sm:$0x1]
    %v2374 = vlaneseq
    %v2375 = vshrl.u32 %v2374, 7
    %v2376 = vsub.s32 0, %v2375
    %v2377 = vrot.slane %v2372, %v2376
    %v2379 = vadd.f32 %v2371, %v2377
    %vm2380 = vcmp.gt.f32.partialorder %v2379, 0.0
    %v2381 = vmul.f32 %v2379, 0.2
    %v2382 = vsel %vm2380, %v2379, %v2381
    %v2383 = vsel %vm2005, %v2382, 0.0
    %v2384 = vrot.slane %v2383, 4
    %v2385 = vadd.f32 %v2383, %v2384
    %v2386 = vrot.slane %v2385, 2
    %v2387 = vadd.f32 %v2385, %v2386
    %v2388 = vrot.slane %v2387, 1
    %v2389 = vadd.f32 %v2387, %v2388
    %v2390 = vmul.f32 %v2389, 0.25
    %v2391 = vld [vmem:[%s10] sm:$0xff]
    %v2392 = vld [vmem:[%s10 + $0x8] sm:$0xff]
    %v2393 = vld [vmem:[%s10 + $0x10] sm:$0xff]
    %v2394 = vld [vmem:[%s10 + $0x18] sm:$0xff]
    %v2395 = vld [vmem:[%s10 + $0x20] sm:$0xff]
    %v2396 = vld [vmem:[%s10 + $0x28] sm:$0xff]
    %v2397 = vld [vmem:[%s10 + $0x30] sm:$0xff]
    %v2398 = vld [vmem:[%s10 + $0x38] sm:$0xff]
    %v2399 = vld [vmem:[%s10 + $0x40] sm:$0xff]
    %v2400 = vld [vmem:[%s10 + $0x48] sm:$0xff]
    %v2401 = vld [vmem:[%s10 + $0x50] sm:$0xff]
    %v2402 = vld [vmem:[%s10 + $0x58] sm:$0xff]
    %v2403 = vld [vmem:[%s10 + $0x60] sm:$0xff]
    %v2404 = vld [vmem:[%s10 + $0x68] sm:$0xff]
    %v2405 = vld [vmem:[%s10 + $0x70] sm:$0xff]
    %v2406 = vld [vmem:[%s10 + $0x78] sm:$0xff]
    %v2407 = vld [vmem:[%s11] sm:$0x1]
    %2408 = vmatprep.subr.mxu0 0.0
    %2409 = vmatpush1.msra.mxu0 %v2391
    %2410 = vmatprep.subr.mxu0 0.0
    %2411 = vmatpush1.msra.mxu0 %v2392
    %2412 = vmatprep.subr.mxu0 0.0
    %2413 = vmatpush1.msra.mxu0 %v2393
    %2414 = vmatprep.subr.mxu0 0.0
    %2415 = vmatpush1.msra.mxu0 %v2394
    %2416 = vmatprep.subr.mxu0 0.0
    %2417 = vmatpush1.msra.mxu0 %v2395
    %2418 = vmatprep.subr.mxu0 0.0
    %2419 = vmatpush1.msra.mxu0 %v2396
    %2420 = vmatprep.subr.mxu0 0.0
    %2421 = vmatpush1.msra.mxu0 %v2397
    %2422 = vmatprep.subr.mxu0 0.0
    %2423 = vmatpush1.msra.mxu0 %v2398
    %2424 = vmatprep.subr.mxu0 0.0
    %2425 = vmatpush1.msra.mxu0 %v2399
    %2426 = vmatprep.subr.mxu0 0.0
    %2427 = vmatpush1.msra.mxu0 %v2400
    %2428 = vmatprep.subr.mxu0 0.0
    %2429 = vmatpush1.msra.mxu0 %v2401
    %2430 = vmatprep.subr.mxu0 0.0
    %2431 = vmatpush1.msra.mxu0 %v2402
    %2432 = vmatprep.subr.mxu0 0.0
    %2433 = vmatpush1.msra.mxu0 %v2403
    %2434 = vmatprep.subr.mxu0 0.0
    %2435 = vmatpush1.msra.mxu0 %v2404
    %2436 = vmatprep.subr.mxu0 0.0
    %2437 = vmatpush1.msra.mxu0 %v2405
    %2438 = vmatprep.subr.mxu0 0.0
    %2439 = vmatpush1.msra.mxu0 %v2406
    %2440 = vmatprep.subr.mxu0 0.0
    %2441 = vmatpush1.msra.mxu0 0.0
    %2442 = vmatprep.subr.mxu0 0.0
    %2443 = vmatpush1.msra.mxu0 0.0
    %2444 = vmatprep.subr.mxu0 0.0
    %2445 = vmatpush1.msra.mxu0 0.0
    %2446 = vmatprep.subr.mxu0 0.0
    %2447 = vmatpush1.msra.mxu0 0.0
    %2448 = vmatprep.subr.mxu0 0.0
    %2449 = vmatpush1.msra.mxu0 0.0
    %2450 = vmatprep.subr.mxu0 0.0
    %2451 = vmatpush1.msra.mxu0 0.0
    %2452 = vmatprep.subr.mxu0 0.0
    %2453 = vmatpush1.msra.mxu0 0.0
    %2454 = vmatprep.subr.mxu0 0.0
    %2455 = vmatpush1.msra.mxu0 0.0
    %2456 = vmatprep.subr.mxu0 0.0
    %2457 = vmatpush1.msra.mxu0 0.0
    %2458 = vmatprep.subr.mxu0 0.0
    %2459 = vmatpush1.msra.mxu0 0.0
    %2460 = vmatprep.subr.mxu0 0.0
    %2461 = vmatpush1.msra.mxu0 0.0
    %2462 = vmatprep.subr.mxu0 0.0
    %2463 = vmatpush1.msra.mxu0 0.0
    %2464 = vmatprep.subr.mxu0 0.0
    %2465 = vmatpush1.msra.mxu0 0.0
    %2466 = vmatprep.subr.mxu0 0.0
    %2467 = vmatpush1.msra.mxu0 0.0
    %2468 = vmatprep.subr.mxu0 0.0
    %2469 = vmatpush1.msra.mxu0 0.0
    %2470 = vmatprep.subr.mxu0 0.0
    %2471 = vmatpush1.msra.mxu0 0.0
    %2472 = vmatprep.mubr.f32.mxu0 0.0
    %2473 = vmatmul.mubr.f32.gmra.mrb[0].mxu0 %v2390
    %v2474 = vpop.f32.mrb[0].mxu0
    %v2475 = vadd.f32 %v2407, %v2474
    %v2476 = vpop.f32.mrb[0].mxu0
    %2477 = vdwg.mxu0
    %2478 = vst [vmem:[#allocation2] sm:$0x1] %v2475
    // Predicated region
    $region50: #{rhythm_discriminator_forward.3} parent=1 // pred_check
      _
    $region51: #{rhythm_discriminator_forward.3} parent=1 // pred_check_branch
      %2480 = sbr.rel (0) target = $region53
    $region52: #{rhythm_discriminator_forward.3} parent=1 // pred_region
      %s2482 = ssub.s32 16, 16
      %2483 = vsyncadd [#allocation3], %s2482
      %s2485 = sshll.u32 [#allocation2], 4
      %s2486 = int_to_ptr.vmem [resolvable:$true] %s2485
      %2488 = dma.vmem_to_hbm [thread:$0]  %s2486, 16, %s12, [#allocation3]
    $region53: #{rhythm_discriminator_forward.3} parent=1 // pred_fallthru
      _
    // Predicated region
    $region54: #{rhythm_discriminator_forward.3} parent=1 // pred_check
      _
    $region55: #{rhythm_discriminator_forward.3} parent=1 // pred_check_branch
      %2490 = sbr.rel (0) target = $region57
    $region56: #{rhythm_discriminator_forward.3} parent=1 // pred_region
      %2491 = dma.done [#allocation3], 16
    $region57: #{rhythm_discriminator_forward.3} parent=1 // pred_fallthru
      _
    %2492 = vsyncpa [#allocation3], 1

</llo_original>
